<compile_context>
chip_gen: v5e
topology: v5e:2x2
jax: 0.10.0
libtpu: 0.0.40
codegen_flags: <defaults>
</compile_context>

<pallas_src>
import jax
import jax.numpy as jnp
from jax.experimental import pallas as pl
from jax.experimental.pallas import tpu as pltpu

INPUT_DIM = 32
ACTION_DIM = 6
D_MODEL = 64      # transformer_hidden_dim
N_LAYERS = 2
FFN_DIM = 2048    # nn.TransformerEncoderLayer default dim_feedforward
HIDDEN2 = 64      # fc2 output
HEAD_PAD = 128    # lane-dense fused head width (>= ACTION_DIM + 1)
LN_EPS = 1e-5


def _layer_norm(y, w, b):
    # Single-pass LN: mean and mean-of-squares in one go (var = E[y^2] - mu^2).
    mu = jnp.mean(y, axis=-1, keepdims=True)
    ms = jnp.mean(y * y, axis=-1, keepdims=True)
    var = ms - mu * mu
    return (y - mu) * jax.lax.rsqrt(var + LN_EPS) * w + b


def policy_kernel(
    x_ref,
    fc1_w, fc1_b,                # (in, d), (1, d)
    attn_w, attn_b,              # (L, d, d), (L, 1, d)   -- folded  I + W_v @ W_out
    lin1_w, lin1_b,              # (L, d, ffn) bf16, (L, 1, ffn)
    lin2_w, lin2_b,              # (L, ffn, d) bf16, (L, 1, d)
    ln1_w, ln1_b,                # (L, 1, d)
    ln2_w, ln2_b,                # (L, 1, d)
    fc2_w, fc2_b,                # (d, 64), (1, 64)
    head_w, head_b,              # (64, 128), (1, 128)    -- fused action+value heads
    out_ref,                     # (block_b, 128): lanes [0,6)=probs, lane 6=value
):
    f32 = jnp.float32
    bf16 = jnp.bfloat16
    x = x_ref[...]

    # fc1 + relu
    h = jnp.maximum(
        jnp.dot(x, fc1_w[...], preferred_element_type=f32) + fc1_b[...], 0.0)

    # TransformerEncoder: N_LAYERS post-norm encoder layers (dropout = identity)
    for l in range(N_LAYERS):
        # seq-len-1 self-attention + residual, folded into one (d,d) matmul at prep time.
        h = _layer_norm(
            jnp.dot(h, attn_w[l], preferred_element_type=f32) + attn_b[l],
            ln1_w[l], ln1_b[l])

        # Feed-forward block: Linear(d, ffn) -> relu -> Linear(ffn, d).
        # bf16 operands straight to the MXU, f32 accumulation.
        ff = jnp.maximum(
            jnp.dot(h.astype(bf16), lin1_w[l], preferred_element_type=f32)
            + lin1_b[l], 0.0)
        ff = jnp.dot(ff.astype(bf16), lin2_w[l], preferred_element_type=f32) + lin2_b[l]
        h = _layer_norm(h + ff, ln2_w[l], ln2_b[l])

    # fc2 + relu
    h2 = jnp.maximum(
        jnp.dot(h, fc2_w[...], preferred_element_type=f32) + fc2_b[...], 0.0)

    # Fused action + value heads: one lane-dense matmul, masked softmax over the first
    # ACTION_DIM lanes; value in lane ACTION_DIM, zeros elsewhere.  Exact division so
    # probability rows sum to 1 within f32 precision.
    head = jnp.dot(h2, head_w[...], preferred_element_type=f32) + head_b[...]
    lane = jax.lax.broadcasted_iota(jnp.int32, head.shape, 1)
    is_act = lane < ACTION_DIM
    logits = jnp.where(is_act, head, jnp.float32(-1e30))
    logits = logits - jnp.max(logits, axis=-1, keepdims=True)
    e = jnp.where(is_act, jnp.exp(logits), 0.0)
    denom = jnp.sum(e, axis=-1, keepdims=True)
    out_ref[...] = jnp.where(is_act, e / denom, head)


def _replicated_spec(shape):
    nd = len(shape)
    return pl.BlockSpec(shape, lambda i, _nd=nd: (0,) * _nd)


def prepare_kernel_params(params):
    """Fold attention (seq-len-1) + residual, fuse output heads; returns kernel params."""
    (fc1_w, fc1_b, ipw, ipb, opw, opb, l1w, l1b, l2w, l2b,
     n1w, n1b, n2w, n2b, fc2_w, fc2_b, act_w, act_b, val_w, val_b) = params

    # h + ((h @ Wv + bv) @ Wo + bo)  ==  h @ (I + Wv @ Wo) + (bv @ Wo + bo)
    wv = ipw[:, :, 2 * D_MODEL:]                        # (L, d, d) value projection
    bv = ipb[:, :, 2 * D_MODEL:]                        # (L, 1, d)
    eye = jnp.eye(D_MODEL, dtype=jnp.float32)[None]     # (1, d, d)
    attn_w = jnp.einsum("lij,ljk->lik", wv, opw) + eye  # (L, d, d)  includes residual
    attn_b = jnp.einsum("lij,ljk->lik", bv, opw) + opb  # (L, 1, d)

    # Fused, zero-padded (64, 128) head: lanes [0,6) = action head, lane 6 = value head.
    head_w = jnp.zeros((HIDDEN2, HEAD_PAD), jnp.float32)
    head_w = head_w.at[:, :ACTION_DIM].set(act_w)
    head_w = head_w.at[:, ACTION_DIM:ACTION_DIM + 1].set(val_w)
    head_b = jnp.zeros((1, HEAD_PAD), jnp.float32)
    head_b = head_b.at[:, :ACTION_DIM].set(act_b)
    head_b = head_b.at[:, ACTION_DIM:ACTION_DIM + 1].set(val_b)

    return (fc1_w, fc1_b, attn_w, attn_b, l1w, l1b, l2w, l2b,
            n1w, n1b, n2w, n2b, fc2_w, fc2_b, head_w, head_b)


def policy_network_forward(x, kernel_params, *, block_b=None):
    batch = x.shape[0]
    if block_b is None:
        block_b = min(batch, 256)   # 256 fills the v6e/v7x MXU M dim; fine on v5e too
    assert batch % block_b == 0, "batch must be a multiple of the batch block"
    grid = (batch // block_b,)

    in_specs = [pl.BlockSpec((block_b, INPUT_DIM), lambda i: (i, 0))]
    in_specs += [_replicated_spec(p.shape) for p in kernel_params]

    out = pl.pallas_call(
        policy_kernel,
        grid=grid,
        in_specs=in_specs,
        out_specs=pl.BlockSpec((block_b, HEAD_PAD), lambda i: (i, 0)),
        out_shape=jax.ShapeDtypeStruct((batch, HEAD_PAD), jnp.float32),
        compiler_params=pltpu.CompilerParams(
            dimension_semantics=("parallel",)),
    )(x, *kernel_params)

    probs = out[:, :ACTION_DIM]
    values = out[:, ACTION_DIM:ACTION_DIM + 1]
    return probs, values


def init_params(key):
    """Deterministic synthetic parameters (PyTorch-Linear-style uniform init).

    The large FFN weights are stored in bfloat16 (the model's weight values ARE these
    bf16 numbers); the f32 reference uses the same values upcast to f32.
    """
    def dense(k, fan_in, fan_out):
        kw, kb = jax.random.split(k)
        lim = 1.0 / float(fan_in) ** 0.5
        w = jax.random.uniform(kw, (fan_in, fan_out), jnp.float32, -lim, lim)
        b = jax.random.uniform(kb, (1, fan_out), jnp.float32, -lim, lim)
        return w, b

    ks = jax.random.split(key, 4 + N_LAYERS)
    fc1_w, fc1_b = dense(ks[0], INPUT_DIM, D_MODEL)
    fc2_w, fc2_b = dense(ks[1], D_MODEL, HIDDEN2)
    act_w, act_b = dense(ks[2], HIDDEN2, ACTION_DIM)
    val_w, val_b = dense(ks[3], HIDDEN2, 1)

    names = ["ipw", "ipb", "opw", "opb", "l1w", "l1b", "l2w", "l2b",
             "n1w", "n1b", "n2w", "n2b"]
    layer = {n: [] for n in names}
    for l in range(N_LAYERS):
        lk = jax.random.split(ks[4 + l], 4)
        ipw, ipb = dense(lk[0], D_MODEL, 3 * D_MODEL)   # stacked [Wq; Wk; Wv]^T
        opw, opb = dense(lk[1], D_MODEL, D_MODEL)
        l1w, l1b = dense(lk[2], D_MODEL, FFN_DIM)
        l2w, l2b = dense(lk[3], FFN_DIM, D_MODEL)
        l1w = l1w.astype(jnp.bfloat16)                  # big FFN weights kept in bf16
        l2w = l2w.astype(jnp.bfloat16)
        vals = [ipw, ipb, opw, opb, l1w, l1b, l2w, l2b,
                jnp.ones((1, D_MODEL), jnp.float32),
                jnp.zeros((1, D_MODEL), jnp.float32),
                jnp.ones((1, D_MODEL), jnp.float32),
                jnp.zeros((1, D_MODEL), jnp.float32)]
        for n, v in zip(names, vals):
            layer[n].append(v)

    stk = lambda n: jnp.stack(layer[n], axis=0)
    return (
        fc1_w, fc1_b,
        stk("ipw"), stk("ipb"), stk("opw"), stk("opb"),
        stk("l1w"), stk("l1b"), stk("l2w"), stk("l2b"),
        stk("n1w"), stk("n1b"), stk("n2w"), stk("n2b"),
        fc2_w, fc2_b, act_w, act_b, val_w, val_b,
    )


def reference_forward(x, params):
    """Pure-JAX f32 reference with PyTorch module semantics (unfused attention/heads)."""
    (fc1_w, fc1_b, ipw, ipb, opw, opb, l1w, l1b, l2w, l2b,
     n1w, n1b, n2w, n2b, fc2_w, fc2_b, act_w, act_b, val_w, val_b) = params

    def ln(y, w, b):
        mu = jnp.mean(y, -1, keepdims=True)
        var = jnp.mean((y - mu) ** 2, -1, keepdims=True)
        return (y - mu) / jnp.sqrt(var + LN_EPS) * w + b

    h = jax.nn.relu(x @ fc1_w + fc1_b)
    for l in range(N_LAYERS):
        v = h @ ipw[l][:, 2 * D_MODEL:] + ipb[l][:, 2 * D_MODEL:]
        attn = v @ opw[l] + opb[l]
        h = ln(h + attn, n1w[l], n1b[l])
        ff = jax.nn.relu(h @ l1w[l].astype(jnp.float32) + l1b[l])
        ff = ff @ l2w[l].astype(jnp.float32) + l2b[l]
        h = ln(h + ff, n2w[l], n2b[l])
    h2 = jax.nn.relu(h @ fc2_w + fc2_b)
    probs = jax.nn.softmax(h2 @ act_w + act_b, axis=-1)
    values = h2 @ val_w + val_b
    return probs, values


if __name__ == "__main__":
    key = jax.random.PRNGKey(0)
    kx, kp = jax.random.split(key)
    batch = 8
    x = jax.random.normal(kx, (batch, INPUT_DIM), jnp.float32)
    params = init_params(kp)
    kernel_params = prepare_kernel_params(params)

    probs, values = policy_network_forward(x, kernel_params)
    jax.block_until_ready((probs, values))

    ref_probs, ref_values = reference_forward(x, params)
    assert probs.shape == (batch, ACTION_DIM) and values.shape == (batch, 1)
    # Exact-division softmax: rows sum to 1 within f32 precision.
    assert jnp.allclose(jnp.sum(probs, axis=-1), 1.0, atol=1e-4)
    # Kernel runs the FFN matmuls with bf16 operands (f32 accumulation); allow bf16-level
    # activation-rounding drift vs. the all-f32 reference.
    assert jnp.allclose(probs, ref_probs, atol=2e-2, rtol=2e-2)
    assert jnp.allclose(values, ref_values, atol=2e-2, rtol=2e-2)
    print("KERNEL_OK")
</pallas_src>

<mosaic_0001>
module attributes {stable_mosaic.version = 11 : i64} {
  func.func @policy_kernel(%arg0: i32, %arg1: memref<8x32xf32, #tpu.memory_space<vmem>>, %arg2: memref<32x64xf32, #tpu.memory_space<vmem>>, %arg3: memref<1x64xf32, #tpu.memory_space<vmem>>, %arg4: memref<2x64x64xf32, #tpu.memory_space<vmem>>, %arg5: memref<2x1x64xf32, #tpu.memory_space<vmem>>, %arg6: memref<2x64x2048xbf16, #tpu.memory_space<vmem>>, %arg7: memref<2x1x2048xf32, #tpu.memory_space<vmem>>, %arg8: memref<2x2048x64xbf16, #tpu.memory_space<vmem>>, %arg9: memref<2x1x64xf32, #tpu.memory_space<vmem>>, %arg10: memref<2x1x64xf32, #tpu.memory_space<vmem>>, %arg11: memref<2x1x64xf32, #tpu.memory_space<vmem>>, %arg12: memref<2x1x64xf32, #tpu.memory_space<vmem>>, %arg13: memref<2x1x64xf32, #tpu.memory_space<vmem>>, %arg14: memref<64x64xf32, #tpu.memory_space<vmem>>, %arg15: memref<1x64xf32, #tpu.memory_space<vmem>>, %arg16: memref<64x128xf32, #tpu.memory_space<vmem>>, %arg17: memref<1x128xf32, #tpu.memory_space<vmem>>, %arg18: memref<8x128xf32, #tpu.memory_space<vmem>>) attributes {dimension_semantics = [#tpu.dimension_semantics<parallel>], iteration_bounds = array<i64: 1>, scalar_prefetch = 0 : i64, scratch_operands = 0 : i64, tpu.core_type = #tpu.core_type<tc>, window_params = [{transform_indices = @transform_0, window_bounds = array<i64: 8, 32>}, {pipeline_mode = #tpu.pipeline_mode<synchronous>, transform_indices = @transform_1, window_bounds = array<i64: 32, 64>}, {pipeline_mode = #tpu.pipeline_mode<synchronous>, transform_indices = @transform_2, window_bounds = array<i64: 1, 64>}, {pipeline_mode = #tpu.pipeline_mode<synchronous>, transform_indices = @transform_3, window_bounds = array<i64: 2, 64, 64>}, {pipeline_mode = #tpu.pipeline_mode<synchronous>, transform_indices = @transform_4, window_bounds = array<i64: 2, 1, 64>}, {pipeline_mode = #tpu.pipeline_mode<synchronous>, transform_indices = @transform_5, window_bounds = array<i64: 2, 64, 2048>}, {pipeline_mode = #tpu.pipeline_mode<synchronous>, transform_indices = @transform_6, window_bounds = array<i64: 2, 1, 2048>}, {pipeline_mode = #tpu.pipeline_mode<synchronous>, transform_indices = @transform_7, window_bounds = array<i64: 2, 2048, 64>}, {pipeline_mode = #tpu.pipeline_mode<synchronous>, transform_indices = @transform_8, window_bounds = array<i64: 2, 1, 64>}, {pipeline_mode = #tpu.pipeline_mode<synchronous>, transform_indices = @transform_9, window_bounds = array<i64: 2, 1, 64>}, {pipeline_mode = #tpu.pipeline_mode<synchronous>, transform_indices = @transform_10, window_bounds = array<i64: 2, 1, 64>}, {pipeline_mode = #tpu.pipeline_mode<synchronous>, transform_indices = @transform_11, window_bounds = array<i64: 2, 1, 64>}, {pipeline_mode = #tpu.pipeline_mode<synchronous>, transform_indices = @transform_12, window_bounds = array<i64: 2, 1, 64>}, {pipeline_mode = #tpu.pipeline_mode<synchronous>, transform_indices = @transform_13, window_bounds = array<i64: 64, 64>}, {pipeline_mode = #tpu.pipeline_mode<synchronous>, transform_indices = @transform_14, window_bounds = array<i64: 1, 64>}, {pipeline_mode = #tpu.pipeline_mode<synchronous>, transform_indices = @transform_15, window_bounds = array<i64: 64, 128>}, {pipeline_mode = #tpu.pipeline_mode<synchronous>, transform_indices = @transform_16, window_bounds = array<i64: 1, 128>}, {transform_indices = @transform_17, window_bounds = array<i64: 8, 128>}]} {
    %c0 = arith.constant 0 : index
    %c0_0 = arith.constant 0 : index
    %0 = vector.load %arg1[%c0, %c0_0] : memref<8x32xf32, #tpu.memory_space<vmem>>, vector<8x32xf32>
    %c0_1 = arith.constant 0 : index
    %c0_2 = arith.constant 0 : index
    %1 = vector.load %arg2[%c0_1, %c0_2] : memref<32x64xf32, #tpu.memory_space<vmem>>, vector<32x64xf32>
    %cst = arith.constant dense<0.000000e+00> : vector<8x64xf32>
    %2 = tpu.matmul %0, %1, %cst {dimension_numbers = #tpu.dot_dimension_numbers<[1], [0], [0], [1], [0, 0, 1, 1], [], []>} : vector<8x32xf32>, vector<32x64xf32>, vector<8x64xf32> -> vector<8x64xf32>
    %c0_3 = arith.constant 0 : index
    %c0_4 = arith.constant 0 : index
    %3 = vector.load %arg3[%c0_3, %c0_4] : memref<1x64xf32, #tpu.memory_space<vmem>>, vector<1x64xf32>
    %4 = vector.broadcast %3 : vector<1x64xf32> to vector<8x64xf32>
    %5 = arith.addf %2, %4 : vector<8x64xf32>
    %cst_5 = arith.constant 0.000000e+00 : f32
    %6 = vector.broadcast %cst_5 : f32 to vector<8x64xf32>
    %7 = arith.maximumf %5, %6 : vector<8x64xf32>
    %c0_6 = arith.constant 0 : index
    %c0_7 = arith.constant 0 : index
    %c0_8 = arith.constant 0 : index
    %8 = vector.load %arg4[%c0_6, %c0_7, %c0_8] : memref<2x64x64xf32, #tpu.memory_space<vmem>>, vector<1x64x64xf32>
    %9 = vector.shape_cast %8 : vector<1x64x64xf32> to vector<64x64xf32>
    %cst_9 = arith.constant dense<0.000000e+00> : vector<8x64xf32>
    %10 = tpu.matmul %7, %9, %cst_9 {dimension_numbers = #tpu.dot_dimension_numbers<[1], [0], [0], [1], [0, 0, 1, 1], [], []>} : vector<8x64xf32>, vector<64x64xf32>, vector<8x64xf32> -> vector<8x64xf32>
    %c0_10 = arith.constant 0 : index
    %c0_11 = arith.constant 0 : index
    %c0_12 = arith.constant 0 : index
    %11 = vector.load %arg5[%c0_10, %c0_11, %c0_12] : memref<2x1x64xf32, #tpu.memory_space<vmem>>, vector<1x1x64xf32>
    %12 = vector.shape_cast %11 : vector<1x1x64xf32> to vector<1x64xf32>
    %13 = vector.broadcast %12 : vector<1x64xf32> to vector<8x64xf32>
    %14 = arith.addf %10, %13 : vector<8x64xf32>
    %c0_13 = arith.constant 0 : index
    %c0_14 = arith.constant 0 : index
    %c0_15 = arith.constant 0 : index
    %15 = vector.load %arg10[%c0_13, %c0_14, %c0_15] : memref<2x1x64xf32, #tpu.memory_space<vmem>>, vector<1x1x64xf32>
    %16 = vector.shape_cast %15 : vector<1x1x64xf32> to vector<1x64xf32>
    %c0_16 = arith.constant 0 : index
    %c0_17 = arith.constant 0 : index
    %c0_18 = arith.constant 0 : index
    %17 = vector.load %arg11[%c0_16, %c0_17, %c0_18] : memref<2x1x64xf32, #tpu.memory_space<vmem>>, vector<1x1x64xf32>
    %18 = vector.shape_cast %17 : vector<1x1x64xf32> to vector<1x64xf32>
    %cst_19 = arith.constant dense<0.000000e+00> : vector<8xf32>
    %19 = vector.multi_reduction <add>, %14, %cst_19 [1] : vector<8x64xf32> to vector<8xf32>
    %20 = vector.shape_cast %19 : vector<8xf32> to vector<8x1xf32>
    %cst_20 = arith.constant 6.400000e+01 : f32
    %21 = vector.broadcast %cst_20 : f32 to vector<8x1xf32>
    %22 = arith.divf %20, %21 : vector<8x1xf32>
    %23 = arith.mulf %14, %14 : vector<8x64xf32>
    %cst_21 = arith.constant dense<0.000000e+00> : vector<8xf32>
    %24 = vector.multi_reduction <add>, %23, %cst_21 [1] : vector<8x64xf32> to vector<8xf32>
    %25 = vector.shape_cast %24 : vector<8xf32> to vector<8x1xf32>
    %cst_22 = arith.constant 6.400000e+01 : f32
    %26 = vector.broadcast %cst_22 : f32 to vector<8x1xf32>
    %27 = arith.divf %25, %26 : vector<8x1xf32>
    %28 = arith.mulf %22, %22 : vector<8x1xf32>
    %29 = arith.subf %27, %28 : vector<8x1xf32>
    %30 = vector.broadcast %22 : vector<8x1xf32> to vector<8x64xf32>
    %31 = arith.subf %14, %30 : vector<8x64xf32>
    %cst_23 = arith.constant 9.99999974E-6 : f32
    %32 = vector.broadcast %cst_23 : f32 to vector<8x1xf32>
    %33 = arith.addf %29, %32 : vector<8x1xf32>
    %34 = math.rsqrt %33 : vector<8x1xf32>
    %35 = vector.broadcast %34 : vector<8x1xf32> to vector<8x64xf32>
    %36 = arith.mulf %31, %35 : vector<8x64xf32>
    %37 = vector.broadcast %16 : vector<1x64xf32> to vector<8x64xf32>
    %38 = arith.mulf %36, %37 : vector<8x64xf32>
    %39 = vector.broadcast %18 : vector<1x64xf32> to vector<8x64xf32>
    %40 = arith.addf %38, %39 : vector<8x64xf32>
    %41 = arith.truncf %40 : vector<8x64xf32> to vector<8x64xbf16>
    %c0_24 = arith.constant 0 : index
    %c0_25 = arith.constant 0 : index
    %c0_26 = arith.constant 0 : index
    %42 = vector.load %arg6[%c0_24, %c0_25, %c0_26] : memref<2x64x2048xbf16, #tpu.memory_space<vmem>>, vector<1x64x2048xbf16>
    %43 = vector.shape_cast %42 : vector<1x64x2048xbf16> to vector<64x2048xbf16>
    %cst_27 = arith.constant dense<0.000000e+00> : vector<8x2048xf32>
    %44 = tpu.matmul %41, %43, %cst_27 {dimension_numbers = #tpu.dot_dimension_numbers<[1], [0], [0], [1], [0, 0, 1, 1], [], []>} : vector<8x64xbf16>, vector<64x2048xbf16>, vector<8x2048xf32> -> vector<8x2048xf32>
    %c0_28 = arith.constant 0 : index
    %c0_29 = arith.constant 0 : index
    %c0_30 = arith.constant 0 : index
    %45 = vector.load %arg7[%c0_28, %c0_29, %c0_30] : memref<2x1x2048xf32, #tpu.memory_space<vmem>>, vector<1x1x2048xf32>
    %46 = vector.shape_cast %45 : vector<1x1x2048xf32> to vector<1x2048xf32>
    %47 = vector.broadcast %46 : vector<1x2048xf32> to vector<8x2048xf32>
    %48 = arith.addf %44, %47 : vector<8x2048xf32>
    %cst_31 = arith.constant 0.000000e+00 : f32
    %49 = vector.broadcast %cst_31 : f32 to vector<8x2048xf32>
    %50 = arith.maximumf %48, %49 : vector<8x2048xf32>
    %51 = arith.truncf %50 : vector<8x2048xf32> to vector<8x2048xbf16>
    %c0_32 = arith.constant 0 : index
    %c0_33 = arith.constant 0 : index
    %c0_34 = arith.constant 0 : index
    %52 = vector.load %arg8[%c0_32, %c0_33, %c0_34] : memref<2x2048x64xbf16, #tpu.memory_space<vmem>>, vector<1x2048x64xbf16>
    %53 = vector.shape_cast %52 : vector<1x2048x64xbf16> to vector<2048x64xbf16>
    %cst_35 = arith.constant dense<0.000000e+00> : vector<8x64xf32>
    %54 = tpu.matmul %51, %53, %cst_35 {dimension_numbers = #tpu.dot_dimension_numbers<[1], [0], [0], [1], [0, 0, 1, 1], [], []>} : vector<8x2048xbf16>, vector<2048x64xbf16>, vector<8x64xf32> -> vector<8x64xf32>
    %c0_36 = arith.constant 0 : index
    %c0_37 = arith.constant 0 : index
    %c0_38 = arith.constant 0 : index
    %55 = vector.load %arg9[%c0_36, %c0_37, %c0_38] : memref<2x1x64xf32, #tpu.memory_space<vmem>>, vector<1x1x64xf32>
    %56 = vector.shape_cast %55 : vector<1x1x64xf32> to vector<1x64xf32>
    %57 = vector.broadcast %56 : vector<1x64xf32> to vector<8x64xf32>
    %58 = arith.addf %54, %57 : vector<8x64xf32>
    %59 = arith.addf %40, %58 : vector<8x64xf32>
    %c0_39 = arith.constant 0 : index
    %c0_40 = arith.constant 0 : index
    %c0_41 = arith.constant 0 : index
    %60 = vector.load %arg12[%c0_39, %c0_40, %c0_41] : memref<2x1x64xf32, #tpu.memory_space<vmem>>, vector<1x1x64xf32>
    %61 = vector.shape_cast %60 : vector<1x1x64xf32> to vector<1x64xf32>
    %c0_42 = arith.constant 0 : index
    %c0_43 = arith.constant 0 : index
    %c0_44 = arith.constant 0 : index
    %62 = vector.load %arg13[%c0_42, %c0_43, %c0_44] : memref<2x1x64xf32, #tpu.memory_space<vmem>>, vector<1x1x64xf32>
    %63 = vector.shape_cast %62 : vector<1x1x64xf32> to vector<1x64xf32>
    %cst_45 = arith.constant dense<0.000000e+00> : vector<8xf32>
    %64 = vector.multi_reduction <add>, %59, %cst_45 [1] : vector<8x64xf32> to vector<8xf32>
    %65 = vector.shape_cast %64 : vector<8xf32> to vector<8x1xf32>
    %cst_46 = arith.constant 6.400000e+01 : f32
    %66 = vector.broadcast %cst_46 : f32 to vector<8x1xf32>
    %67 = arith.divf %65, %66 : vector<8x1xf32>
    %68 = arith.mulf %59, %59 : vector<8x64xf32>
    %cst_47 = arith.constant dense<0.000000e+00> : vector<8xf32>
    %69 = vector.multi_reduction <add>, %68, %cst_47 [1] : vector<8x64xf32> to vector<8xf32>
    %70 = vector.shape_cast %69 : vector<8xf32> to vector<8x1xf32>
    %cst_48 = arith.constant 6.400000e+01 : f32
    %71 = vector.broadcast %cst_48 : f32 to vector<8x1xf32>
    %72 = arith.divf %70, %71 : vector<8x1xf32>
    %73 = arith.mulf %67, %67 : vector<8x1xf32>
    %74 = arith.subf %72, %73 : vector<8x1xf32>
    %75 = vector.broadcast %67 : vector<8x1xf32> to vector<8x64xf32>
    %76 = arith.subf %59, %75 : vector<8x64xf32>
    %cst_49 = arith.constant 9.99999974E-6 : f32
    %77 = vector.broadcast %cst_49 : f32 to vector<8x1xf32>
    %78 = arith.addf %74, %77 : vector<8x1xf32>
    %79 = math.rsqrt %78 : vector<8x1xf32>
    %80 = vector.broadcast %79 : vector<8x1xf32> to vector<8x64xf32>
    %81 = arith.mulf %76, %80 : vector<8x64xf32>
    %82 = vector.broadcast %61 : vector<1x64xf32> to vector<8x64xf32>
    %83 = arith.mulf %81, %82 : vector<8x64xf32>
    %84 = vector.broadcast %63 : vector<1x64xf32> to vector<8x64xf32>
    %85 = arith.addf %83, %84 : vector<8x64xf32>
    %c1 = arith.constant 1 : index
    %c0_50 = arith.constant 0 : index
    %c0_51 = arith.constant 0 : index
    %86 = vector.load %arg4[%c1, %c0_50, %c0_51] : memref<2x64x64xf32, #tpu.memory_space<vmem>>, vector<1x64x64xf32>
    %87 = vector.shape_cast %86 : vector<1x64x64xf32> to vector<64x64xf32>
    %cst_52 = arith.constant dense<0.000000e+00> : vector<8x64xf32>
    %88 = tpu.matmul %85, %87, %cst_52 {dimension_numbers = #tpu.dot_dimension_numbers<[1], [0], [0], [1], [0, 0, 1, 1], [], []>} : vector<8x64xf32>, vector<64x64xf32>, vector<8x64xf32> -> vector<8x64xf32>
    %c1_53 = arith.constant 1 : index
    %c0_54 = arith.constant 0 : index
    %c0_55 = arith.constant 0 : index
    %89 = vector.load %arg5[%c1_53, %c0_54, %c0_55] : memref<2x1x64xf32, #tpu.memory_space<vmem>>, vector<1x1x64xf32>
    %90 = vector.shape_cast %89 : vector<1x1x64xf32> to vector<1x64xf32>
    %91 = vector.broadcast %90 : vector<1x64xf32> to vector<8x64xf32>
    %92 = arith.addf %88, %91 : vector<8x64xf32>
    %c1_56 = arith.constant 1 : index
    %c0_57 = arith.constant 0 : index
    %c0_58 = arith.constant 0 : index
    %93 = vector.load %arg10[%c1_56, %c0_57, %c0_58] : memref<2x1x64xf32, #tpu.memory_space<vmem>>, vector<1x1x64xf32>
    %94 = vector.shape_cast %93 : vector<1x1x64xf32> to vector<1x64xf32>
    %c1_59 = arith.constant 1 : index
    %c0_60 = arith.constant 0 : index
    %c0_61 = arith.constant 0 : index
    %95 = vector.load %arg11[%c1_59, %c0_60, %c0_61] : memref<2x1x64xf32, #tpu.memory_space<vmem>>, vector<1x1x64xf32>
    %96 = vector.shape_cast %95 : vector<1x1x64xf32> to vector<1x64xf32>
    %cst_62 = arith.constant dense<0.000000e+00> : vector<8xf32>
    %97 = vector.multi_reduction <add>, %92, %cst_62 [1] : vector<8x64xf32> to vector<8xf32>
    %98 = vector.shape_cast %97 : vector<8xf32> to vector<8x1xf32>
    %cst_63 = arith.constant 6.400000e+01 : f32
    %99 = vector.broadcast %cst_63 : f32 to vector<8x1xf32>
    %100 = arith.divf %98, %99 : vector<8x1xf32>
    %101 = arith.mulf %92, %92 : vector<8x64xf32>
    %cst_64 = arith.constant dense<0.000000e+00> : vector<8xf32>
    %102 = vector.multi_reduction <add>, %101, %cst_64 [1] : vector<8x64xf32> to vector<8xf32>
    %103 = vector.shape_cast %102 : vector<8xf32> to vector<8x1xf32>
    %cst_65 = arith.constant 6.400000e+01 : f32
    %104 = vector.broadcast %cst_65 : f32 to vector<8x1xf32>
    %105 = arith.divf %103, %104 : vector<8x1xf32>
    %106 = arith.mulf %100, %100 : vector<8x1xf32>
    %107 = arith.subf %105, %106 : vector<8x1xf32>
    %108 = vector.broadcast %100 : vector<8x1xf32> to vector<8x64xf32>
    %109 = arith.subf %92, %108 : vector<8x64xf32>
    %cst_66 = arith.constant 9.99999974E-6 : f32
    %110 = vector.broadcast %cst_66 : f32 to vector<8x1xf32>
    %111 = arith.addf %107, %110 : vector<8x1xf32>
    %112 = math.rsqrt %111 : vector<8x1xf32>
    %113 = vector.broadcast %112 : vector<8x1xf32> to vector<8x64xf32>
    %114 = arith.mulf %109, %113 : vector<8x64xf32>
    %115 = vector.broadcast %94 : vector<1x64xf32> to vector<8x64xf32>
    %116 = arith.mulf %114, %115 : vector<8x64xf32>
    %117 = vector.broadcast %96 : vector<1x64xf32> to vector<8x64xf32>
    %118 = arith.addf %116, %117 : vector<8x64xf32>
    %119 = arith.truncf %118 : vector<8x64xf32> to vector<8x64xbf16>
    %c1_67 = arith.constant 1 : index
    %c0_68 = arith.constant 0 : index
    %c0_69 = arith.constant 0 : index
    %120 = vector.load %arg6[%c1_67, %c0_68, %c0_69] : memref<2x64x2048xbf16, #tpu.memory_space<vmem>>, vector<1x64x2048xbf16>
    %121 = vector.shape_cast %120 : vector<1x64x2048xbf16> to vector<64x2048xbf16>
    %cst_70 = arith.constant dense<0.000000e+00> : vector<8x2048xf32>
    %122 = tpu.matmul %119, %121, %cst_70 {dimension_numbers = #tpu.dot_dimension_numbers<[1], [0], [0], [1], [0, 0, 1, 1], [], []>} : vector<8x64xbf16>, vector<64x2048xbf16>, vector<8x2048xf32> -> vector<8x2048xf32>
    %c1_71 = arith.constant 1 : index
    %c0_72 = arith.constant 0 : index
    %c0_73 = arith.constant 0 : index
    %123 = vector.load %arg7[%c1_71, %c0_72, %c0_73] : memref<2x1x2048xf32, #tpu.memory_space<vmem>>, vector<1x1x2048xf32>
    %124 = vector.shape_cast %123 : vector<1x1x2048xf32> to vector<1x2048xf32>
    %125 = vector.broadcast %124 : vector<1x2048xf32> to vector<8x2048xf32>
    %126 = arith.addf %122, %125 : vector<8x2048xf32>
    %cst_74 = arith.constant 0.000000e+00 : f32
    %127 = vector.broadcast %cst_74 : f32 to vector<8x2048xf32>
    %128 = arith.maximumf %126, %127 : vector<8x2048xf32>
    %129 = arith.truncf %128 : vector<8x2048xf32> to vector<8x2048xbf16>
    %c1_75 = arith.constant 1 : index
    %c0_76 = arith.constant 0 : index
    %c0_77 = arith.constant 0 : index
    %130 = vector.load %arg8[%c1_75, %c0_76, %c0_77] : memref<2x2048x64xbf16, #tpu.memory_space<vmem>>, vector<1x2048x64xbf16>
    %131 = vector.shape_cast %130 : vector<1x2048x64xbf16> to vector<2048x64xbf16>
    %cst_78 = arith.constant dense<0.000000e+00> : vector<8x64xf32>
    %132 = tpu.matmul %129, %131, %cst_78 {dimension_numbers = #tpu.dot_dimension_numbers<[1], [0], [0], [1], [0, 0, 1, 1], [], []>} : vector<8x2048xbf16>, vector<2048x64xbf16>, vector<8x64xf32> -> vector<8x64xf32>
    %c1_79 = arith.constant 1 : index
    %c0_80 = arith.constant 0 : index
    %c0_81 = arith.constant 0 : index
    %133 = vector.load %arg9[%c1_79, %c0_80, %c0_81] : memref<2x1x64xf32, #tpu.memory_space<vmem>>, vector<1x1x64xf32>
    %134 = vector.shape_cast %133 : vector<1x1x64xf32> to vector<1x64xf32>
    %135 = vector.broadcast %134 : vector<1x64xf32> to vector<8x64xf32>
    %136 = arith.addf %132, %135 : vector<8x64xf32>
    %137 = arith.addf %118, %136 : vector<8x64xf32>
    %c1_82 = arith.constant 1 : index
    %c0_83 = arith.constant 0 : index
    %c0_84 = arith.constant 0 : index
    %138 = vector.load %arg12[%c1_82, %c0_83, %c0_84] : memref<2x1x64xf32, #tpu.memory_space<vmem>>, vector<1x1x64xf32>
    %139 = vector.shape_cast %138 : vector<1x1x64xf32> to vector<1x64xf32>
    %c1_85 = arith.constant 1 : index
    %c0_86 = arith.constant 0 : index
    %c0_87 = arith.constant 0 : index
    %140 = vector.load %arg13[%c1_85, %c0_86, %c0_87] : memref<2x1x64xf32, #tpu.memory_space<vmem>>, vector<1x1x64xf32>
    %141 = vector.shape_cast %140 : vector<1x1x64xf32> to vector<1x64xf32>
    %cst_88 = arith.constant dense<0.000000e+00> : vector<8xf32>
    %142 = vector.multi_reduction <add>, %137, %cst_88 [1] : vector<8x64xf32> to vector<8xf32>
    %143 = vector.shape_cast %142 : vector<8xf32> to vector<8x1xf32>
    %cst_89 = arith.constant 6.400000e+01 : f32
    %144 = vector.broadcast %cst_89 : f32 to vector<8x1xf32>
    %145 = arith.divf %143, %144 : vector<8x1xf32>
    %146 = arith.mulf %137, %137 : vector<8x64xf32>
    %cst_90 = arith.constant dense<0.000000e+00> : vector<8xf32>
    %147 = vector.multi_reduction <add>, %146, %cst_90 [1] : vector<8x64xf32> to vector<8xf32>
    %148 = vector.shape_cast %147 : vector<8xf32> to vector<8x1xf32>
    %cst_91 = arith.constant 6.400000e+01 : f32
    %149 = vector.broadcast %cst_91 : f32 to vector<8x1xf32>
    %150 = arith.divf %148, %149 : vector<8x1xf32>
    %151 = arith.mulf %145, %145 : vector<8x1xf32>
    %152 = arith.subf %150, %151 : vector<8x1xf32>
    %153 = vector.broadcast %145 : vector<8x1xf32> to vector<8x64xf32>
    %154 = arith.subf %137, %153 : vector<8x64xf32>
    %cst_92 = arith.constant 9.99999974E-6 : f32
    %155 = vector.broadcast %cst_92 : f32 to vector<8x1xf32>
    %156 = arith.addf %152, %155 : vector<8x1xf32>
    %157 = math.rsqrt %156 : vector<8x1xf32>
    %158 = vector.broadcast %157 : vector<8x1xf32> to vector<8x64xf32>
    %159 = arith.mulf %154, %158 : vector<8x64xf32>
    %160 = vector.broadcast %139 : vector<1x64xf32> to vector<8x64xf32>
    %161 = arith.mulf %159, %160 : vector<8x64xf32>
    %162 = vector.broadcast %141 : vector<1x64xf32> to vector<8x64xf32>
    %163 = arith.addf %161, %162 : vector<8x64xf32>
    %c0_93 = arith.constant 0 : index
    %c0_94 = arith.constant 0 : index
    %164 = vector.load %arg14[%c0_93, %c0_94] : memref<64x64xf32, #tpu.memory_space<vmem>>, vector<64x64xf32>
    %cst_95 = arith.constant dense<0.000000e+00> : vector<8x64xf32>
    %165 = tpu.matmul %163, %164, %cst_95 {dimension_numbers = #tpu.dot_dimension_numbers<[1], [0], [0], [1], [0, 0, 1, 1], [], []>} : vector<8x64xf32>, vector<64x64xf32>, vector<8x64xf32> -> vector<8x64xf32>
    %c0_96 = arith.constant 0 : index
    %c0_97 = arith.constant 0 : index
    %166 = vector.load %arg15[%c0_96, %c0_97] : memref<1x64xf32, #tpu.memory_space<vmem>>, vector<1x64xf32>
    %167 = vector.broadcast %166 : vector<1x64xf32> to vector<8x64xf32>
    %168 = arith.addf %165, %167 : vector<8x64xf32>
    %cst_98 = arith.constant 0.000000e+00 : f32
    %169 = vector.broadcast %cst_98 : f32 to vector<8x64xf32>
    %170 = arith.maximumf %168, %169 : vector<8x64xf32>
    %c0_99 = arith.constant 0 : index
    %c0_100 = arith.constant 0 : index
    %171 = vector.load %arg16[%c0_99, %c0_100] : memref<64x128xf32, #tpu.memory_space<vmem>>, vector<64x128xf32>
    %cst_101 = arith.constant dense<0.000000e+00> : vector<8x128xf32>
    %172 = tpu.matmul %170, %171, %cst_101 {dimension_numbers = #tpu.dot_dimension_numbers<[1], [0], [0], [1], [0, 0, 1, 1], [], []>} : vector<8x64xf32>, vector<64x128xf32>, vector<8x128xf32> -> vector<8x128xf32>
    %c0_102 = arith.constant 0 : index
    %c0_103 = arith.constant 0 : index
    %173 = vector.load %arg17[%c0_102, %c0_103] : memref<1x128xf32, #tpu.memory_space<vmem>>, vector<1x128xf32>
    %174 = vector.broadcast %173 : vector<1x128xf32> to vector<8x128xf32>
    %175 = arith.addf %172, %174 : vector<8x128xf32>
    %176 = tpu.iota {dimensions = array<i32: 1>} : vector<8x128xi32>
    %c6_i32 = arith.constant 6 : i32
    %177 = vector.broadcast %c6_i32 : i32 to vector<8x128xi32>
    %178 = arith.cmpi slt, %176, %177 : vector<8x128xi32>
    %cst_104 = arith.constant -1.000000e+30 : f32
    %179 = vector.broadcast %cst_104 : f32 to vector<8x128xf32>
    %180 = arith.select %178, %175, %179 : vector<8x128xi1>, vector<8x128xf32>
    %cst_105 = arith.constant dense<0xFF800000> : vector<8xf32>
    %181 = vector.multi_reduction <maximumf>, %180, %cst_105 [1] : vector<8x128xf32> to vector<8xf32>
    %182 = vector.shape_cast %181 : vector<8xf32> to vector<8x1xf32>
    %183 = vector.broadcast %182 : vector<8x1xf32> to vector<8x128xf32>
    %184 = arith.subf %180, %183 : vector<8x128xf32>
    %185 = math.exp %184 : vector<8x128xf32>
    %cst_106 = arith.constant 0.000000e+00 : f32
    %186 = vector.broadcast %cst_106 : f32 to vector<8x128xf32>
    %187 = arith.select %178, %185, %186 : vector<8x128xi1>, vector<8x128xf32>
    %cst_107 = arith.constant dense<0.000000e+00> : vector<8xf32>
    %188 = vector.multi_reduction <add>, %187, %cst_107 [1] : vector<8x128xf32> to vector<8xf32>
    %189 = vector.shape_cast %188 : vector<8xf32> to vector<8x1xf32>
    %190 = vector.broadcast %189 : vector<8x1xf32> to vector<8x128xf32>
    %191 = arith.divf %187, %190 : vector<8x128xf32>
    %192 = arith.select %178, %191, %175 : vector<8x128xi1>, vector<8x128xf32>
    %c0_108 = arith.constant 0 : index
    %c0_109 = arith.constant 0 : index
    %193 = vector.load %arg18[%c0_108, %c0_109] : memref<8x128xf32, #tpu.memory_space<vmem>>, vector<8x128xf32>
    tpu.vector_store %arg18[%c0_108, %c0_109], %192 {strides = array<i32>} : memref<8x128xf32, #tpu.memory_space<vmem>>, vector<8x128xf32>,
    return
  }
  func.func @transform_0(%arg0: i32) -> (i32, i32) {
    %c0_i32 = arith.constant 0 : i32
    %c0_i32_0 = arith.constant 0 : i32
    return %arg0, %c0_i32 : i32, i32
  }
  func.func @transform_1(%arg0: i32) -> (i32, i32) {
    %c0_i32 = arith.constant 0 : i32
    %c0_i32_0 = arith.constant 0 : i32
    %c0_i32_1 = arith.constant 0 : i32
    return %c0_i32, %c0_i32_0 : i32, i32
  }
  func.func @transform_2(%arg0: i32) -> (i32, i32) {
    %c0_i32 = arith.constant 0 : i32
    %c0_i32_0 = arith.constant 0 : i32
    %c0_i32_1 = arith.constant 0 : i32
    return %c0_i32, %c0_i32_0 : i32, i32
  }
  func.func @transform_3(%arg0: i32) -> (i32, i32, i32) {
    %c0_i32 = arith.constant 0 : i32
    %c0_i32_0 = arith.constant 0 : i32
    %c0_i32_1 = arith.constant 0 : i32
    %c0_i32_2 = arith.constant 0 : i32
    return %c0_i32, %c0_i32_0, %c0_i32_1 : i32, i32, i32
  }
  func.func @transform_4(%arg0: i32) -> (i32, i32, i32) {
    %c0_i32 = arith.constant 0 : i32
    %c0_i32_0 = arith.constant 0 : i32
    %c0_i32_1 = arith.constant 0 : i32
    %c0_i32_2 = arith.constant 0 : i32
    return %c0_i32, %c0_i32_0, %c0_i32_1 : i32, i32, i32
  }
  func.func @transform_5(%arg0: i32) -> (i32, i32, i32) {
    %c0_i32 = arith.constant 0 : i32
    %c0_i32_0 = arith.constant 0 : i32
    %c0_i32_1 = arith.constant 0 : i32
    %c0_i32_2 = arith.constant 0 : i32
    return %c0_i32, %c0_i32_0, %c0_i32_1 : i32, i32, i32
  }
  func.func @transform_6(%arg0: i32) -> (i32, i32, i32) {
    %c0_i32 = arith.constant 0 : i32
    %c0_i32_0 = arith.constant 0 : i32
    %c0_i32_1 = arith.constant 0 : i32
    %c0_i32_2 = arith.constant 0 : i32
    return %c0_i32, %c0_i32_0, %c0_i32_1 : i32, i32, i32
  }
  func.func @transform_7(%arg0: i32) -> (i32, i32, i32) {
    %c0_i32 = arith.constant 0 : i32
    %c0_i32_0 = arith.constant 0 : i32
    %c0_i32_1 = arith.constant 0 : i32
    %c0_i32_2 = arith.constant 0 : i32
    return %c0_i32, %c0_i32_0, %c0_i32_1 : i32, i32, i32
  }
  func.func @transform_8(%arg0: i32) -> (i32, i32, i32) {
    %c0_i32 = arith.constant 0 : i32
    %c0_i32_0 = arith.constant 0 : i32
    %c0_i32_1 = arith.constant 0 : i32
    %c0_i32_2 = arith.constant 0 : i32
    return %c0_i32, %c0_i32_0, %c0_i32_1 : i32, i32, i32
  }
  func.func @transform_9(%arg0: i32) -> (i32, i32, i32) {
    %c0_i32 = arith.constant 0 : i32
    %c0_i32_0 = arith.constant 0 : i32
    %c0_i32_1 = arith.constant 0 : i32
    %c0_i32_2 = arith.constant 0 : i32
    return %c0_i32, %c0_i32_0, %c0_i32_1 : i32, i32, i32
  }
  func.func @transform_10(%arg0: i32) -> (i32, i32, i32) {
    %c0_i32 = arith.constant 0 : i32
    %c0_i32_0 = arith.constant 0 : i32
    %c0_i32_1 = arith.constant 0 : i32
    %c0_i32_2 = arith.constant 0 : i32
    return %c0_i32, %c0_i32_0, %c0_i32_1 : i32, i32, i32
  }
  func.func @transform_11(%arg0: i32) -> (i32, i32, i32) {
    %c0_i32 = arith.constant 0 : i32
    %c0_i32_0 = arith.constant 0 : i32
    %c0_i32_1 = arith.constant 0 : i32
    %c0_i32_2 = arith.constant 0 : i32
    return %c0_i32, %c0_i32_0, %c0_i32_1 : i32, i32, i32
  }
  func.func @transform_12(%arg0: i32) -> (i32, i32, i32) {
    %c0_i32 = arith.constant 0 : i32
    %c0_i32_0 = arith.constant 0 : i32
    %c0_i32_1 = arith.constant 0 : i32
    %c0_i32_2 = arith.constant 0 : i32
    return %c0_i32, %c0_i32_0, %c0_i32_1 : i32, i32, i32
  }
  func.func @transform_13(%arg0: i32) -> (i32, i32) {
    %c0_i32 = arith.constant 0 : i32
    %c0_i32_0 = arith.constant 0 : i32
    %c0_i32_1 = arith.constant 0 : i32
    return %c0_i32, %c0_i32_0 : i32, i32
  }
  func.func @transform_14(%arg0: i32) -> (i32, i32) {
    %c0_i32 = arith.constant 0 : i32
    %c0_i32_0 = arith.constant 0 : i32
    %c0_i32_1 = arith.constant 0 : i32
    return %c0_i32, %c0_i32_0 : i32, i32
  }
  func.func @transform_15(%arg0: i32) -> (i32, i32) {
    %c0_i32 = arith.constant 0 : i32
    %c0_i32_0 = arith.constant 0 : i32
    %c0_i32_1 = arith.constant 0 : i32
    return %c0_i32, %c0_i32_0 : i32, i32
  }
  func.func @transform_16(%arg0: i32) -> (i32, i32) {
    %c0_i32 = arith.constant 0 : i32
    %c0_i32_0 = arith.constant 0 : i32
    %c0_i32_1 = arith.constant 0 : i32
    return %c0_i32, %c0_i32_0 : i32, i32
  }
  func.func @transform_17(%arg0: i32) -> (i32, i32) {
    %c0_i32 = arith.constant 0 : i32
    %c0_i32_0 = arith.constant 0 : i32
    return %arg0, %c0_i32 : i32, i32
  }
}

</mosaic_0001>

<llo_original>
// kernel: tpu_custom_call.1
$region0: #{tpu_custom_call.1}
  #allocation0 [shape = 'u32[]', space=smem, size = 0x4, offset = 0x4, fixed_abs, tag = 'smem constant byte address 0x4 - core index']
  #allocation1 [shape = 'u32[72,128]{1,0:T(1,128)}', space=vmem, size = 0x9000, scoped, tag = 'internal scratch']
  %s0 = inlined_call_operand.vmem [shape: f32[8,32], index: 0, kind: input, shape index: {}]
  %s1 = inlined_call_operand.vmem [shape: f32[32,64], index: 1, kind: input, shape index: {}]
  %s2 = inlined_call_operand.vmem [shape: f32[1,64], index: 2, kind: input, shape index: {}]
  %s3 = inlined_call_operand.vmem [shape: f32[2,64,64], index: 3, kind: input, shape index: {}]
  %s4 = inlined_call_operand.vmem [shape: f32[2,1,64], index: 4, kind: input, shape index: {}]
  %s5 = inlined_call_operand.vmem [shape: bf16[2,64,2048], index: 5, kind: input, shape index: {}]
  %s6 = inlined_call_operand.vmem [shape: f32[2,1,2048], index: 6, kind: input, shape index: {}]
  %s7 = inlined_call_operand.vmem [shape: bf16[2,2048,64], index: 7, kind: input, shape index: {}]
  %s8 = inlined_call_operand.vmem [shape: f32[2,1,64], index: 8, kind: input, shape index: {}]
  %s9 = inlined_call_operand.vmem [shape: f32[2,1,64], index: 9, kind: input, shape index: {}]
  %s10 = inlined_call_operand.vmem [shape: f32[2,1,64], index: 10, kind: input, shape index: {}]
  %s11 = inlined_call_operand.vmem [shape: f32[2,1,64], index: 11, kind: input, shape index: {}]
  %s12 = inlined_call_operand.vmem [shape: f32[2,1,64], index: 12, kind: input, shape index: {}]
  %s13 = inlined_call_operand.vmem [shape: f32[64,64], index: 13, kind: input, shape index: {}]
  %s14 = inlined_call_operand.vmem [shape: f32[1,64], index: 14, kind: input, shape index: {}]
  %s15 = inlined_call_operand.vmem [shape: f32[64,128], index: 15, kind: input, shape index: {}]
  %s16 = inlined_call_operand.vmem [shape: f32[1,128], index: 16, kind: input, shape index: {}]
  %s17 = inlined_call_operand.hbm [shape: f32[8,128], index: 17, kind: output, shape index: {}]
  %s18 = sld [smem:[#allocation0]]
  $region78: #{tpu_custom_call.1} parent=0
    _
  %s20 = ssub.s32 1, %s18
  %s21 = scalar_select 0, %s20, %s18
  $region1: #{tpu_custom_call.1} parent=0
    #allocation2 [shape = 'u8[4096]{0}', space=vmem, size = 0x1000, scoped, tag = 'output window, operand 0, single buffered']
    #allocation3 [shape = 's32[1]{0}', space=sflag, size = 0x4, scoped, tag = 'scoped memory for tpu_custom_call.1']
    %22 = vsyncpa [#allocation3], 0
    // Predicated region
    $region2: #{tpu_custom_call.1} parent=1 // pred_check
      _
    $region3: #{tpu_custom_call.1} parent=1 // pred_check_branch
      %24 = sbr.rel (0) target = $region5
    $region4: #{tpu_custom_call.1} parent=1 // pred_region
      _
    $region5: #{tpu_custom_call.1} parent=1 // pred_fallthru
      _
    // Predicated region
    $region6: #{tpu_custom_call.1} parent=1 // pred_check
      _
    $region7: #{tpu_custom_call.1} parent=1 // pred_check_branch
      %26 = sbr.rel (0) target = $region9
    $region8: #{tpu_custom_call.1} parent=1 // pred_region
      _
    $region9: #{tpu_custom_call.1} parent=1 // pred_fallthru
      _
    // Predicated region
    $region10: #{tpu_custom_call.1} parent=1 // pred_check
      _
    $region11: #{tpu_custom_call.1} parent=1 // pred_check_branch
      %28 = sbr.rel (0) target = $region13
    $region12: #{tpu_custom_call.1} parent=1 // pred_region
      _
    $region13: #{tpu_custom_call.1} parent=1 // pred_fallthru
      _
    // Predicated region
    $region14: #{tpu_custom_call.1} parent=1 // pred_check
      _
    $region15: #{tpu_custom_call.1} parent=1 // pred_check_branch
      %30 = sbr.rel (0) target = $region17
    $region16: #{tpu_custom_call.1} parent=1 // pred_region
      _
    $region17: #{tpu_custom_call.1} parent=1 // pred_fallthru
      _
    // Predicated region
    $region18: #{tpu_custom_call.1} parent=1 // pred_check
      _
    $region19: #{tpu_custom_call.1} parent=1 // pred_check_branch
      %32 = sbr.rel (0) target = $region21
    $region20: #{tpu_custom_call.1} parent=1 // pred_region
      _
    $region21: #{tpu_custom_call.1} parent=1 // pred_fallthru
      _
    // Predicated region
    $region22: #{tpu_custom_call.1} parent=1 // pred_check
      _
    $region23: #{tpu_custom_call.1} parent=1 // pred_check_branch
      %34 = sbr.rel (0) target = $region25
    $region24: #{tpu_custom_call.1} parent=1 // pred_region
      _
    $region25: #{tpu_custom_call.1} parent=1 // pred_fallthru
      _
    // Predicated region
    $region26: #{tpu_custom_call.1} parent=1 // pred_check
      _
    $region27: #{tpu_custom_call.1} parent=1 // pred_check_branch
      %36 = sbr.rel (0) target = $region29
    $region28: #{tpu_custom_call.1} parent=1 // pred_region
      _
    $region29: #{tpu_custom_call.1} parent=1 // pred_fallthru
      _
    // Predicated region
    $region30: #{tpu_custom_call.1} parent=1 // pred_check
      _
    $region31: #{tpu_custom_call.1} parent=1 // pred_check_branch
      %38 = sbr.rel (0) target = $region33
    $region32: #{tpu_custom_call.1} parent=1 // pred_region
      _
    $region33: #{tpu_custom_call.1} parent=1 // pred_fallthru
      _
    // Predicated region
    $region34: #{tpu_custom_call.1} parent=1 // pred_check
      _
    $region35: #{tpu_custom_call.1} parent=1 // pred_check_branch
      %40 = sbr.rel (0) target = $region37
    $region36: #{tpu_custom_call.1} parent=1 // pred_region
      _
    $region37: #{tpu_custom_call.1} parent=1 // pred_fallthru
      _
    // Predicated region
    $region38: #{tpu_custom_call.1} parent=1 // pred_check
      _
    $region39: #{tpu_custom_call.1} parent=1 // pred_check_branch
      %42 = sbr.rel (0) target = $region41
    $region40: #{tpu_custom_call.1} parent=1 // pred_region
      _
    $region41: #{tpu_custom_call.1} parent=1 // pred_fallthru
      _
    // Predicated region
    $region42: #{tpu_custom_call.1} parent=1 // pred_check
      _
    $region43: #{tpu_custom_call.1} parent=1 // pred_check_branch
      %44 = sbr.rel (0) target = $region45
    $region44: #{tpu_custom_call.1} parent=1 // pred_region
      _
    $region45: #{tpu_custom_call.1} parent=1 // pred_fallthru
      _
    // Predicated region
    $region46: #{tpu_custom_call.1} parent=1 // pred_check
      _
    $region47: #{tpu_custom_call.1} parent=1 // pred_check_branch
      %46 = sbr.rel (0) target = $region49
    $region48: #{tpu_custom_call.1} parent=1 // pred_region
      _
    $region49: #{tpu_custom_call.1} parent=1 // pred_fallthru
      _
    // Predicated region
    $region50: #{tpu_custom_call.1} parent=1 // pred_check
      _
    $region51: #{tpu_custom_call.1} parent=1 // pred_check_branch
      %48 = sbr.rel (0) target = $region53
    $region52: #{tpu_custom_call.1} parent=1 // pred_region
      _
    $region53: #{tpu_custom_call.1} parent=1 // pred_fallthru
      _
    // Predicated region
    $region54: #{tpu_custom_call.1} parent=1 // pred_check
      _
    $region55: #{tpu_custom_call.1} parent=1 // pred_check_branch
      %50 = sbr.rel (0) target = $region57
    $region56: #{tpu_custom_call.1} parent=1 // pred_region
      _
    $region57: #{tpu_custom_call.1} parent=1 // pred_fallthru
      _
    // Predicated region
    $region58: #{tpu_custom_call.1} parent=1 // pred_check
      _
    $region59: #{tpu_custom_call.1} parent=1 // pred_check_branch
      %52 = sbr.rel (0) target = $region61
    $region60: #{tpu_custom_call.1} parent=1 // pred_region
      _
    $region61: #{tpu_custom_call.1} parent=1 // pred_fallthru
      _
    // Predicated region
    $region62: #{tpu_custom_call.1} parent=1 // pred_check
      _
    $region63: #{tpu_custom_call.1} parent=1 // pred_check_branch
      %54 = sbr.rel (0) target = $region65
    $region64: #{tpu_custom_call.1} parent=1 // pred_region
      _
    $region65: #{tpu_custom_call.1} parent=1 // pred_fallthru
      _
    // Predicated region
    $region66: #{tpu_custom_call.1} parent=1 // pred_check
      _
    $region67: #{tpu_custom_call.1} parent=1 // pred_check_branch
      %56 = sbr.rel (0) target = $region69
    $region68: #{tpu_custom_call.1} parent=1 // pred_region
      _
    $region69: #{tpu_custom_call.1} parent=1 // pred_fallthru
      _
    %v58 = vld [vmem:[%s0] sm:$0xff]
    %v59 = vld [vmem:[%s1] sm:$0xff]
    %v60 = vld [vmem:[%s1 + $0x8] sm:$0xff]
    %v61 = vld [vmem:[%s1 + $0x10] sm:$0xff]
    %v62 = vld [vmem:[%s1 + $0x18] sm:$0xff]
    %v63 = vld [vmem:[%s2] sm:$0x1]
    %v65 = vperm.slane %v63, 0
    %vm67 = vcmask 261120
    %v69 = vsel %vm67, %v58, 0
    %71 = vmatpush.msra.mxu0 0.0
    %72 = vmatpush.msra.mxu0 0.0
    %73 = vmatpush.msra.mxu0 0.0
    %74 = vmatpush.msra.mxu0 0.0
    %75 = vmatpush.msra.mxu0 0.0
    %76 = vmatpush.msra.mxu0 0.0
    %77 = vmatpush.msra.mxu0 0.0
    %78 = vmatpush.msra.mxu0 0.0
    %79 = vmatpush.msra.mxu0 0.0
    %80 = vmatpush.msra.mxu0 0.0
    %81 = vmatpush.msra.mxu0 0.0
    %82 = vmatpush.msra.mxu0 0.0
    %83 = vmatpush.msra.mxu0 %v62
    %84 = vmatpush.msra.mxu0 %v61
    %85 = vmatpush.msra.mxu0 %v60
    %86 = vmatpush.msra.mxu0 %v59
    %87 = vmatmul.f32.gmra.mxu0 %v69
    %v88 = vpop.f32.mrf.mxu0
    %v89 = vadd.f32 %v65, %v88
    %90 = vdwg.mxu0
    %v91 = vmax.f32 %v89, 0.0
    %v92 = vld [vmem:[%s3] sm:$0xff]
    %v93 = vld [vmem:[%s3 + $0x8] sm:$0xff]
    %v94 = vld [vmem:[%s3 + $0x10] sm:$0xff]
    %v95 = vld [vmem:[%s3 + $0x18] sm:$0xff]
    %v96 = vld [vmem:[%s3 + $0x20] sm:$0xff]
    %v97 = vld [vmem:[%s3 + $0x28] sm:$0xff]
    %v98 = vld [vmem:[%s3 + $0x30] sm:$0xff]
    %v99 = vld [vmem:[%s3 + $0x38] sm:$0xff]
    %v100 = vld [vmem:[%s4] sm:$0x1]
    %v102 = vperm.slane %v100, 0
    %vm104 = vcmask 523264
    %v106 = vsel %vm104, %v91, 0
    %108 = vmatpush.msra.mxu0 0.0
    %109 = vmatpush.msra.mxu0 0.0
    %110 = vmatpush.msra.mxu0 0.0
    %111 = vmatpush.msra.mxu0 0.0
    %112 = vmatpush.msra.mxu0 0.0
    %113 = vmatpush.msra.mxu0 0.0
    %114 = vmatpush.msra.mxu0 0.0
    %115 = vmatpush.msra.mxu0 0.0
    %116 = vmatpush.msra.mxu0 %v99
    %117 = vmatpush.msra.mxu0 %v98
    %118 = vmatpush.msra.mxu0 %v97
    %119 = vmatpush.msra.mxu0 %v96
    %120 = vmatpush.msra.mxu0 %v95
    %121 = vmatpush.msra.mxu0 %v94
    %122 = vmatpush.msra.mxu0 %v93
    %123 = vmatpush.msra.mxu0 %v92
    %124 = vmatmul.f32.gmra.mxu0 %v106
    %v125 = vpop.f32.mrf.mxu0
    %v126 = vadd.f32 %v102, %v125
    %127 = vdwg.mxu0
    %v128 = vld [vmem:[%s9] sm:$0x1]
    %v129 = vld [vmem:[%s10] sm:$0x1]
    %v130 = vsel %vm104, %v126, 0.0
    %131 = vadd.xlane.f32.xlu0 %v130
    %v132 = vpop.xlane.xlu0 %131
    %v133 = vrcp.pop 64.0
    %v134 = vmul.f32 64.0, %v133
    %v135 = vsub.f32 1.0, %v134
    %v136 = vmul.f32 %v133, %v135
    %v137 = vadd.f32 %v133, %v136
    %vm138 = vweird.f32 %v133
    %v139 = vsel %vm138, %v133, %v137
    %v140 = vmul.f32 %v132, %v139
    %v141 = vmul.f32 %v126, %v126
    %v142 = vsel %vm104, %v141, 0.0
    %143 = vadd.xlane.f32.xlu0 %v142
    %v144 = vpop.xlane.xlu0 %143
    %v145 = vmul.f32 %v144, %v139
    %v146 = vmul.f32 %v140, %v140
    %v147 = vsub.f32 %v145, %v146
    %v148 = vsub.f32 %v126, %v140
    %v149 = vadd.f32 %v147, 1e-05
    %v150 = vrsqrt.pop %v149
    %v151 = vmul.f32 %v150, %v149
    %v152 = vmul.f32 %v151, %v150
    %v153 = vmul.f32 0.5, %v152
    %v154 = vsub.f32 1.5, %v153
    %v155 = vmul.f32 %v150, %v154
    %vm156 = vweird.f32 %v149
    %vm157 = vweird.f32 %v150
    %vm158 = vmor %vm156, %vm157
    %v159 = vsel %vm158, %v150, %v155
    %v160 = vmul.f32 %v148, %v159
    %v162 = vperm.slane %v128, 0
    %v164 = vmul.f32 %v160, %v162
    %v166 = vperm.slane %v129, 0
    %v168 = vadd.f32 %v164, %v166
    %v169 = vpack.c.bf16 %v168, %v168
    %v170 = vld [vmem:[%s5] sm:$0xff]
    %v171 = vld [vmem:[%s5 + $0x8] sm:$0xff]
    %v172 = vld [vmem:[%s5 + $0x10] sm:$0xff]
    %v173 = vld [vmem:[%s5 + $0x18] sm:$0xff]
    %v174 = vld [vmem:[%s5 + $0x20] sm:$0xff]
    %v175 = vld [vmem:[%s5 + $0x28] sm:$0xff]
    %v176 = vld [vmem:[%s5 + $0x30] sm:$0xff]
    %v177 = vld [vmem:[%s5 + $0x38] sm:$0xff]
    %v178 = vld [vmem:[%s5 + $0x40] sm:$0xff]
    %v179 = vld [vmem:[%s5 + $0x48] sm:$0xff]
    %v180 = vld [vmem:[%s5 + $0x50] sm:$0xff]
    %v181 = vld [vmem:[%s5 + $0x58] sm:$0xff]
    %v182 = vld [vmem:[%s5 + $0x60] sm:$0xff]
    %v183 = vld [vmem:[%s5 + $0x68] sm:$0xff]
    %v184 = vld [vmem:[%s5 + $0x70] sm:$0xff]
    %v185 = vld [vmem:[%s5 + $0x78] sm:$0xff]
    %v186 = vld [vmem:[%s5 + $0x80] sm:$0xff]
    %v187 = vld [vmem:[%s5 + $0x88] sm:$0xff]
    %v188 = vld [vmem:[%s5 + $0x90] sm:$0xff]
    %v189 = vld [vmem:[%s5 + $0x98] sm:$0xff]
    %v190 = vld [vmem:[%s5 + $0xa0] sm:$0xff]
    %v191 = vld [vmem:[%s5 + $0xa8] sm:$0xff]
    %v192 = vld [vmem:[%s5 + $0xb0] sm:$0xff]
    %v193 = vld [vmem:[%s5 + $0xb8] sm:$0xff]
    %v194 = vld [vmem:[%s5 + $0xc0] sm:$0xff]
    %v195 = vld [vmem:[%s5 + $0xc8] sm:$0xff]
    %v196 = vld [vmem:[%s5 + $0xd0] sm:$0xff]
    %v197 = vld [vmem:[%s5 + $0xd8] sm:$0xff]
    %v198 = vld [vmem:[%s5 + $0xe0] sm:$0xff]
    %v199 = vld [vmem:[%s5 + $0xe8] sm:$0xff]
    %v200 = vld [vmem:[%s5 + $0xf0] sm:$0xff]
    %v201 = vld [vmem:[%s5 + $0xf8] sm:$0xff]
    %v202 = vld [vmem:[%s5 + $0x100] sm:$0xff]
    %v203 = vld [vmem:[%s5 + $0x108] sm:$0xff]
    %v204 = vld [vmem:[%s5 + $0x110] sm:$0xff]
    %v205 = vld [vmem:[%s5 + $0x118] sm:$0xff]
    %v206 = vld [vmem:[%s5 + $0x120] sm:$0xff]
    %v207 = vld [vmem:[%s5 + $0x128] sm:$0xff]
    %v208 = vld [vmem:[%s5 + $0x130] sm:$0xff]
    %v209 = vld [vmem:[%s5 + $0x138] sm:$0xff]
    %v210 = vld [vmem:[%s5 + $0x140] sm:$0xff]
    %v211 = vld [vmem:[%s5 + $0x148] sm:$0xff]
    %v212 = vld [vmem:[%s5 + $0x150] sm:$0xff]
    %v213 = vld [vmem:[%s5 + $0x158] sm:$0xff]
    %v214 = vld [vmem:[%s5 + $0x160] sm:$0xff]
    %v215 = vld [vmem:[%s5 + $0x168] sm:$0xff]
    %v216 = vld [vmem:[%s5 + $0x170] sm:$0xff]
    %v217 = vld [vmem:[%s5 + $0x178] sm:$0xff]
    %v218 = vld [vmem:[%s5 + $0x180] sm:$0xff]
    %v219 = vld [vmem:[%s5 + $0x188] sm:$0xff]
    %v220 = vld [vmem:[%s5 + $0x190] sm:$0xff]
    %v221 = vld [vmem:[%s5 + $0x198] sm:$0xff]
    %v222 = vld [vmem:[%s5 + $0x1a0] sm:$0xff]
    %v223 = vld [vmem:[%s5 + $0x1a8] sm:$0xff]
    %v224 = vld [vmem:[%s5 + $0x1b0] sm:$0xff]
    %v225 = vld [vmem:[%s5 + $0x1b8] sm:$0xff]
    %v226 = vld [vmem:[%s5 + $0x1c0] sm:$0xff]
    %v227 = vld [vmem:[%s5 + $0x1c8] sm:$0xff]
    %v228 = vld [vmem:[%s5 + $0x1d0] sm:$0xff]
    %v229 = vld [vmem:[%s5 + $0x1d8] sm:$0xff]
    %v230 = vld [vmem:[%s5 + $0x1e0] sm:$0xff]
    %v231 = vld [vmem:[%s5 + $0x1e8] sm:$0xff]
    %v232 = vld [vmem:[%s5 + $0x1f0] sm:$0xff]
    %v233 = vld [vmem:[%s5 + $0x1f8] sm:$0xff]
    %v234 = vld [vmem:[%s6] sm:$0xff]
    %v235 = vld [vmem:[%s6 + $0x8] sm:$0xff]
    %v238 = vperm.slane %v234, 0
    %v239 = vperm.slane %v234, 1
    %v240 = vperm.slane %v234, 2
    %v241 = vperm.slane %v234, 3
    %v242 = vperm.slane %v234, 4
    %v243 = vperm.slane %v234, 5
    %v244 = vperm.slane %v234, 6
    %v245 = vperm.slane %v234, 7
    %v246 = vperm.slane %v235, 0
    %v247 = vperm.slane %v235, 1
    %v248 = vperm.slane %v235, 2
    %v249 = vperm.slane %v235, 3
    %v250 = vperm.slane %v235, 4
    %v251 = vperm.slane %v235, 5
    %v252 = vperm.slane %v235, 6
    %v253 = vperm.slane %v235, 7
    %v334 = vunpack.c.l.b16 %v170
    %v335 = vunpack.c.h.b16 %v170
    %v336 = vunpack.c.l.b16 %v171
    %v337 = vunpack.c.h.b16 %v171
    %v338 = vunpack.c.l.b16 %v172
    %v339 = vunpack.c.h.b16 %v172
    %v340 = vunpack.c.l.b16 %v173
    %v341 = vunpack.c.h.b16 %v173
    %v342 = vunpack.c.l.b16 %v174
    %v343 = vunpack.c.h.b16 %v174
    %v344 = vunpack.c.l.b16 %v175
    %v345 = vunpack.c.h.b16 %v175
    %v346 = vunpack.c.l.b16 %v176
    %v347 = vunpack.c.h.b16 %v176
    %v348 = vunpack.c.l.b16 %v177
    %v349 = vunpack.c.h.b16 %v177
    %v350 = vunpack.c.l.b16 %v178
    %v351 = vunpack.c.h.b16 %v178
    %v352 = vunpack.c.l.b16 %v179
    %v353 = vunpack.c.h.b16 %v179
    %v354 = vunpack.c.l.b16 %v180
    %v355 = vunpack.c.h.b16 %v180
    %v356 = vunpack.c.l.b16 %v181
    %v357 = vunpack.c.h.b16 %v181
    %v358 = vunpack.c.l.b16 %v182
    %v359 = vunpack.c.h.b16 %v182
    %v360 = vunpack.c.l.b16 %v183
    %v361 = vunpack.c.h.b16 %v183
    %v362 = vunpack.c.l.b16 %v184
    %v363 = vunpack.c.h.b16 %v184
    %v364 = vunpack.c.l.b16 %v185
    %v365 = vunpack.c.h.b16 %v185
    %v366 = vunpack.c.l.b16 %v186
    %v367 = vunpack.c.h.b16 %v186
    %v368 = vunpack.c.l.b16 %v187
    %v369 = vunpack.c.h.b16 %v187
    %v370 = vunpack.c.l.b16 %v188
    %v371 = vunpack.c.h.b16 %v188
    %v372 = vunpack.c.l.b16 %v189
    %v373 = vunpack.c.h.b16 %v189
    %v374 = vunpack.c.l.b16 %v190
    %v375 = vunpack.c.h.b16 %v190
    %v376 = vunpack.c.l.b16 %v191
    %v377 = vunpack.c.h.b16 %v191
    %v378 = vunpack.c.l.b16 %v192
    %v379 = vunpack.c.h.b16 %v192
    %v380 = vunpack.c.l.b16 %v193
    %v381 = vunpack.c.h.b16 %v193
    %v382 = vunpack.c.l.b16 %v194
    %v383 = vunpack.c.h.b16 %v194
    %v384 = vunpack.c.l.b16 %v195
    %v385 = vunpack.c.h.b16 %v195
    %v386 = vunpack.c.l.b16 %v196
    %v387 = vunpack.c.h.b16 %v196
    %v388 = vunpack.c.l.b16 %v197
    %v389 = vunpack.c.h.b16 %v197
    %v390 = vunpack.c.l.b16 %v198
    %v391 = vunpack.c.h.b16 %v198
    %v392 = vunpack.c.l.b16 %v199
    %v393 = vunpack.c.h.b16 %v199
    %v394 = vunpack.c.l.b16 %v200
    %v395 = vunpack.c.h.b16 %v200
    %v396 = vunpack.c.l.b16 %v201
    %v397 = vunpack.c.h.b16 %v201
    %v398 = vunpack.c.l.b16 %v202
    %v399 = vunpack.c.h.b16 %v202
    %v400 = vunpack.c.l.b16 %v203
    %v401 = vunpack.c.h.b16 %v203
    %v402 = vunpack.c.l.b16 %v204
    %v403 = vunpack.c.h.b16 %v204
    %v404 = vunpack.c.l.b16 %v205
    %v405 = vunpack.c.h.b16 %v205
    %v406 = vunpack.c.l.b16 %v206
    %v407 = vunpack.c.h.b16 %v206
    %v408 = vunpack.c.l.b16 %v207
    %v409 = vunpack.c.h.b16 %v207
    %v410 = vunpack.c.l.b16 %v208
    %v411 = vunpack.c.h.b16 %v208
    %v412 = vunpack.c.l.b16 %v209
    %v413 = vunpack.c.h.b16 %v209
    %v414 = vunpack.c.l.b16 %v210
    %v415 = vunpack.c.h.b16 %v210
    %v416 = vunpack.c.l.b16 %v211
    %v417 = vunpack.c.h.b16 %v211
    %v418 = vunpack.c.l.b16 %v212
    %v419 = vunpack.c.h.b16 %v212
    %v420 = vunpack.c.l.b16 %v213
    %v421 = vunpack.c.h.b16 %v213
    %v422 = vunpack.c.l.b16 %v214
    %v423 = vunpack.c.h.b16 %v214
    %v424 = vunpack.c.l.b16 %v215
    %v425 = vunpack.c.h.b16 %v215
    %v426 = vunpack.c.l.b16 %v216
    %v427 = vunpack.c.h.b16 %v216
    %v428 = vunpack.c.l.b16 %v217
    %v429 = vunpack.c.h.b16 %v217
    %v430 = vunpack.c.l.b16 %v218
    %v431 = vunpack.c.h.b16 %v218
    %v432 = vunpack.c.l.b16 %v219
    %v433 = vunpack.c.h.b16 %v219
    %v434 = vunpack.c.l.b16 %v220
    %v435 = vunpack.c.h.b16 %v220
    %v436 = vunpack.c.l.b16 %v221
    %v437 = vunpack.c.h.b16 %v221
    %v438 = vunpack.c.l.b16 %v222
    %v439 = vunpack.c.h.b16 %v222
    %v440 = vunpack.c.l.b16 %v223
    %v441 = vunpack.c.h.b16 %v223
    %v442 = vunpack.c.l.b16 %v224
    %v443 = vunpack.c.h.b16 %v224
    %v444 = vunpack.c.l.b16 %v225
    %v445 = vunpack.c.h.b16 %v225
    %v446 = vunpack.c.l.b16 %v226
    %v447 = vunpack.c.h.b16 %v226
    %v448 = vunpack.c.l.b16 %v227
    %v449 = vunpack.c.h.b16 %v227
    %v450 = vunpack.c.l.b16 %v228
    %v451 = vunpack.c.h.b16 %v228
    %v452 = vunpack.c.l.b16 %v229
    %v453 = vunpack.c.h.b16 %v229
    %v454 = vunpack.c.l.b16 %v230
    %v455 = vunpack.c.h.b16 %v230
    %v456 = vunpack.c.l.b16 %v231
    %v457 = vunpack.c.h.b16 %v231
    %v458 = vunpack.c.l.b16 %v232
    %v459 = vunpack.c.h.b16 %v232
    %v460 = vunpack.c.l.b16 %v233
    %v461 = vunpack.c.h.b16 %v233
    %v462 = vpack.c.b16 %v350, %v334
    %v463 = vpack.c.b16 %v351, %v335
    %v464 = vpack.c.b16 %v352, %v336
    %v465 = vpack.c.b16 %v353, %v337
    %v466 = vpack.c.b16 %v354, %v338
    %v467 = vpack.c.b16 %v355, %v339
    %v468 = vpack.c.b16 %v356, %v340
    %v469 = vpack.c.b16 %v357, %v341
    %v470 = vpack.c.b16 %v358, %v342
    %v471 = vpack.c.b16 %v359, %v343
    %v472 = vpack.c.b16 %v360, %v344
    %v473 = vpack.c.b16 %v361, %v345
    %v474 = vpack.c.b16 %v362, %v346
    %v475 = vpack.c.b16 %v363, %v347
    %v476 = vpack.c.b16 %v364, %v348
    %v477 = vpack.c.b16 %v365, %v349
    %v478 = vpack.c.b16 %v382, %v366
    %v479 = vpack.c.b16 %v383, %v367
    %v480 = vpack.c.b16 %v384, %v368
    %v481 = vpack.c.b16 %v385, %v369
    %v482 = vpack.c.b16 %v386, %v370
    %v483 = vpack.c.b16 %v387, %v371
    %v484 = vpack.c.b16 %v388, %v372
    %v485 = vpack.c.b16 %v389, %v373
    %v486 = vpack.c.b16 %v390, %v374
    %v487 = vpack.c.b16 %v391, %v375
    %v488 = vpack.c.b16 %v392, %v376
    %v489 = vpack.c.b16 %v393, %v377
    %v490 = vpack.c.b16 %v394, %v378
    %v491 = vpack.c.b16 %v395, %v379
    %v492 = vpack.c.b16 %v396, %v380
    %v493 = vpack.c.b16 %v397, %v381
    %v494 = vpack.c.b16 %v414, %v398
    %v495 = vpack.c.b16 %v415, %v399
    %v496 = vpack.c.b16 %v416, %v400
    %v497 = vpack.c.b16 %v417, %v401
    %v498 = vpack.c.b16 %v418, %v402
    %v499 = vpack.c.b16 %v419, %v403
    %v500 = vpack.c.b16 %v420, %v404
    %v501 = vpack.c.b16 %v421, %v405
    %v502 = vpack.c.b16 %v422, %v406
    %v503 = vpack.c.b16 %v423, %v407
    %v504 = vpack.c.b16 %v424, %v408
    %v505 = vpack.c.b16 %v425, %v409
    %v506 = vpack.c.b16 %v426, %v410
    %v507 = vpack.c.b16 %v427, %v411
    %v508 = vpack.c.b16 %v428, %v412
    %v509 = vpack.c.b16 %v429, %v413
    %v510 = vpack.c.b16 %v446, %v430
    %v511 = vpack.c.b16 %v447, %v431
    %v512 = vpack.c.b16 %v448, %v432
    %v513 = vpack.c.b16 %v449, %v433
    %v514 = vpack.c.b16 %v450, %v434
    %v515 = vpack.c.b16 %v451, %v435
    %v516 = vpack.c.b16 %v452, %v436
    %v517 = vpack.c.b16 %v453, %v437
    %v518 = vpack.c.b16 %v454, %v438
    %v519 = vpack.c.b16 %v455, %v439
    %v520 = vpack.c.b16 %v456, %v440
    %v521 = vpack.c.b16 %v457, %v441
    %v522 = vpack.c.b16 %v458, %v442
    %v523 = vpack.c.b16 %v459, %v443
    %v524 = vpack.c.b16 %v460, %v444
    %v525 = vpack.c.b16 %v461, %v445
    %v591 = vsel %vm104, %v169, 0
    %593 = vmatpush.bf16.msra.mxu0 0
    %594 = vmatpush.bf16.msra.mxu0 0
    %595 = vmatpush.bf16.msra.mxu0 0
    %596 = vmatpush.bf16.msra.mxu0 0
    %597 = vmatpush.bf16.msra.mxu0 %v510
    %598 = vmatpush.bf16.msra.mxu0 %v494
    %599 = vmatpush.bf16.msra.mxu0 %v478
    %600 = vmatpush.bf16.msra.mxu0 %v462
    %601 = vmatmul.bf16.gmra.mxu0 %v591
    %v602 = vpop.f32.mrf.mxu0
    %v603 = vadd.f32 %v238, %v602
    %v604 = vpop.f32.mrf.mxu0
    %605 = vdwg.mxu0
    %606 = vmatpush.bf16.msra.mxu0 0
    %607 = vmatpush.bf16.msra.mxu0 0
    %608 = vmatpush.bf16.msra.mxu0 0
    %609 = vmatpush.bf16.msra.mxu0 0
    %610 = vmatpush.bf16.msra.mxu0 %v511
    %611 = vmatpush.bf16.msra.mxu0 %v495
    %612 = vmatpush.bf16.msra.mxu0 %v479
    %613 = vmatpush.bf16.msra.mxu0 %v463
    %614 = vmatmul.bf16.gmra.mxu0 %v591
    %v615 = vpop.f32.mrf.mxu0
    %v616 = vadd.f32 %v239, %v615
    %v617 = vpop.f32.mrf.mxu0
    %618 = vdwg.mxu0
    %619 = vmatpush.bf16.msra.mxu0 0
    %620 = vmatpush.bf16.msra.mxu0 0
    %621 = vmatpush.bf16.msra.mxu0 0
    %622 = vmatpush.bf16.msra.mxu0 0
    %623 = vmatpush.bf16.msra.mxu0 %v512
    %624 = vmatpush.bf16.msra.mxu0 %v496
    %625 = vmatpush.bf16.msra.mxu0 %v480
    %626 = vmatpush.bf16.msra.mxu0 %v464
    %627 = vmatmul.bf16.gmra.mxu0 %v591
    %v628 = vpop.f32.mrf.mxu0
    %v629 = vadd.f32 %v240, %v628
    %v630 = vpop.f32.mrf.mxu0
    %631 = vdwg.mxu0
    %632 = vmatpush.bf16.msra.mxu0 0
    %633 = vmatpush.bf16.msra.mxu0 0
    %634 = vmatpush.bf16.msra.mxu0 0
    %635 = vmatpush.bf16.msra.mxu0 0
    %636 = vmatpush.bf16.msra.mxu0 %v513
    %637 = vmatpush.bf16.msra.mxu0 %v497
    %638 = vmatpush.bf16.msra.mxu0 %v481
    %639 = vmatpush.bf16.msra.mxu0 %v465
    %640 = vmatmul.bf16.gmra.mxu0 %v591
    %v641 = vpop.f32.mrf.mxu0
    %v642 = vadd.f32 %v241, %v641
    %v643 = vpop.f32.mrf.mxu0
    %644 = vdwg.mxu0
    %645 = vmatpush.bf16.msra.mxu0 0
    %646 = vmatpush.bf16.msra.mxu0 0
    %647 = vmatpush.bf16.msra.mxu0 0
    %648 = vmatpush.bf16.msra.mxu0 0
    %649 = vmatpush.bf16.msra.mxu0 %v514
    %650 = vmatpush.bf16.msra.mxu0 %v498
    %651 = vmatpush.bf16.msra.mxu0 %v482
    %652 = vmatpush.bf16.msra.mxu0 %v466
    %653 = vmatmul.bf16.gmra.mxu0 %v591
    %v654 = vpop.f32.mrf.mxu0
    %v655 = vadd.f32 %v242, %v654
    %v656 = vpop.f32.mrf.mxu0
    %657 = vdwg.mxu0
    %658 = vmatpush.bf16.msra.mxu0 0
    %659 = vmatpush.bf16.msra.mxu0 0
    %660 = vmatpush.bf16.msra.mxu0 0
    %661 = vmatpush.bf16.msra.mxu0 0
    %662 = vmatpush.bf16.msra.mxu0 %v515
    %663 = vmatpush.bf16.msra.mxu0 %v499
    %664 = vmatpush.bf16.msra.mxu0 %v483
    %665 = vmatpush.bf16.msra.mxu0 %v467
    %666 = vmatmul.bf16.gmra.mxu0 %v591
    %v667 = vpop.f32.mrf.mxu0
    %v668 = vadd.f32 %v243, %v667
    %v669 = vpop.f32.mrf.mxu0
    %670 = vdwg.mxu0
    %671 = vmatpush.bf16.msra.mxu0 0
    %672 = vmatpush.bf16.msra.mxu0 0
    %673 = vmatpush.bf16.msra.mxu0 0
    %674 = vmatpush.bf16.msra.mxu0 0
    %675 = vmatpush.bf16.msra.mxu0 %v516
    %676 = vmatpush.bf16.msra.mxu0 %v500
    %677 = vmatpush.bf16.msra.mxu0 %v484
    %678 = vmatpush.bf16.msra.mxu0 %v468
    %679 = vmatmul.bf16.gmra.mxu0 %v591
    %v680 = vpop.f32.mrf.mxu0
    %v681 = vadd.f32 %v244, %v680
    %v682 = vpop.f32.mrf.mxu0
    %683 = vdwg.mxu0
    %684 = vmatpush.bf16.msra.mxu0 0
    %685 = vmatpush.bf16.msra.mxu0 0
    %686 = vmatpush.bf16.msra.mxu0 0
    %687 = vmatpush.bf16.msra.mxu0 0
    %688 = vmatpush.bf16.msra.mxu0 %v517
    %689 = vmatpush.bf16.msra.mxu0 %v501
    %690 = vmatpush.bf16.msra.mxu0 %v485
    %691 = vmatpush.bf16.msra.mxu0 %v469
    %692 = vmatmul.bf16.gmra.mxu0 %v591
    %v693 = vpop.f32.mrf.mxu0
    %v694 = vadd.f32 %v245, %v693
    %v695 = vpop.f32.mrf.mxu0
    %696 = vdwg.mxu0
    %697 = vmatpush.bf16.msra.mxu0 0
    %698 = vmatpush.bf16.msra.mxu0 0
    %699 = vmatpush.bf16.msra.mxu0 0
    %700 = vmatpush.bf16.msra.mxu0 0
    %701 = vmatpush.bf16.msra.mxu0 %v518
    %702 = vmatpush.bf16.msra.mxu0 %v502
    %703 = vmatpush.bf16.msra.mxu0 %v486
    %704 = vmatpush.bf16.msra.mxu0 %v470
    %705 = vmatmul.bf16.gmra.mxu0 %v591
    %v706 = vpop.f32.mrf.mxu0
    %v707 = vadd.f32 %v246, %v706
    %v708 = vpop.f32.mrf.mxu0
    %709 = vdwg.mxu0
    %710 = vmatpush.bf16.msra.mxu0 0
    %711 = vmatpush.bf16.msra.mxu0 0
    %712 = vmatpush.bf16.msra.mxu0 0
    %713 = vmatpush.bf16.msra.mxu0 0
    %714 = vmatpush.bf16.msra.mxu0 %v519
    %715 = vmatpush.bf16.msra.mxu0 %v503
    %716 = vmatpush.bf16.msra.mxu0 %v487
    %717 = vmatpush.bf16.msra.mxu0 %v471
    %718 = vmatmul.bf16.gmra.mxu0 %v591
    %v719 = vpop.f32.mrf.mxu0
    %v720 = vadd.f32 %v247, %v719
    %v721 = vpop.f32.mrf.mxu0
    %722 = vdwg.mxu0
    %723 = vmatpush.bf16.msra.mxu0 0
    %724 = vmatpush.bf16.msra.mxu0 0
    %725 = vmatpush.bf16.msra.mxu0 0
    %726 = vmatpush.bf16.msra.mxu0 0
    %727 = vmatpush.bf16.msra.mxu0 %v520
    %728 = vmatpush.bf16.msra.mxu0 %v504
    %729 = vmatpush.bf16.msra.mxu0 %v488
    %730 = vmatpush.bf16.msra.mxu0 %v472
    %731 = vmatmul.bf16.gmra.mxu0 %v591
    %v732 = vpop.f32.mrf.mxu0
    %v733 = vadd.f32 %v248, %v732
    %v734 = vpop.f32.mrf.mxu0
    %735 = vdwg.mxu0
    %736 = vmatpush.bf16.msra.mxu0 0
    %737 = vmatpush.bf16.msra.mxu0 0
    %738 = vmatpush.bf16.msra.mxu0 0
    %739 = vmatpush.bf16.msra.mxu0 0
    %740 = vmatpush.bf16.msra.mxu0 %v521
    %741 = vmatpush.bf16.msra.mxu0 %v505
    %742 = vmatpush.bf16.msra.mxu0 %v489
    %743 = vmatpush.bf16.msra.mxu0 %v473
    %744 = vmatmul.bf16.gmra.mxu0 %v591
    %v745 = vpop.f32.mrf.mxu0
    %v746 = vadd.f32 %v249, %v745
    %v747 = vpop.f32.mrf.mxu0
    %748 = vdwg.mxu0
    %749 = vmatpush.bf16.msra.mxu0 0
    %750 = vmatpush.bf16.msra.mxu0 0
    %751 = vmatpush.bf16.msra.mxu0 0
    %752 = vmatpush.bf16.msra.mxu0 0
    %753 = vmatpush.bf16.msra.mxu0 %v522
    %754 = vmatpush.bf16.msra.mxu0 %v506
    %755 = vmatpush.bf16.msra.mxu0 %v490
    %756 = vmatpush.bf16.msra.mxu0 %v474
    %757 = vmatmul.bf16.gmra.mxu0 %v591
    %v758 = vpop.f32.mrf.mxu0
    %v759 = vadd.f32 %v250, %v758
    %v760 = vpop.f32.mrf.mxu0
    %761 = vdwg.mxu0
    %762 = vmatpush.bf16.msra.mxu0 0
    %763 = vmatpush.bf16.msra.mxu0 0
    %764 = vmatpush.bf16.msra.mxu0 0
    %765 = vmatpush.bf16.msra.mxu0 0
    %766 = vmatpush.bf16.msra.mxu0 %v523
    %767 = vmatpush.bf16.msra.mxu0 %v507
    %768 = vmatpush.bf16.msra.mxu0 %v491
    %769 = vmatpush.bf16.msra.mxu0 %v475
    %770 = vmatmul.bf16.gmra.mxu0 %v591
    %v771 = vpop.f32.mrf.mxu0
    %v772 = vadd.f32 %v251, %v771
    %v773 = vpop.f32.mrf.mxu0
    %774 = vdwg.mxu0
    %775 = vmatpush.bf16.msra.mxu0 0
    %776 = vmatpush.bf16.msra.mxu0 0
    %777 = vmatpush.bf16.msra.mxu0 0
    %778 = vmatpush.bf16.msra.mxu0 0
    %779 = vmatpush.bf16.msra.mxu0 %v524
    %780 = vmatpush.bf16.msra.mxu0 %v508
    %781 = vmatpush.bf16.msra.mxu0 %v492
    %782 = vmatpush.bf16.msra.mxu0 %v476
    %783 = vmatmul.bf16.gmra.mxu0 %v591
    %v784 = vpop.f32.mrf.mxu0
    %v785 = vadd.f32 %v252, %v784
    %v786 = vpop.f32.mrf.mxu0
    %787 = vdwg.mxu0
    %788 = vmatpush.bf16.msra.mxu0 0
    %789 = vmatpush.bf16.msra.mxu0 0
    %790 = vmatpush.bf16.msra.mxu0 0
    %791 = vmatpush.bf16.msra.mxu0 0
    %792 = vmatpush.bf16.msra.mxu0 %v525
    %793 = vmatpush.bf16.msra.mxu0 %v509
    %794 = vmatpush.bf16.msra.mxu0 %v493
    %795 = vmatpush.bf16.msra.mxu0 %v477
    %796 = vmatmul.bf16.gmra.mxu0 %v591
    %v797 = vpop.f32.mrf.mxu0
    %v798 = vadd.f32 %v253, %v797
    %v799 = vpop.f32.mrf.mxu0
    %800 = vdwg.mxu0
    %v801 = vmax.f32 %v603, 0.0
    %v802 = vmax.f32 %v616, 0.0
    %v803 = vmax.f32 %v629, 0.0
    %v804 = vmax.f32 %v642, 0.0
    %v805 = vmax.f32 %v655, 0.0
    %v806 = vmax.f32 %v668, 0.0
    %v807 = vmax.f32 %v681, 0.0
    %v808 = vmax.f32 %v694, 0.0
    %v809 = vmax.f32 %v707, 0.0
    %v810 = vmax.f32 %v720, 0.0
    %v811 = vmax.f32 %v733, 0.0
    %v812 = vmax.f32 %v746, 0.0
    %v813 = vmax.f32 %v759, 0.0
    %v814 = vmax.f32 %v772, 0.0
    %v815 = vmax.f32 %v785, 0.0
    %v816 = vmax.f32 %v798, 0.0
    %v817 = vpack.c.bf16 %v801, %v801
    %v818 = vpack.c.bf16 %v802, %v802
    %v819 = vpack.c.bf16 %v803, %v803
    %v820 = vpack.c.bf16 %v804, %v804
    %v821 = vpack.c.bf16 %v805, %v805
    %v822 = vpack.c.bf16 %v806, %v806
    %v823 = vpack.c.bf16 %v807, %v807
    %v824 = vpack.c.bf16 %v808, %v808
    %v825 = vpack.c.bf16 %v809, %v809
    %v826 = vpack.c.bf16 %v810, %v810
    %v827 = vpack.c.bf16 %v811, %v811
    %v828 = vpack.c.bf16 %v812, %v812
    %v829 = vpack.c.bf16 %v813, %v813
    %v830 = vpack.c.bf16 %v814, %v814
    %v831 = vpack.c.bf16 %v815, %v815
    %v832 = vpack.c.bf16 %v816, %v816
    %v833 = vld [vmem:[%s7] sm:$0xf]
    %v834 = vld [vmem:[%s7 + $0x4] sm:$0xf]
    %v835 = vld [vmem:[%s7 + $0x8] sm:$0xf]
    %v836 = vld [vmem:[%s7 + $0xc] sm:$0xf]
    %v837 = vld [vmem:[%s7 + $0x10] sm:$0xf]
    %v838 = vld [vmem:[%s7 + $0x14] sm:$0xf]
    %v839 = vld [vmem:[%s7 + $0x18] sm:$0xf]
    %v840 = vld [vmem:[%s7 + $0x1c] sm:$0xf]
    %v841 = vld [vmem:[%s7 + $0x20] sm:$0xf]
    %v842 = vld [vmem:[%s7 + $0x24] sm:$0xf]
    %v843 = vld [vmem:[%s7 + $0x28] sm:$0xf]
    %v844 = vld [vmem:[%s7 + $0x2c] sm:$0xf]
    %v845 = vld [vmem:[%s7 + $0x30] sm:$0xf]
    %v846 = vld [vmem:[%s7 + $0x34] sm:$0xf]
    %v847 = vld [vmem:[%s7 + $0x38] sm:$0xf]
    %v848 = vld [vmem:[%s7 + $0x3c] sm:$0xf]
    %v849 = vld [vmem:[%s7 + $0x40] sm:$0xf]
    %v850 = vld [vmem:[%s7 + $0x44] sm:$0xf]
    %v851 = vld [vmem:[%s7 + $0x48] sm:$0xf]
    %v852 = vld [vmem:[%s7 + $0x4c] sm:$0xf]
    %v853 = vld [vmem:[%s7 + $0x50] sm:$0xf]
    %v854 = vld [vmem:[%s7 + $0x54] sm:$0xf]
    %v855 = vld [vmem:[%s7 + $0x58] sm:$0xf]
    %v856 = vld [vmem:[%s7 + $0x5c] sm:$0xf]
    %v857 = vld [vmem:[%s7 + $0x60] sm:$0xf]
    %v858 = vld [vmem:[%s7 + $0x64] sm:$0xf]
    %v859 = vld [vmem:[%s7 + $0x68] sm:$0xf]
    %v860 = vld [vmem:[%s7 + $0x6c] sm:$0xf]
    %v861 = vld [vmem:[%s7 + $0x70] sm:$0xf]
    %v862 = vld [vmem:[%s7 + $0x74] sm:$0xf]
    %v863 = vld [vmem:[%s7 + $0x78] sm:$0xf]
    %v864 = vld [vmem:[%s7 + $0x7c] sm:$0xf]
    %v865 = vld [vmem:[%s7 + $0x80] sm:$0xf]
    %v866 = vld [vmem:[%s7 + $0x84] sm:$0xf]
    %v867 = vld [vmem:[%s7 + $0x88] sm:$0xf]
    %v868 = vld [vmem:[%s7 + $0x8c] sm:$0xf]
    %v869 = vld [vmem:[%s7 + $0x90] sm:$0xf]
    %v870 = vld [vmem:[%s7 + $0x94] sm:$0xf]
    %v871 = vld [vmem:[%s7 + $0x98] sm:$0xf]
    %v872 = vld [vmem:[%s7 + $0x9c] sm:$0xf]
    %v873 = vld [vmem:[%s7 + $0xa0] sm:$0xf]
    %v874 = vld [vmem:[%s7 + $0xa4] sm:$0xf]
    %v875 = vld [vmem:[%s7 + $0xa8] sm:$0xf]
    %v876 = vld [vmem:[%s7 + $0xac] sm:$0xf]
    %v877 = vld [vmem:[%s7 + $0xb0] sm:$0xf]
    %v878 = vld [vmem:[%s7 + $0xb4] sm:$0xf]
    %v879 = vld [vmem:[%s7 + $0xb8] sm:$0xf]
    %v880 = vld [vmem:[%s7 + $0xbc] sm:$0xf]
    %v881 = vld [vmem:[%s7 + $0xc0] sm:$0xf]
    %v882 = vld [vmem:[%s7 + $0xc4] sm:$0xf]
    %v883 = vld [vmem:[%s7 + $0xc8] sm:$0xf]
    %v884 = vld [vmem:[%s7 + $0xcc] sm:$0xf]
    %v885 = vld [vmem:[%s7 + $0xd0] sm:$0xf]
    %v886 = vld [vmem:[%s7 + $0xd4] sm:$0xf]
    %v887 = vld [vmem:[%s7 + $0xd8] sm:$0xf]
    %v888 = vld [vmem:[%s7 + $0xdc] sm:$0xf]
    %v889 = vld [vmem:[%s7 + $0xe0] sm:$0xf]
    %v890 = vld [vmem:[%s7 + $0xe4] sm:$0xf]
    %v891 = vld [vmem:[%s7 + $0xe8] sm:$0xf]
    %v892 = vld [vmem:[%s7 + $0xec] sm:$0xf]
    %v893 = vld [vmem:[%s7 + $0xf0] sm:$0xf]
    %v894 = vld [vmem:[%s7 + $0xf4] sm:$0xf]
    %v895 = vld [vmem:[%s7 + $0xf8] sm:$0xf]
    %v896 = vld [vmem:[%s7 + $0xfc] sm:$0xf]
    %v897 = vld [vmem:[%s7 + $0x100] sm:$0xf]
    %v898 = vld [vmem:[%s7 + $0x104] sm:$0xf]
    %v899 = vld [vmem:[%s7 + $0x108] sm:$0xf]
    %v900 = vld [vmem:[%s7 + $0x10c] sm:$0xf]
    %v901 = vld [vmem:[%s7 + $0x110] sm:$0xf]
    %v902 = vld [vmem:[%s7 + $0x114] sm:$0xf]
    %v903 = vld [vmem:[%s7 + $0x118] sm:$0xf]
    %v904 = vld [vmem:[%s7 + $0x11c] sm:$0xf]
    %v905 = vld [vmem:[%s7 + $0x120] sm:$0xf]
    %v906 = vld [vmem:[%s7 + $0x124] sm:$0xf]
    %v907 = vld [vmem:[%s7 + $0x128] sm:$0xf]
    %v908 = vld [vmem:[%s7 + $0x12c] sm:$0xf]
    %v909 = vld [vmem:[%s7 + $0x130] sm:$0xf]
    %v910 = vld [vmem:[%s7 + $0x134] sm:$0xf]
    %v911 = vld [vmem:[%s7 + $0x138] sm:$0xf]
    %v912 = vld [vmem:[%s7 + $0x13c] sm:$0xf]
    %v913 = vld [vmem:[%s7 + $0x140] sm:$0xf]
    %v914 = vld [vmem:[%s7 + $0x144] sm:$0xf]
    %v915 = vld [vmem:[%s7 + $0x148] sm:$0xf]
    %v916 = vld [vmem:[%s7 + $0x14c] sm:$0xf]
    %v917 = vld [vmem:[%s7 + $0x150] sm:$0xf]
    %v918 = vld [vmem:[%s7 + $0x154] sm:$0xf]
    %v919 = vld [vmem:[%s7 + $0x158] sm:$0xf]
    %v920 = vld [vmem:[%s7 + $0x15c] sm:$0xf]
    %v921 = vld [vmem:[%s7 + $0x160] sm:$0xf]
    %v922 = vld [vmem:[%s7 + $0x164] sm:$0xf]
    %v923 = vld [vmem:[%s7 + $0x168] sm:$0xf]
    %v924 = vld [vmem:[%s7 + $0x16c] sm:$0xf]
    %v925 = vld [vmem:[%s7 + $0x170] sm:$0xf]
    %v926 = vld [vmem:[%s7 + $0x174] sm:$0xf]
    %v927 = vld [vmem:[%s7 + $0x178] sm:$0xf]
    %v928 = vld [vmem:[%s7 + $0x17c] sm:$0xf]
    %v929 = vld [vmem:[%s7 + $0x180] sm:$0xf]
    %v930 = vld [vmem:[%s7 + $0x184] sm:$0xf]
    %v931 = vld [vmem:[%s7 + $0x188] sm:$0xf]
    %v932 = vld [vmem:[%s7 + $0x18c] sm:$0xf]
    %v933 = vld [vmem:[%s7 + $0x190] sm:$0xf]
    %v934 = vld [vmem:[%s7 + $0x194] sm:$0xf]
    %v935 = vld [vmem:[%s7 + $0x198] sm:$0xf]
    %v936 = vld [vmem:[%s7 + $0x19c] sm:$0xf]
    %v937 = vld [vmem:[%s7 + $0x1a0] sm:$0xf]
    %v938 = vld [vmem:[%s7 + $0x1a4] sm:$0xf]
    %v939 = vld [vmem:[%s7 + $0x1a8] sm:$0xf]
    %v940 = vld [vmem:[%s7 + $0x1ac] sm:$0xf]
    %v941 = vld [vmem:[%s7 + $0x1b0] sm:$0xf]
    %v942 = vld [vmem:[%s7 + $0x1b4] sm:$0xf]
    %v943 = vld [vmem:[%s7 + $0x1b8] sm:$0xf]
    %v944 = vld [vmem:[%s7 + $0x1bc] sm:$0xf]
    %v945 = vld [vmem:[%s7 + $0x1c0] sm:$0xf]
    %v946 = vld [vmem:[%s7 + $0x1c4] sm:$0xf]
    %v947 = vld [vmem:[%s7 + $0x1c8] sm:$0xf]
    %v948 = vld [vmem:[%s7 + $0x1cc] sm:$0xf]
    %v949 = vld [vmem:[%s7 + $0x1d0] sm:$0xf]
    %v950 = vld [vmem:[%s7 + $0x1d4] sm:$0xf]
    %v951 = vld [vmem:[%s7 + $0x1d8] sm:$0xf]
    %v952 = vld [vmem:[%s7 + $0x1dc] sm:$0xf]
    %v953 = vld [vmem:[%s7 + $0x1e0] sm:$0xf]
    %v954 = vld [vmem:[%s7 + $0x1e4] sm:$0xf]
    %v955 = vld [vmem:[%s7 + $0x1e8] sm:$0xf]
    %v956 = vld [vmem:[%s7 + $0x1ec] sm:$0xf]
    %v957 = vld [vmem:[%s7 + $0x1f0] sm:$0xf]
    %v958 = vld [vmem:[%s7 + $0x1f4] sm:$0xf]
    %v959 = vld [vmem:[%s7 + $0x1f8] sm:$0xf]
    %v960 = vld [vmem:[%s7 + $0x1fc] sm:$0xf]
    %v961 = vld [vmem:[%s7 + $0x200] sm:$0xf]
    %v962 = vld [vmem:[%s7 + $0x204] sm:$0xf]
    %v963 = vld [vmem:[%s7 + $0x208] sm:$0xf]
    %v964 = vld [vmem:[%s7 + $0x20c] sm:$0xf]
    %v965 = vld [vmem:[%s7 + $0x210] sm:$0xf]
    %v966 = vld [vmem:[%s7 + $0x214] sm:$0xf]
    %v967 = vld [vmem:[%s7 + $0x218] sm:$0xf]
    %v968 = vld [vmem:[%s7 + $0x21c] sm:$0xf]
    %v969 = vld [vmem:[%s7 + $0x220] sm:$0xf]
    %v970 = vld [vmem:[%s7 + $0x224] sm:$0xf]
    %v971 = vld [vmem:[%s7 + $0x228] sm:$0xf]
    %v972 = vld [vmem:[%s7 + $0x22c] sm:$0xf]
    %v973 = vld [vmem:[%s7 + $0x230] sm:$0xf]
    %v974 = vld [vmem:[%s7 + $0x234] sm:$0xf]
    %v975 = vld [vmem:[%s7 + $0x238] sm:$0xf]
    %v976 = vld [vmem:[%s7 + $0x23c] sm:$0xf]
    %v977 = vld [vmem:[%s7 + $0x240] sm:$0xf]
    %v978 = vld [vmem:[%s7 + $0x244] sm:$0xf]
    %v979 = vld [vmem:[%s7 + $0x248] sm:$0xf]
    %v980 = vld [vmem:[%s7 + $0x24c] sm:$0xf]
    %v981 = vld [vmem:[%s7 + $0x250] sm:$0xf]
    %v982 = vld [vmem:[%s7 + $0x254] sm:$0xf]
    %v983 = vld [vmem:[%s7 + $0x258] sm:$0xf]
    %v984 = vld [vmem:[%s7 + $0x25c] sm:$0xf]
    %v985 = vld [vmem:[%s7 + $0x260] sm:$0xf]
    %v986 = vld [vmem:[%s7 + $0x264] sm:$0xf]
    %v987 = vld [vmem:[%s7 + $0x268] sm:$0xf]
    %v988 = vld [vmem:[%s7 + $0x26c] sm:$0xf]
    %v989 = vld [vmem:[%s7 + $0x270] sm:$0xf]
    %v990 = vld [vmem:[%s7 + $0x274] sm:$0xf]
    %v991 = vld [vmem:[%s7 + $0x278] sm:$0xf]
    %v992 = vld [vmem:[%s7 + $0x27c] sm:$0xf]
    %v993 = vld [vmem:[%s7 + $0x280] sm:$0xf]
    %v994 = vld [vmem:[%s7 + $0x284] sm:$0xf]
    %v995 = vld [vmem:[%s7 + $0x288] sm:$0xf]
    %v996 = vld [vmem:[%s7 + $0x28c] sm:$0xf]
    %v997 = vld [vmem:[%s7 + $0x290] sm:$0xf]
    %v998 = vld [vmem:[%s7 + $0x294] sm:$0xf]
    %v999 = vld [vmem:[%s7 + $0x298] sm:$0xf]
    %v1000 = vld [vmem:[%s7 + $0x29c] sm:$0xf]
    %v1001 = vld [vmem:[%s7 + $0x2a0] sm:$0xf]
    %v1002 = vld [vmem:[%s7 + $0x2a4] sm:$0xf]
    %v1003 = vld [vmem:[%s7 + $0x2a8] sm:$0xf]
    %v1004 = vld [vmem:[%s7 + $0x2ac] sm:$0xf]
    %v1005 = vld [vmem:[%s7 + $0x2b0] sm:$0xf]
    %v1006 = vld [vmem:[%s7 + $0x2b4] sm:$0xf]
    %v1007 = vld [vmem:[%s7 + $0x2b8] sm:$0xf]
    %v1008 = vld [vmem:[%s7 + $0x2bc] sm:$0xf]
    %v1009 = vld [vmem:[%s7 + $0x2c0] sm:$0xf]
    %v1010 = vld [vmem:[%s7 + $0x2c4] sm:$0xf]
    %v1011 = vld [vmem:[%s7 + $0x2c8] sm:$0xf]
    %v1012 = vld [vmem:[%s7 + $0x2cc] sm:$0xf]
    %v1013 = vld [vmem:[%s7 + $0x2d0] sm:$0xf]
    %v1014 = vld [vmem:[%s7 + $0x2d4] sm:$0xf]
    %v1015 = vld [vmem:[%s7 + $0x2d8] sm:$0xf]
    %v1016 = vld [vmem:[%s7 + $0x2dc] sm:$0xf]
    %v1017 = vld [vmem:[%s7 + $0x2e0] sm:$0xf]
    %v1018 = vld [vmem:[%s7 + $0x2e4] sm:$0xf]
    %v1019 = vld [vmem:[%s7 + $0x2e8] sm:$0xf]
    %v1020 = vld [vmem:[%s7 + $0x2ec] sm:$0xf]
    %v1021 = vld [vmem:[%s7 + $0x2f0] sm:$0xf]
    %v1022 = vld [vmem:[%s7 + $0x2f4] sm:$0xf]
    %v1023 = vld [vmem:[%s7 + $0x2f8] sm:$0xf]
    %v1024 = vld [vmem:[%s7 + $0x2fc] sm:$0xf]
    %v1025 = vld [vmem:[%s7 + $0x300] sm:$0xf]
    %v1026 = vld [vmem:[%s7 + $0x304] sm:$0xf]
    %v1027 = vld [vmem:[%s7 + $0x308] sm:$0xf]
    %v1028 = vld [vmem:[%s7 + $0x30c] sm:$0xf]
    %v1029 = vld [vmem:[%s7 + $0x310] sm:$0xf]
    %v1030 = vld [vmem:[%s7 + $0x314] sm:$0xf]
    %v1031 = vld [vmem:[%s7 + $0x318] sm:$0xf]
    %v1032 = vld [vmem:[%s7 + $0x31c] sm:$0xf]
    %v1033 = vld [vmem:[%s7 + $0x320] sm:$0xf]
    %v1034 = vld [vmem:[%s7 + $0x324] sm:$0xf]
    %v1035 = vld [vmem:[%s7 + $0x328] sm:$0xf]
    %v1036 = vld [vmem:[%s7 + $0x32c] sm:$0xf]
    %v1037 = vld [vmem:[%s7 + $0x330] sm:$0xf]
    %v1038 = vld [vmem:[%s7 + $0x334] sm:$0xf]
    %v1039 = vld [vmem:[%s7 + $0x338] sm:$0xf]
    %v1040 = vld [vmem:[%s7 + $0x33c] sm:$0xf]
    %v1041 = vld [vmem:[%s7 + $0x340] sm:$0xf]
    %v1042 = vld [vmem:[%s7 + $0x344] sm:$0xf]
    %v1043 = vld [vmem:[%s7 + $0x348] sm:$0xf]
    %v1044 = vld [vmem:[%s7 + $0x34c] sm:$0xf]
    %v1045 = vld [vmem:[%s7 + $0x350] sm:$0xf]
    %v1046 = vld [vmem:[%s7 + $0x354] sm:$0xf]
    %v1047 = vld [vmem:[%s7 + $0x358] sm:$0xf]
    %v1048 = vld [vmem:[%s7 + $0x35c] sm:$0xf]
    %v1049 = vld [vmem:[%s7 + $0x360] sm:$0xf]
    %v1050 = vld [vmem:[%s7 + $0x364] sm:$0xf]
    %v1051 = vld [vmem:[%s7 + $0x368] sm:$0xf]
    %v1052 = vld [vmem:[%s7 + $0x36c] sm:$0xf]
    %v1053 = vld [vmem:[%s7 + $0x370] sm:$0xf]
    %v1054 = vld [vmem:[%s7 + $0x374] sm:$0xf]
    %v1055 = vld [vmem:[%s7 + $0x378] sm:$0xf]
    %v1056 = vld [vmem:[%s7 + $0x37c] sm:$0xf]
    %v1057 = vld [vmem:[%s7 + $0x380] sm:$0xf]
    %v1058 = vld [vmem:[%s7 + $0x384] sm:$0xf]
    %v1059 = vld [vmem:[%s7 + $0x388] sm:$0xf]
    %v1060 = vld [vmem:[%s7 + $0x38c] sm:$0xf]
    %v1061 = vld [vmem:[%s7 + $0x390] sm:$0xf]
    %v1062 = vld [vmem:[%s7 + $0x394] sm:$0xf]
    %v1063 = vld [vmem:[%s7 + $0x398] sm:$0xf]
    %v1064 = vld [vmem:[%s7 + $0x39c] sm:$0xf]
    %v1065 = vld [vmem:[%s7 + $0x3a0] sm:$0xf]
    %v1066 = vld [vmem:[%s7 + $0x3a4] sm:$0xf]
    %v1067 = vld [vmem:[%s7 + $0x3a8] sm:$0xf]
    %v1068 = vld [vmem:[%s7 + $0x3ac] sm:$0xf]
    %v1069 = vld [vmem:[%s7 + $0x3b0] sm:$0xf]
    %v1070 = vld [vmem:[%s7 + $0x3b4] sm:$0xf]
    %v1071 = vld [vmem:[%s7 + $0x3b8] sm:$0xf]
    %v1072 = vld [vmem:[%s7 + $0x3bc] sm:$0xf]
    %v1073 = vld [vmem:[%s7 + $0x3c0] sm:$0xf]
    %v1074 = vld [vmem:[%s7 + $0x3c4] sm:$0xf]
    %v1075 = vld [vmem:[%s7 + $0x3c8] sm:$0xf]
    %v1076 = vld [vmem:[%s7 + $0x3cc] sm:$0xf]
    %v1077 = vld [vmem:[%s7 + $0x3d0] sm:$0xf]
    %v1078 = vld [vmem:[%s7 + $0x3d4] sm:$0xf]
    %v1079 = vld [vmem:[%s7 + $0x3d8] sm:$0xf]
    %v1080 = vld [vmem:[%s7 + $0x3dc] sm:$0xf]
    %v1081 = vld [vmem:[%s7 + $0x3e0] sm:$0xf]
    %v1082 = vld [vmem:[%s7 + $0x3e4] sm:$0xf]
    %v1083 = vld [vmem:[%s7 + $0x3e8] sm:$0xf]
    %v1084 = vld [vmem:[%s7 + $0x3ec] sm:$0xf]
    %v1085 = vld [vmem:[%s7 + $0x3f0] sm:$0xf]
    %v1086 = vld [vmem:[%s7 + $0x3f4] sm:$0xf]
    %v1087 = vld [vmem:[%s7 + $0x3f8] sm:$0xf]
    %v1088 = vld [vmem:[%s7 + $0x3fc] sm:$0xf]
    %v1089 = vld [vmem:[%s8] sm:$0x1]
    %v1091 = vperm.slane %v1089, 0
    %v1349 = vunpack.c.l.b16 %v833
    %v1350 = vunpack.c.l.b16 %v834
    %v1351 = vunpack.c.l.b16 %v835
    %v1352 = vunpack.c.l.b16 %v836
    %v1353 = vunpack.c.l.b16 %v837
    %v1354 = vunpack.c.l.b16 %v838
    %v1355 = vunpack.c.l.b16 %v839
    %v1356 = vunpack.c.l.b16 %v840
    %v1357 = vunpack.c.l.b16 %v841
    %v1358 = vunpack.c.l.b16 %v842
    %v1359 = vunpack.c.l.b16 %v843
    %v1360 = vunpack.c.l.b16 %v844
    %v1361 = vunpack.c.l.b16 %v845
    %v1362 = vunpack.c.l.b16 %v846
    %v1363 = vunpack.c.l.b16 %v847
    %v1364 = vunpack.c.l.b16 %v848
    %v1365 = vunpack.c.l.b16 %v849
    %v1366 = vunpack.c.l.b16 %v850
    %v1367 = vunpack.c.l.b16 %v851
    %v1368 = vunpack.c.l.b16 %v852
    %v1369 = vunpack.c.l.b16 %v853
    %v1370 = vunpack.c.l.b16 %v854
    %v1371 = vunpack.c.l.b16 %v855
    %v1372 = vunpack.c.l.b16 %v856
    %v1373 = vunpack.c.l.b16 %v857
    %v1374 = vunpack.c.l.b16 %v858
    %v1375 = vunpack.c.l.b16 %v859
    %v1376 = vunpack.c.l.b16 %v860
    %v1377 = vunpack.c.l.b16 %v861
    %v1378 = vunpack.c.l.b16 %v862
    %v1379 = vunpack.c.l.b16 %v863
    %v1380 = vunpack.c.l.b16 %v864
    %v1381 = vunpack.c.l.b16 %v865
    %v1382 = vunpack.c.l.b16 %v866
    %v1383 = vunpack.c.l.b16 %v867
    %v1384 = vunpack.c.l.b16 %v868
    %v1385 = vunpack.c.l.b16 %v869
    %v1386 = vunpack.c.l.b16 %v870
    %v1387 = vunpack.c.l.b16 %v871
    %v1388 = vunpack.c.l.b16 %v872
    %v1389 = vunpack.c.l.b16 %v873
    %v1390 = vunpack.c.l.b16 %v874
    %v1391 = vunpack.c.l.b16 %v875
    %v1392 = vunpack.c.l.b16 %v876
    %v1393 = vunpack.c.l.b16 %v877
    %v1394 = vunpack.c.l.b16 %v878
    %v1395 = vunpack.c.l.b16 %v879
    %v1396 = vunpack.c.l.b16 %v880
    %v1397 = vunpack.c.l.b16 %v881
    %v1398 = vunpack.c.l.b16 %v882
    %v1399 = vunpack.c.l.b16 %v883
    %v1400 = vunpack.c.l.b16 %v884
    %v1401 = vunpack.c.l.b16 %v885
    %v1402 = vunpack.c.l.b16 %v886
    %v1403 = vunpack.c.l.b16 %v887
    %v1404 = vunpack.c.l.b16 %v888
    %v1405 = vunpack.c.l.b16 %v889
    %v1406 = vunpack.c.l.b16 %v890
    %v1407 = vunpack.c.l.b16 %v891
    %v1408 = vunpack.c.l.b16 %v892
    %v1409 = vunpack.c.l.b16 %v893
    %v1410 = vunpack.c.l.b16 %v894
    %v1411 = vunpack.c.l.b16 %v895
    %v1412 = vunpack.c.l.b16 %v896
    %v1413 = vunpack.c.l.b16 %v897
    %v1414 = vunpack.c.l.b16 %v898
    %v1415 = vunpack.c.l.b16 %v899
    %v1416 = vunpack.c.l.b16 %v900
    %v1417 = vunpack.c.l.b16 %v901
    %v1418 = vunpack.c.l.b16 %v902
    %v1419 = vunpack.c.l.b16 %v903
    %v1420 = vunpack.c.l.b16 %v904
    %v1421 = vunpack.c.l.b16 %v905
    %v1422 = vunpack.c.l.b16 %v906
    %v1423 = vunpack.c.l.b16 %v907
    %v1424 = vunpack.c.l.b16 %v908
    %v1425 = vunpack.c.l.b16 %v909
    %v1426 = vunpack.c.l.b16 %v910
    %v1427 = vunpack.c.l.b16 %v911
    %v1428 = vunpack.c.l.b16 %v912
    %v1429 = vunpack.c.l.b16 %v913
    %v1430 = vunpack.c.l.b16 %v914
    %v1431 = vunpack.c.l.b16 %v915
    %v1432 = vunpack.c.l.b16 %v916
    %v1433 = vunpack.c.l.b16 %v917
    %v1434 = vunpack.c.l.b16 %v918
    %v1435 = vunpack.c.l.b16 %v919
    %v1436 = vunpack.c.l.b16 %v920
    %v1437 = vunpack.c.l.b16 %v921
    %v1438 = vunpack.c.l.b16 %v922
    %v1439 = vunpack.c.l.b16 %v923
    %v1440 = vunpack.c.l.b16 %v924
    %v1441 = vunpack.c.l.b16 %v925
    %v1442 = vunpack.c.l.b16 %v926
    %v1443 = vunpack.c.l.b16 %v927
    %v1444 = vunpack.c.l.b16 %v928
    %v1445 = vunpack.c.l.b16 %v929
    %v1446 = vunpack.c.l.b16 %v930
    %v1447 = vunpack.c.l.b16 %v931
    %v1448 = vunpack.c.l.b16 %v932
    %v1449 = vunpack.c.l.b16 %v933
    %v1450 = vunpack.c.l.b16 %v934
    %v1451 = vunpack.c.l.b16 %v935
    %v1452 = vunpack.c.l.b16 %v936
    %v1453 = vunpack.c.l.b16 %v937
    %v1454 = vunpack.c.l.b16 %v938
    %v1455 = vunpack.c.l.b16 %v939
    %v1456 = vunpack.c.l.b16 %v940
    %v1457 = vunpack.c.l.b16 %v941
    %v1458 = vunpack.c.l.b16 %v942
    %v1459 = vunpack.c.l.b16 %v943
    %v1460 = vunpack.c.l.b16 %v944
    %v1461 = vunpack.c.l.b16 %v945
    %v1462 = vunpack.c.l.b16 %v946
    %v1463 = vunpack.c.l.b16 %v947
    %v1464 = vunpack.c.l.b16 %v948
    %v1465 = vunpack.c.l.b16 %v949
    %v1466 = vunpack.c.l.b16 %v950
    %v1467 = vunpack.c.l.b16 %v951
    %v1468 = vunpack.c.l.b16 %v952
    %v1469 = vunpack.c.l.b16 %v953
    %v1470 = vunpack.c.l.b16 %v954
    %v1471 = vunpack.c.l.b16 %v955
    %v1472 = vunpack.c.l.b16 %v956
    %v1473 = vunpack.c.l.b16 %v957
    %v1474 = vunpack.c.l.b16 %v958
    %v1475 = vunpack.c.l.b16 %v959
    %v1476 = vunpack.c.l.b16 %v960
    %v1477 = vunpack.c.l.b16 %v961
    %v1478 = vunpack.c.l.b16 %v962
    %v1479 = vunpack.c.l.b16 %v963
    %v1480 = vunpack.c.l.b16 %v964
    %v1481 = vunpack.c.l.b16 %v965
    %v1482 = vunpack.c.l.b16 %v966
    %v1483 = vunpack.c.l.b16 %v967
    %v1484 = vunpack.c.l.b16 %v968
    %v1485 = vunpack.c.l.b16 %v969
    %v1486 = vunpack.c.l.b16 %v970
    %v1487 = vunpack.c.l.b16 %v971
    %v1488 = vunpack.c.l.b16 %v972
    %v1489 = vunpack.c.l.b16 %v973
    %v1490 = vunpack.c.l.b16 %v974
    %v1491 = vunpack.c.l.b16 %v975
    %v1492 = vunpack.c.l.b16 %v976
    %v1493 = vunpack.c.l.b16 %v977
    %v1494 = vunpack.c.l.b16 %v978
    %v1495 = vunpack.c.l.b16 %v979
    %v1496 = vunpack.c.l.b16 %v980
    %v1497 = vunpack.c.l.b16 %v981
    %v1498 = vunpack.c.l.b16 %v982
    %v1499 = vunpack.c.l.b16 %v983
    %v1500 = vunpack.c.l.b16 %v984
    %v1501 = vunpack.c.l.b16 %v985
    %v1502 = vunpack.c.l.b16 %v986
    %v1503 = vunpack.c.l.b16 %v987
    %v1504 = vunpack.c.l.b16 %v988
    %v1505 = vunpack.c.l.b16 %v989
    %v1506 = vunpack.c.l.b16 %v990
    %v1507 = vunpack.c.l.b16 %v991
    %v1508 = vunpack.c.l.b16 %v992
    %v1509 = vunpack.c.l.b16 %v993
    %v1510 = vunpack.c.l.b16 %v994
    %v1511 = vunpack.c.l.b16 %v995
    %v1512 = vunpack.c.l.b16 %v996
    %v1513 = vunpack.c.l.b16 %v997
    %v1514 = vunpack.c.l.b16 %v998
    %v1515 = vunpack.c.l.b16 %v999
    %v1516 = vunpack.c.l.b16 %v1000
    %v1517 = vunpack.c.l.b16 %v1001
    %v1518 = vunpack.c.l.b16 %v1002
    %v1519 = vunpack.c.l.b16 %v1003
    %v1520 = vunpack.c.l.b16 %v1004
    %v1521 = vunpack.c.l.b16 %v1005
    %v1522 = vunpack.c.l.b16 %v1006
    %v1523 = vunpack.c.l.b16 %v1007
    %v1524 = vunpack.c.l.b16 %v1008
    %v1525 = vunpack.c.l.b16 %v1009
    %v1526 = vunpack.c.l.b16 %v1010
    %v1527 = vunpack.c.l.b16 %v1011
    %v1528 = vunpack.c.l.b16 %v1012
    %v1529 = vunpack.c.l.b16 %v1013
    %v1530 = vunpack.c.l.b16 %v1014
    %v1531 = vunpack.c.l.b16 %v1015
    %v1532 = vunpack.c.l.b16 %v1016
    %v1533 = vunpack.c.l.b16 %v1017
    %v1534 = vunpack.c.l.b16 %v1018
    %v1535 = vunpack.c.l.b16 %v1019
    %v1536 = vunpack.c.l.b16 %v1020
    %v1537 = vunpack.c.l.b16 %v1021
    %v1538 = vunpack.c.l.b16 %v1022
    %v1539 = vunpack.c.l.b16 %v1023
    %v1540 = vunpack.c.l.b16 %v1024
    %v1541 = vunpack.c.l.b16 %v1025
    %v1542 = vunpack.c.l.b16 %v1026
    %v1543 = vunpack.c.l.b16 %v1027
    %v1544 = vunpack.c.l.b16 %v1028
    %v1545 = vunpack.c.l.b16 %v1029
    %v1546 = vunpack.c.l.b16 %v1030
    %v1547 = vunpack.c.l.b16 %v1031
    %v1548 = vunpack.c.l.b16 %v1032
    %v1549 = vunpack.c.l.b16 %v1033
    %v1550 = vunpack.c.l.b16 %v1034
    %v1551 = vunpack.c.l.b16 %v1035
    %v1552 = vunpack.c.l.b16 %v1036
    %v1553 = vunpack.c.l.b16 %v1037
    %v1554 = vunpack.c.l.b16 %v1038
    %v1555 = vunpack.c.l.b16 %v1039
    %v1556 = vunpack.c.l.b16 %v1040
    %v1557 = vunpack.c.l.b16 %v1041
    %v1558 = vunpack.c.l.b16 %v1042
    %v1559 = vunpack.c.l.b16 %v1043
    %v1560 = vunpack.c.l.b16 %v1044
    %v1561 = vunpack.c.l.b16 %v1045
    %v1562 = vunpack.c.l.b16 %v1046
    %v1563 = vunpack.c.l.b16 %v1047
    %v1564 = vunpack.c.l.b16 %v1048
    %v1565 = vunpack.c.l.b16 %v1049
    %v1566 = vunpack.c.l.b16 %v1050
    %v1567 = vunpack.c.l.b16 %v1051
    %v1568 = vunpack.c.l.b16 %v1052
    %v1569 = vunpack.c.l.b16 %v1053
    %v1570 = vunpack.c.l.b16 %v1054
    %v1571 = vunpack.c.l.b16 %v1055
    %v1572 = vunpack.c.l.b16 %v1056
    %v1573 = vunpack.c.l.b16 %v1057
    %v1574 = vunpack.c.l.b16 %v1058
    %v1575 = vunpack.c.l.b16 %v1059
    %v1576 = vunpack.c.l.b16 %v1060
    %v1577 = vunpack.c.l.b16 %v1061
    %v1578 = vunpack.c.l.b16 %v1062
    %v1579 = vunpack.c.l.b16 %v1063
    %v1580 = vunpack.c.l.b16 %v1064
    %v1581 = vunpack.c.l.b16 %v1065
    %v1582 = vunpack.c.l.b16 %v1066
    %v1583 = vunpack.c.l.b16 %v1067
    %v1584 = vunpack.c.l.b16 %v1068
    %v1585 = vunpack.c.l.b16 %v1069
    %v1586 = vunpack.c.l.b16 %v1070
    %v1587 = vunpack.c.l.b16 %v1071
    %v1588 = vunpack.c.l.b16 %v1072
    %v1589 = vunpack.c.l.b16 %v1073
    %v1590 = vunpack.c.l.b16 %v1074
    %v1591 = vunpack.c.l.b16 %v1075
    %v1592 = vunpack.c.l.b16 %v1076
    %v1593 = vunpack.c.l.b16 %v1077
    %v1594 = vunpack.c.l.b16 %v1078
    %v1595 = vunpack.c.l.b16 %v1079
    %v1596 = vunpack.c.l.b16 %v1080
    %v1597 = vunpack.c.l.b16 %v1081
    %v1598 = vunpack.c.l.b16 %v1082
    %v1599 = vunpack.c.l.b16 %v1083
    %v1600 = vunpack.c.l.b16 %v1084
    %v1601 = vunpack.c.l.b16 %v1085
    %v1602 = vunpack.c.l.b16 %v1086
    %v1603 = vunpack.c.l.b16 %v1087
    %v1604 = vunpack.c.l.b16 %v1088
    %v1605 = vpack.c.b16 %v1350, %v1349
    %v1606 = vpack.c.b16 %v1352, %v1351
    %v1607 = vpack.c.b16 %v1354, %v1353
    %v1608 = vpack.c.b16 %v1356, %v1355
    %v1609 = vpack.c.b16 %v1358, %v1357
    %v1610 = vpack.c.b16 %v1360, %v1359
    %v1611 = vpack.c.b16 %v1362, %v1361
    %v1612 = vpack.c.b16 %v1364, %v1363
    %v1613 = vpack.c.b16 %v1366, %v1365
    %v1614 = vpack.c.b16 %v1368, %v1367
    %v1615 = vpack.c.b16 %v1370, %v1369
    %v1616 = vpack.c.b16 %v1372, %v1371
    %v1617 = vpack.c.b16 %v1374, %v1373
    %v1618 = vpack.c.b16 %v1376, %v1375
    %v1619 = vpack.c.b16 %v1378, %v1377
    %v1620 = vpack.c.b16 %v1380, %v1379
    %v1621 = vpack.c.b16 %v1382, %v1381
    %v1622 = vpack.c.b16 %v1384, %v1383
    %v1623 = vpack.c.b16 %v1386, %v1385
    %v1624 = vpack.c.b16 %v1388, %v1387
    %v1625 = vpack.c.b16 %v1390, %v1389
    %v1626 = vpack.c.b16 %v1392, %v1391
    %v1627 = vpack.c.b16 %v1394, %v1393
    %v1628 = vpack.c.b16 %v1396, %v1395
    %v1629 = vpack.c.b16 %v1398, %v1397
    %v1630 = vpack.c.b16 %v1400, %v1399
    %v1631 = vpack.c.b16 %v1402, %v1401
    %v1632 = vpack.c.b16 %v1404, %v1403
    %v1633 = vpack.c.b16 %v1406, %v1405
    %v1634 = vpack.c.b16 %v1408, %v1407
    %v1635 = vpack.c.b16 %v1410, %v1409
    %v1636 = vpack.c.b16 %v1412, %v1411
    %v1637 = vpack.c.b16 %v1414, %v1413
    %v1638 = vpack.c.b16 %v1416, %v1415
    %v1639 = vpack.c.b16 %v1418, %v1417
    %v1640 = vpack.c.b16 %v1420, %v1419
    %v1641 = vpack.c.b16 %v1422, %v1421
    %v1642 = vpack.c.b16 %v1424, %v1423
    %v1643 = vpack.c.b16 %v1426, %v1425
    %v1644 = vpack.c.b16 %v1428, %v1427
    %v1645 = vpack.c.b16 %v1430, %v1429
    %v1646 = vpack.c.b16 %v1432, %v1431
    %v1647 = vpack.c.b16 %v1434, %v1433
    %v1648 = vpack.c.b16 %v1436, %v1435
    %v1649 = vpack.c.b16 %v1438, %v1437
    %v1650 = vpack.c.b16 %v1440, %v1439
    %v1651 = vpack.c.b16 %v1442, %v1441
    %v1652 = vpack.c.b16 %v1444, %v1443
    %v1653 = vpack.c.b16 %v1446, %v1445
    %v1654 = vpack.c.b16 %v1448, %v1447
    %v1655 = vpack.c.b16 %v1450, %v1449
    %v1656 = vpack.c.b16 %v1452, %v1451
    %v1657 = vpack.c.b16 %v1454, %v1453
    %v1658 = vpack.c.b16 %v1456, %v1455
    %v1659 = vpack.c.b16 %v1458, %v1457
    %v1660 = vpack.c.b16 %v1460, %v1459
    %v1661 = vpack.c.b16 %v1462, %v1461
    %v1662 = vpack.c.b16 %v1464, %v1463
    %v1663 = vpack.c.b16 %v1466, %v1465
    %v1664 = vpack.c.b16 %v1468, %v1467
    %v1665 = vpack.c.b16 %v1470, %v1469
    %v1666 = vpack.c.b16 %v1472, %v1471
    %v1667 = vpack.c.b16 %v1474, %v1473
    %v1668 = vpack.c.b16 %v1476, %v1475
    %v1669 = vpack.c.b16 %v1478, %v1477
    %v1670 = vpack.c.b16 %v1480, %v1479
    %v1671 = vpack.c.b16 %v1482, %v1481
    %v1672 = vpack.c.b16 %v1484, %v1483
    %v1673 = vpack.c.b16 %v1486, %v1485
    %v1674 = vpack.c.b16 %v1488, %v1487
    %v1675 = vpack.c.b16 %v1490, %v1489
    %v1676 = vpack.c.b16 %v1492, %v1491
    %v1677 = vpack.c.b16 %v1494, %v1493
    %v1678 = vpack.c.b16 %v1496, %v1495
    %v1679 = vpack.c.b16 %v1498, %v1497
    %v1680 = vpack.c.b16 %v1500, %v1499
    %v1681 = vpack.c.b16 %v1502, %v1501
    %v1682 = vpack.c.b16 %v1504, %v1503
    %v1683 = vpack.c.b16 %v1506, %v1505
    %v1684 = vpack.c.b16 %v1508, %v1507
    %v1685 = vpack.c.b16 %v1510, %v1509
    %v1686 = vpack.c.b16 %v1512, %v1511
    %v1687 = vpack.c.b16 %v1514, %v1513
    %v1688 = vpack.c.b16 %v1516, %v1515
    %v1689 = vpack.c.b16 %v1518, %v1517
    %v1690 = vpack.c.b16 %v1520, %v1519
    %v1691 = vpack.c.b16 %v1522, %v1521
    %v1692 = vpack.c.b16 %v1524, %v1523
    %v1693 = vpack.c.b16 %v1526, %v1525
    %v1694 = vpack.c.b16 %v1528, %v1527
    %v1695 = vpack.c.b16 %v1530, %v1529
    %v1696 = vpack.c.b16 %v1532, %v1531
    %v1697 = vpack.c.b16 %v1534, %v1533
    %v1698 = vpack.c.b16 %v1536, %v1535
    %v1699 = vpack.c.b16 %v1538, %v1537
    %v1700 = vpack.c.b16 %v1540, %v1539
    %v1701 = vpack.c.b16 %v1542, %v1541
    %v1702 = vpack.c.b16 %v1544, %v1543
    %v1703 = vpack.c.b16 %v1546, %v1545
    %v1704 = vpack.c.b16 %v1548, %v1547
    %v1705 = vpack.c.b16 %v1550, %v1549
    %v1706 = vpack.c.b16 %v1552, %v1551
    %v1707 = vpack.c.b16 %v1554, %v1553
    %v1708 = vpack.c.b16 %v1556, %v1555
    %v1709 = vpack.c.b16 %v1558, %v1557
    %v1710 = vpack.c.b16 %v1560, %v1559
    %v1711 = vpack.c.b16 %v1562, %v1561
    %v1712 = vpack.c.b16 %v1564, %v1563
    %v1713 = vpack.c.b16 %v1566, %v1565
    %v1714 = vpack.c.b16 %v1568, %v1567
    %v1715 = vpack.c.b16 %v1570, %v1569
    %v1716 = vpack.c.b16 %v1572, %v1571
    %v1717 = vpack.c.b16 %v1574, %v1573
    %v1718 = vpack.c.b16 %v1576, %v1575
    %v1719 = vpack.c.b16 %v1578, %v1577
    %v1720 = vpack.c.b16 %v1580, %v1579
    %v1721 = vpack.c.b16 %v1582, %v1581
    %v1722 = vpack.c.b16 %v1584, %v1583
    %v1723 = vpack.c.b16 %v1586, %v1585
    %v1724 = vpack.c.b16 %v1588, %v1587
    %v1725 = vpack.c.b16 %v1590, %v1589
    %v1726 = vpack.c.b16 %v1592, %v1591
    %v1727 = vpack.c.b16 %v1594, %v1593
    %v1728 = vpack.c.b16 %v1596, %v1595
    %v1729 = vpack.c.b16 %v1598, %v1597
    %v1730 = vpack.c.b16 %v1600, %v1599
    %v1731 = vpack.c.b16 %v1602, %v1601
    %v1732 = vpack.c.b16 %v1604, %v1603
    %1861 = vmatpush.bf16.msra.mxu0 %v1612
    %1862 = vmatpush.bf16.msra.mxu0 %v1611
    %1863 = vmatpush.bf16.msra.mxu0 %v1610
    %1864 = vmatpush.bf16.msra.mxu0 %v1609
    %1865 = vmatpush.bf16.msra.mxu0 %v1608
    %1866 = vmatpush.bf16.msra.mxu0 %v1607
    %1867 = vmatpush.bf16.msra.mxu0 %v1606
    %1868 = vmatpush.bf16.msra.mxu0 %v1605
    %1869 = vmatmul.bf16.gmra.mxu0 %v817
    %v1870 = vpop.f32.mrf.mxu0
    %v1871 = vadd.f32 %v1091, %v1870
    %v1872 = vpop.f32.mrf.mxu0
    %1873 = vdwg.mxu0
    %1874 = vmatpush.bf16.msra.mxu0 %v1620
    %1875 = vmatpush.bf16.msra.mxu0 %v1619
    %1876 = vmatpush.bf16.msra.mxu0 %v1618
    %1877 = vmatpush.bf16.msra.mxu0 %v1617
    %1878 = vmatpush.bf16.msra.mxu0 %v1616
    %1879 = vmatpush.bf16.msra.mxu0 %v1615
    %1880 = vmatpush.bf16.msra.mxu0 %v1614
    %1881 = vmatpush.bf16.msra.mxu0 %v1613
    %1882 = vmatmul.bf16.gmra.mxu0 %v818
    %v1883 = vpop.f32.mrf.mxu0
    %v1884 = vadd.f32 %v1871, %v1883
    %v1885 = vpop.f32.mrf.mxu0
    %1886 = vdwg.mxu0
    %1887 = vmatpush.bf16.msra.mxu0 %v1628
    %1888 = vmatpush.bf16.msra.mxu0 %v1627
    %1889 = vmatpush.bf16.msra.mxu0 %v1626
    %1890 = vmatpush.bf16.msra.mxu0 %v1625
    %1891 = vmatpush.bf16.msra.mxu0 %v1624
    %1892 = vmatpush.bf16.msra.mxu0 %v1623
    %1893 = vmatpush.bf16.msra.mxu0 %v1622
    %1894 = vmatpush.bf16.msra.mxu0 %v1621
    %1895 = vmatmul.bf16.gmra.mxu0 %v819
    %v1896 = vpop.f32.mrf.mxu0
    %v1897 = vadd.f32 %v1884, %v1896
    %v1898 = vpop.f32.mrf.mxu0
    %1899 = vdwg.mxu0
    %1900 = vmatpush.bf16.msra.mxu0 %v1636
    %1901 = vmatpush.bf16.msra.mxu0 %v1635
    %1902 = vmatpush.bf16.msra.mxu0 %v1634
    %1903 = vmatpush.bf16.msra.mxu0 %v1633
    %1904 = vmatpush.bf16.msra.mxu0 %v1632
    %1905 = vmatpush.bf16.msra.mxu0 %v1631
    %1906 = vmatpush.bf16.msra.mxu0 %v1630
    %1907 = vmatpush.bf16.msra.mxu0 %v1629
    %1908 = vmatmul.bf16.gmra.mxu0 %v820
    %v1909 = vpop.f32.mrf.mxu0
    %v1910 = vadd.f32 %v1897, %v1909
    %v1911 = vpop.f32.mrf.mxu0
    %1912 = vdwg.mxu0
    %1913 = vmatpush.bf16.msra.mxu0 %v1644
    %1914 = vmatpush.bf16.msra.mxu0 %v1643
    %1915 = vmatpush.bf16.msra.mxu0 %v1642
    %1916 = vmatpush.bf16.msra.mxu0 %v1641
    %1917 = vmatpush.bf16.msra.mxu0 %v1640
    %1918 = vmatpush.bf16.msra.mxu0 %v1639
    %1919 = vmatpush.bf16.msra.mxu0 %v1638
    %1920 = vmatpush.bf16.msra.mxu0 %v1637
    %1921 = vmatmul.bf16.gmra.mxu0 %v821
    %v1922 = vpop.f32.mrf.mxu0
    %v1923 = vadd.f32 %v1910, %v1922
    %v1924 = vpop.f32.mrf.mxu0
    %1925 = vdwg.mxu0
    %1926 = vmatpush.bf16.msra.mxu0 %v1652
    %1927 = vmatpush.bf16.msra.mxu0 %v1651
    %1928 = vmatpush.bf16.msra.mxu0 %v1650
    %1929 = vmatpush.bf16.msra.mxu0 %v1649
    %1930 = vmatpush.bf16.msra.mxu0 %v1648
    %1931 = vmatpush.bf16.msra.mxu0 %v1647
    %1932 = vmatpush.bf16.msra.mxu0 %v1646
    %1933 = vmatpush.bf16.msra.mxu0 %v1645
    %1934 = vmatmul.bf16.gmra.mxu0 %v822
    %v1935 = vpop.f32.mrf.mxu0
    %v1936 = vadd.f32 %v1923, %v1935
    %v1937 = vpop.f32.mrf.mxu0
    %1938 = vdwg.mxu0
    %1939 = vmatpush.bf16.msra.mxu0 %v1660
    %1940 = vmatpush.bf16.msra.mxu0 %v1659
    %1941 = vmatpush.bf16.msra.mxu0 %v1658
    %1942 = vmatpush.bf16.msra.mxu0 %v1657
    %1943 = vmatpush.bf16.msra.mxu0 %v1656
    %1944 = vmatpush.bf16.msra.mxu0 %v1655
    %1945 = vmatpush.bf16.msra.mxu0 %v1654
    %1946 = vmatpush.bf16.msra.mxu0 %v1653
    %1947 = vmatmul.bf16.gmra.mxu0 %v823
    %v1948 = vpop.f32.mrf.mxu0
    %v1949 = vadd.f32 %v1936, %v1948
    %v1950 = vpop.f32.mrf.mxu0
    %1951 = vdwg.mxu0
    %1952 = vmatpush.bf16.msra.mxu0 %v1668
    %1953 = vmatpush.bf16.msra.mxu0 %v1667
    %1954 = vmatpush.bf16.msra.mxu0 %v1666
    %1955 = vmatpush.bf16.msra.mxu0 %v1665
    %1956 = vmatpush.bf16.msra.mxu0 %v1664
    %1957 = vmatpush.bf16.msra.mxu0 %v1663
    %1958 = vmatpush.bf16.msra.mxu0 %v1662
    %1959 = vmatpush.bf16.msra.mxu0 %v1661
    %1960 = vmatmul.bf16.gmra.mxu0 %v824
    %v1961 = vpop.f32.mrf.mxu0
    %v1962 = vadd.f32 %v1949, %v1961
    %v1963 = vpop.f32.mrf.mxu0
    %1964 = vdwg.mxu0
    %1965 = vmatpush.bf16.msra.mxu0 %v1676
    %1966 = vmatpush.bf16.msra.mxu0 %v1675
    %1967 = vmatpush.bf16.msra.mxu0 %v1674
    %1968 = vmatpush.bf16.msra.mxu0 %v1673
    %1969 = vmatpush.bf16.msra.mxu0 %v1672
    %1970 = vmatpush.bf16.msra.mxu0 %v1671
    %1971 = vmatpush.bf16.msra.mxu0 %v1670
    %1972 = vmatpush.bf16.msra.mxu0 %v1669
    %1973 = vmatmul.bf16.gmra.mxu0 %v825
    %v1974 = vpop.f32.mrf.mxu0
    %v1975 = vadd.f32 %v1962, %v1974
    %v1976 = vpop.f32.mrf.mxu0
    %1977 = vdwg.mxu0
    %1978 = vmatpush.bf16.msra.mxu0 %v1684
    %1979 = vmatpush.bf16.msra.mxu0 %v1683
    %1980 = vmatpush.bf16.msra.mxu0 %v1682
    %1981 = vmatpush.bf16.msra.mxu0 %v1681
    %1982 = vmatpush.bf16.msra.mxu0 %v1680
    %1983 = vmatpush.bf16.msra.mxu0 %v1679
    %1984 = vmatpush.bf16.msra.mxu0 %v1678
    %1985 = vmatpush.bf16.msra.mxu0 %v1677
    %1986 = vmatmul.bf16.gmra.mxu0 %v826
    %v1987 = vpop.f32.mrf.mxu0
    %v1988 = vadd.f32 %v1975, %v1987
    %v1989 = vpop.f32.mrf.mxu0
    %1990 = vdwg.mxu0
    %1991 = vmatpush.bf16.msra.mxu0 %v1692
    %1992 = vmatpush.bf16.msra.mxu0 %v1691
    %1993 = vmatpush.bf16.msra.mxu0 %v1690
    %1994 = vmatpush.bf16.msra.mxu0 %v1689
    %1995 = vmatpush.bf16.msra.mxu0 %v1688
    %1996 = vmatpush.bf16.msra.mxu0 %v1687
    %1997 = vmatpush.bf16.msra.mxu0 %v1686
    %1998 = vmatpush.bf16.msra.mxu0 %v1685
    %1999 = vmatmul.bf16.gmra.mxu0 %v827
    %v2000 = vpop.f32.mrf.mxu0
    %v2001 = vadd.f32 %v1988, %v2000
    %v2002 = vpop.f32.mrf.mxu0
    %2003 = vdwg.mxu0
    %2004 = vmatpush.bf16.msra.mxu0 %v1700
    %2005 = vmatpush.bf16.msra.mxu0 %v1699
    %2006 = vmatpush.bf16.msra.mxu0 %v1698
    %2007 = vmatpush.bf16.msra.mxu0 %v1697
    %2008 = vmatpush.bf16.msra.mxu0 %v1696
    %2009 = vmatpush.bf16.msra.mxu0 %v1695
    %2010 = vmatpush.bf16.msra.mxu0 %v1694
    %2011 = vmatpush.bf16.msra.mxu0 %v1693
    %2012 = vmatmul.bf16.gmra.mxu0 %v828
    %v2013 = vpop.f32.mrf.mxu0
    %v2014 = vadd.f32 %v2001, %v2013
    %v2015 = vpop.f32.mrf.mxu0
    %2016 = vdwg.mxu0
    %2017 = vmatpush.bf16.msra.mxu0 %v1708
    %2018 = vmatpush.bf16.msra.mxu0 %v1707
    %2019 = vmatpush.bf16.msra.mxu0 %v1706
    %2020 = vmatpush.bf16.msra.mxu0 %v1705
    %2021 = vmatpush.bf16.msra.mxu0 %v1704
    %2022 = vmatpush.bf16.msra.mxu0 %v1703
    %2023 = vmatpush.bf16.msra.mxu0 %v1702
    %2024 = vmatpush.bf16.msra.mxu0 %v1701
    %2025 = vmatmul.bf16.gmra.mxu0 %v829
    %v2026 = vpop.f32.mrf.mxu0
    %v2027 = vadd.f32 %v2014, %v2026
    %v2028 = vpop.f32.mrf.mxu0
    %2029 = vdwg.mxu0
    %2030 = vmatpush.bf16.msra.mxu0 %v1716
    %2031 = vmatpush.bf16.msra.mxu0 %v1715
    %2032 = vmatpush.bf16.msra.mxu0 %v1714
    %2033 = vmatpush.bf16.msra.mxu0 %v1713
    %2034 = vmatpush.bf16.msra.mxu0 %v1712
    %2035 = vmatpush.bf16.msra.mxu0 %v1711
    %2036 = vmatpush.bf16.msra.mxu0 %v1710
    %2037 = vmatpush.bf16.msra.mxu0 %v1709
    %2038 = vmatmul.bf16.gmra.mxu0 %v830
    %v2039 = vpop.f32.mrf.mxu0
    %v2040 = vadd.f32 %v2027, %v2039
    %v2041 = vpop.f32.mrf.mxu0
    %2042 = vdwg.mxu0
    %2043 = vmatpush.bf16.msra.mxu0 %v1724
    %2044 = vmatpush.bf16.msra.mxu0 %v1723
    %2045 = vmatpush.bf16.msra.mxu0 %v1722
    %2046 = vmatpush.bf16.msra.mxu0 %v1721
    %2047 = vmatpush.bf16.msra.mxu0 %v1720
    %2048 = vmatpush.bf16.msra.mxu0 %v1719
    %2049 = vmatpush.bf16.msra.mxu0 %v1718
    %2050 = vmatpush.bf16.msra.mxu0 %v1717
    %2051 = vmatmul.bf16.gmra.mxu0 %v831
    %v2052 = vpop.f32.mrf.mxu0
    %v2053 = vadd.f32 %v2040, %v2052
    %v2054 = vpop.f32.mrf.mxu0
    %2055 = vdwg.mxu0
    %2056 = vmatpush.bf16.msra.mxu0 %v1732
    %2057 = vmatpush.bf16.msra.mxu0 %v1731
    %2058 = vmatpush.bf16.msra.mxu0 %v1730
    %2059 = vmatpush.bf16.msra.mxu0 %v1729
    %2060 = vmatpush.bf16.msra.mxu0 %v1728
    %2061 = vmatpush.bf16.msra.mxu0 %v1727
    %2062 = vmatpush.bf16.msra.mxu0 %v1726
    %2063 = vmatpush.bf16.msra.mxu0 %v1725
    %2064 = vmatmul.bf16.gmra.mxu0 %v832
    %v2065 = vpop.f32.mrf.mxu0
    %v2066 = vadd.f32 %v2053, %v2065
    %v2067 = vpop.f32.mrf.mxu0
    %2068 = vdwg.mxu0
    %v2069 = vadd.f32 %v168, %v2066
    %v2070 = vld [vmem:[%s11] sm:$0x1]
    %v2071 = vld [vmem:[%s12] sm:$0x1]
    %v2072 = vsel %vm104, %v2069, 0.0
    %2073 = vadd.xlane.f32.xlu0 %v2072
    %v2074 = vpop.xlane.xlu0 %2073
    %v2075 = vmul.f32 %v2074, %v139
    %v2076 = vmul.f32 %v2069, %v2069
    %v2077 = vsel %vm104, %v2076, 0.0
    %2078 = vadd.xlane.f32.xlu0 %v2077
    %v2079 = vpop.xlane.xlu0 %2078
    %v2080 = vmul.f32 %v2079, %v139
    %v2081 = vmul.f32 %v2075, %v2075
    %v2082 = vsub.f32 %v2080, %v2081
    %v2083 = vsub.f32 %v2069, %v2075
    %v2084 = vadd.f32 %v2082, 1e-05
    %v2085 = vrsqrt.pop %v2084
    %v2086 = vmul.f32 %v2085, %v2084
    %v2087 = vmul.f32 %v2086, %v2085
    %v2088 = vmul.f32 0.5, %v2087
    %v2089 = vsub.f32 1.5, %v2088
    %v2090 = vmul.f32 %v2085, %v2089
    %vm2091 = vweird.f32 %v2084
    %vm2092 = vweird.f32 %v2085
    %vm2093 = vmor %vm2091, %vm2092
    %v2094 = vsel %vm2093, %v2085, %v2090
    %v2095 = vmul.f32 %v2083, %v2094
    %v2097 = vperm.slane %v2070, 0
    %v2099 = vmul.f32 %v2095, %v2097
    %v2101 = vperm.slane %v2071, 0
    %v2103 = vadd.f32 %v2099, %v2101
    %s2104 = scalar_lea.vmem %s3, 64
    %v2105 = vld [vmem:[%s2104] sm:$0xff]
    %v2106 = vld [vmem:[%s2104 + $0x8] sm:$0xff]
    %v2107 = vld [vmem:[%s2104 + $0x10] sm:$0xff]
    %v2108 = vld [vmem:[%s2104 + $0x18] sm:$0xff]
    %v2109 = vld [vmem:[%s2104 + $0x20] sm:$0xff]
    %v2110 = vld [vmem:[%s2104 + $0x28] sm:$0xff]
    %v2111 = vld [vmem:[%s2104 + $0x30] sm:$0xff]
    %v2112 = vld [vmem:[%s2104 + $0x38] sm:$0xff]
    %s2113 = scalar_lea.vmem %s4, 1
    %v2114 = vld [vmem:[%s2113] sm:$0x1]
    %v2116 = vperm.slane %v2114, 0
    %v2119 = vsel %vm104, %v2103, 0
    %2121 = vmatpush.msra.mxu0 0.0
    %2122 = vmatpush.msra.mxu0 0.0
    %2123 = vmatpush.msra.mxu0 0.0
    %2124 = vmatpush.msra.mxu0 0.0
    %2125 = vmatpush.msra.mxu0 0.0
    %2126 = vmatpush.msra.mxu0 0.0
    %2127 = vmatpush.msra.mxu0 0.0
    %2128 = vmatpush.msra.mxu0 0.0
    %2129 = vmatpush.msra.mxu0 %v2112
    %2130 = vmatpush.msra.mxu0 %v2111
    %2131 = vmatpush.msra.mxu0 %v2110
    %2132 = vmatpush.msra.mxu0 %v2109
    %2133 = vmatpush.msra.mxu0 %v2108
    %2134 = vmatpush.msra.mxu0 %v2107
    %2135 = vmatpush.msra.mxu0 %v2106
    %2136 = vmatpush.msra.mxu0 %v2105
    %2137 = vmatmul.f32.gmra.mxu0 %v2119
    %v2138 = vpop.f32.mrf.mxu0
    %v2139 = vadd.f32 %v2116, %v2138
    %2140 = vdwg.mxu0
    %s2141 = scalar_lea.vmem %s9, 1
    %v2142 = vld [vmem:[%s2141] sm:$0x1]
    %s2143 = scalar_lea.vmem %s10, 1
    %v2144 = vld [vmem:[%s2143] sm:$0x1]
    %v2145 = vsel %vm104, %v2139, 0.0
    %2146 = vadd.xlane.f32.xlu0 %v2145
    %v2147 = vpop.xlane.xlu0 %2146
    %v2148 = vmul.f32 %v2147, %v139
    %v2149 = vmul.f32 %v2139, %v2139
    %v2150 = vsel %vm104, %v2149, 0.0
    %2151 = vadd.xlane.f32.xlu0 %v2150
    %v2152 = vpop.xlane.xlu0 %2151
    %v2153 = vmul.f32 %v2152, %v139
    %v2154 = vmul.f32 %v2148, %v2148
    %v2155 = vsub.f32 %v2153, %v2154
    %v2156 = vsub.f32 %v2139, %v2148
    %v2157 = vadd.f32 %v2155, 1e-05
    %v2158 = vrsqrt.pop %v2157
    %v2159 = vmul.f32 %v2158, %v2157
    %v2160 = vmul.f32 %v2159, %v2158
    %v2161 = vmul.f32 0.5, %v2160
    %v2162 = vsub.f32 1.5, %v2161
    %v2163 = vmul.f32 %v2158, %v2162
    %vm2164 = vweird.f32 %v2157
    %vm2165 = vweird.f32 %v2158
    %vm2166 = vmor %vm2164, %vm2165
    %v2167 = vsel %vm2166, %v2158, %v2163
    %v2168 = vmul.f32 %v2156, %v2167
    %v2170 = vperm.slane %v2142, 0
    %v2172 = vmul.f32 %v2168, %v2170
    %v2174 = vperm.slane %v2144, 0
    %v2176 = vadd.f32 %v2172, %v2174
    %v2177 = vpack.c.bf16 %v2176, %v2176
    %s2178 = scalar_lea.vmem %s5, 512
    %v2179 = vld [vmem:[%s2178] sm:$0xff]
    %v2180 = vld [vmem:[%s2178 + $0x8] sm:$0xff]
    %v2181 = vld [vmem:[%s2178 + $0x10] sm:$0xff]
    %v2182 = vld [vmem:[%s2178 + $0x18] sm:$0xff]
    %v2183 = vld [vmem:[%s2178 + $0x20] sm:$0xff]
    %v2184 = vld [vmem:[%s2178 + $0x28] sm:$0xff]
    %v2185 = vld [vmem:[%s2178 + $0x30] sm:$0xff]
    %v2186 = vld [vmem:[%s2178 + $0x38] sm:$0xff]
    %v2187 = vld [vmem:[%s2178 + $0x40] sm:$0xff]
    %v2188 = vld [vmem:[%s2178 + $0x48] sm:$0xff]
    %v2189 = vld [vmem:[%s2178 + $0x50] sm:$0xff]
    %v2190 = vld [vmem:[%s2178 + $0x58] sm:$0xff]
    %v2191 = vld [vmem:[%s2178 + $0x60] sm:$0xff]
    %v2192 = vld [vmem:[%s2178 + $0x68] sm:$0xff]
    %v2193 = vld [vmem:[%s2178 + $0x70] sm:$0xff]
    %v2194 = vld [vmem:[%s2178 + $0x78] sm:$0xff]
    %v2195 = vld [vmem:[%s2178 + $0x80] sm:$0xff]
    %v2196 = vld [vmem:[%s2178 + $0x88] sm:$0xff]
    %v2197 = vld [vmem:[%s2178 + $0x90] sm:$0xff]
    %v2198 = vld [vmem:[%s2178 + $0x98] sm:$0xff]
    %v2199 = vld [vmem:[%s2178 + $0xa0] sm:$0xff]
    %v2200 = vld [vmem:[%s2178 + $0xa8] sm:$0xff]
    %v2201 = vld [vmem:[%s2178 + $0xb0] sm:$0xff]
    %v2202 = vld [vmem:[%s2178 + $0xb8] sm:$0xff]
    %v2203 = vld [vmem:[%s2178 + $0xc0] sm:$0xff]
    %v2204 = vld [vmem:[%s2178 + $0xc8] sm:$0xff]
    %v2205 = vld [vmem:[%s2178 + $0xd0] sm:$0xff]
    %v2206 = vld [vmem:[%s2178 + $0xd8] sm:$0xff]
    %v2207 = vld [vmem:[%s2178 + $0xe0] sm:$0xff]
    %v2208 = vld [vmem:[%s2178 + $0xe8] sm:$0xff]
    %v2209 = vld [vmem:[%s2178 + $0xf0] sm:$0xff]
    %v2210 = vld [vmem:[%s2178 + $0xf8] sm:$0xff]
    %v2211 = vld [vmem:[%s2178 + $0x100] sm:$0xff]
    %v2212 = vld [vmem:[%s2178 + $0x108] sm:$0xff]
    %v2213 = vld [vmem:[%s2178 + $0x110] sm:$0xff]
    %v2214 = vld [vmem:[%s2178 + $0x118] sm:$0xff]
    %v2215 = vld [vmem:[%s2178 + $0x120] sm:$0xff]
    %v2216 = vld [vmem:[%s2178 + $0x128] sm:$0xff]
    %v2217 = vld [vmem:[%s2178 + $0x130] sm:$0xff]
    %v2218 = vld [vmem:[%s2178 + $0x138] sm:$0xff]
    %v2219 = vld [vmem:[%s2178 + $0x140] sm:$0xff]
    %v2220 = vld [vmem:[%s2178 + $0x148] sm:$0xff]
    %v2221 = vld [vmem:[%s2178 + $0x150] sm:$0xff]
    %v2222 = vld [vmem:[%s2178 + $0x158] sm:$0xff]
    %v2223 = vld [vmem:[%s2178 + $0x160] sm:$0xff]
    %v2224 = vld [vmem:[%s2178 + $0x168] sm:$0xff]
    %v2225 = vld [vmem:[%s2178 + $0x170] sm:$0xff]
    %v2226 = vld [vmem:[%s2178 + $0x178] sm:$0xff]
    %v2227 = vld [vmem:[%s2178 + $0x180] sm:$0xff]
    %v2228 = vld [vmem:[%s2178 + $0x188] sm:$0xff]
    %v2229 = vld [vmem:[%s2178 + $0x190] sm:$0xff]
    %v2230 = vld [vmem:[%s2178 + $0x198] sm:$0xff]
    %v2231 = vld [vmem:[%s2178 + $0x1a0] sm:$0xff]
    %v2232 = vld [vmem:[%s2178 + $0x1a8] sm:$0xff]
    %v2233 = vld [vmem:[%s2178 + $0x1b0] sm:$0xff]
    %v2234 = vld [vmem:[%s2178 + $0x1b8] sm:$0xff]
    %v2235 = vld [vmem:[%s2178 + $0x1c0] sm:$0xff]
    %v2236 = vld [vmem:[%s2178 + $0x1c8] sm:$0xff]
    %v2237 = vld [vmem:[%s2178 + $0x1d0] sm:$0xff]
    %v2238 = vld [vmem:[%s2178 + $0x1d8] sm:$0xff]
    %v2239 = vld [vmem:[%s2178 + $0x1e0] sm:$0xff]
    %v2240 = vld [vmem:[%s2178 + $0x1e8] sm:$0xff]
    %v2241 = vld [vmem:[%s2178 + $0x1f0] sm:$0xff]
    %v2242 = vld [vmem:[%s2178 + $0x1f8] sm:$0xff]
    %s2243 = scalar_lea.vmem %s6, 16
    %v2244 = vld [vmem:[%s2243] sm:$0xff]
    %v2245 = vld [vmem:[%s2243 + $0x8] sm:$0xff]
    %v2248 = vperm.slane %v2244, 0
    %v2249 = vperm.slane %v2244, 1
    %v2250 = vperm.slane %v2244, 2
    %v2251 = vperm.slane %v2244, 3
    %v2252 = vperm.slane %v2244, 4
    %v2253 = vperm.slane %v2244, 5
    %v2254 = vperm.slane %v2244, 6
    %v2255 = vperm.slane %v2244, 7
    %v2256 = vperm.slane %v2245, 0
    %v2257 = vperm.slane %v2245, 1
    %v2258 = vperm.slane %v2245, 2
    %v2259 = vperm.slane %v2245, 3
    %v2260 = vperm.slane %v2245, 4
    %v2261 = vperm.slane %v2245, 5
    %v2262 = vperm.slane %v2245, 6
    %v2263 = vperm.slane %v2245, 7
    %v2344 = vunpack.c.l.b16 %v2179
    %v2345 = vunpack.c.h.b16 %v2179
    %v2346 = vunpack.c.l.b16 %v2180
    %v2347 = vunpack.c.h.b16 %v2180
    %v2348 = vunpack.c.l.b16 %v2181
    %v2349 = vunpack.c.h.b16 %v2181
    %v2350 = vunpack.c.l.b16 %v2182
    %v2351 = vunpack.c.h.b16 %v2182
    %v2352 = vunpack.c.l.b16 %v2183
    %v2353 = vunpack.c.h.b16 %v2183
    %v2354 = vunpack.c.l.b16 %v2184
    %v2355 = vunpack.c.h.b16 %v2184
    %v2356 = vunpack.c.l.b16 %v2185
    %v2357 = vunpack.c.h.b16 %v2185
    %v2358 = vunpack.c.l.b16 %v2186
    %v2359 = vunpack.c.h.b16 %v2186
    %v2360 = vunpack.c.l.b16 %v2187
    %v2361 = vunpack.c.h.b16 %v2187
    %v2362 = vunpack.c.l.b16 %v2188
    %v2363 = vunpack.c.h.b16 %v2188
    %v2364 = vunpack.c.l.b16 %v2189
    %v2365 = vunpack.c.h.b16 %v2189
    %v2366 = vunpack.c.l.b16 %v2190
    %v2367 = vunpack.c.h.b16 %v2190
    %v2368 = vunpack.c.l.b16 %v2191
    %v2369 = vunpack.c.h.b16 %v2191
    %v2370 = vunpack.c.l.b16 %v2192
    %v2371 = vunpack.c.h.b16 %v2192
    %v2372 = vunpack.c.l.b16 %v2193
    %v2373 = vunpack.c.h.b16 %v2193
    %v2374 = vunpack.c.l.b16 %v2194
    %v2375 = vunpack.c.h.b16 %v2194
    %v2376 = vunpack.c.l.b16 %v2195
    %v2377 = vunpack.c.h.b16 %v2195
    %v2378 = vunpack.c.l.b16 %v2196
    %v2379 = vunpack.c.h.b16 %v2196
    %v2380 = vunpack.c.l.b16 %v2197
    %v2381 = vunpack.c.h.b16 %v2197
    %v2382 = vunpack.c.l.b16 %v2198
    %v2383 = vunpack.c.h.b16 %v2198
    %v2384 = vunpack.c.l.b16 %v2199
    %v2385 = vunpack.c.h.b16 %v2199
    %v2386 = vunpack.c.l.b16 %v2200
    %v2387 = vunpack.c.h.b16 %v2200
    %v2388 = vunpack.c.l.b16 %v2201
    %v2389 = vunpack.c.h.b16 %v2201
    %v2390 = vunpack.c.l.b16 %v2202
    %v2391 = vunpack.c.h.b16 %v2202
    %v2392 = vunpack.c.l.b16 %v2203
    %v2393 = vunpack.c.h.b16 %v2203
    %v2394 = vunpack.c.l.b16 %v2204
    %v2395 = vunpack.c.h.b16 %v2204
    %v2396 = vunpack.c.l.b16 %v2205
    %v2397 = vunpack.c.h.b16 %v2205
    %v2398 = vunpack.c.l.b16 %v2206
    %v2399 = vunpack.c.h.b16 %v2206
    %v2400 = vunpack.c.l.b16 %v2207
    %v2401 = vunpack.c.h.b16 %v2207
    %v2402 = vunpack.c.l.b16 %v2208
    %v2403 = vunpack.c.h.b16 %v2208
    %v2404 = vunpack.c.l.b16 %v2209
    %v2405 = vunpack.c.h.b16 %v2209
    %v2406 = vunpack.c.l.b16 %v2210
    %v2407 = vunpack.c.h.b16 %v2210
    %v2408 = vunpack.c.l.b16 %v2211
    %v2409 = vunpack.c.h.b16 %v2211
    %v2410 = vunpack.c.l.b16 %v2212
    %v2411 = vunpack.c.h.b16 %v2212
    %v2412 = vunpack.c.l.b16 %v2213
    %v2413 = vunpack.c.h.b16 %v2213
    %v2414 = vunpack.c.l.b16 %v2214
    %v2415 = vunpack.c.h.b16 %v2214
    %v2416 = vunpack.c.l.b16 %v2215
    %v2417 = vunpack.c.h.b16 %v2215
    %v2418 = vunpack.c.l.b16 %v2216
    %v2419 = vunpack.c.h.b16 %v2216
    %v2420 = vunpack.c.l.b16 %v2217
    %v2421 = vunpack.c.h.b16 %v2217
    %v2422 = vunpack.c.l.b16 %v2218
    %v2423 = vunpack.c.h.b16 %v2218
    %v2424 = vunpack.c.l.b16 %v2219
    %v2425 = vunpack.c.h.b16 %v2219
    %v2426 = vunpack.c.l.b16 %v2220
    %v2427 = vunpack.c.h.b16 %v2220
    %v2428 = vunpack.c.l.b16 %v2221
    %v2429 = vunpack.c.h.b16 %v2221
    %v2430 = vunpack.c.l.b16 %v2222
    %v2431 = vunpack.c.h.b16 %v2222
    %v2432 = vunpack.c.l.b16 %v2223
    %v2433 = vunpack.c.h.b16 %v2223
    %v2434 = vunpack.c.l.b16 %v2224
    %v2435 = vunpack.c.h.b16 %v2224
    %v2436 = vunpack.c.l.b16 %v2225
    %v2437 = vunpack.c.h.b16 %v2225
    %v2438 = vunpack.c.l.b16 %v2226
    %v2439 = vunpack.c.h.b16 %v2226
    %v2440 = vunpack.c.l.b16 %v2227
    %v2441 = vunpack.c.h.b16 %v2227
    %v2442 = vunpack.c.l.b16 %v2228
    %v2443 = vunpack.c.h.b16 %v2228
    %v2444 = vunpack.c.l.b16 %v2229
    %v2445 = vunpack.c.h.b16 %v2229
    %v2446 = vunpack.c.l.b16 %v2230
    %v2447 = vunpack.c.h.b16 %v2230
    %v2448 = vunpack.c.l.b16 %v2231
    %v2449 = vunpack.c.h.b16 %v2231
    %v2450 = vunpack.c.l.b16 %v2232
    %v2451 = vunpack.c.h.b16 %v2232
    %v2452 = vunpack.c.l.b16 %v2233
    %v2453 = vunpack.c.h.b16 %v2233
    %v2454 = vunpack.c.l.b16 %v2234
    %v2455 = vunpack.c.h.b16 %v2234
    %v2456 = vunpack.c.l.b16 %v2235
    %v2457 = vunpack.c.h.b16 %v2235
    %v2458 = vunpack.c.l.b16 %v2236
    %v2459 = vunpack.c.h.b16 %v2236
    %v2460 = vunpack.c.l.b16 %v2237
    %v2461 = vunpack.c.h.b16 %v2237
    %v2462 = vunpack.c.l.b16 %v2238
    %v2463 = vunpack.c.h.b16 %v2238
    %v2464 = vunpack.c.l.b16 %v2239
    %v2465 = vunpack.c.h.b16 %v2239
    %v2466 = vunpack.c.l.b16 %v2240
    %v2467 = vunpack.c.h.b16 %v2240
    %v2468 = vunpack.c.l.b16 %v2241
    %v2469 = vunpack.c.h.b16 %v2241
    %v2470 = vunpack.c.l.b16 %v2242
    %v2471 = vunpack.c.h.b16 %v2242
    %v2472 = vpack.c.b16 %v2360, %v2344
    %v2473 = vpack.c.b16 %v2361, %v2345
    %v2474 = vpack.c.b16 %v2362, %v2346
    %v2475 = vpack.c.b16 %v2363, %v2347
    %v2476 = vpack.c.b16 %v2364, %v2348
    %v2477 = vpack.c.b16 %v2365, %v2349
    %v2478 = vpack.c.b16 %v2366, %v2350
    %v2479 = vpack.c.b16 %v2367, %v2351
    %v2480 = vpack.c.b16 %v2368, %v2352
    %v2481 = vpack.c.b16 %v2369, %v2353
    %v2482 = vpack.c.b16 %v2370, %v2354
    %v2483 = vpack.c.b16 %v2371, %v2355
    %v2484 = vpack.c.b16 %v2372, %v2356
    %v2485 = vpack.c.b16 %v2373, %v2357
    %v2486 = vpack.c.b16 %v2374, %v2358
    %v2487 = vpack.c.b16 %v2375, %v2359
    %v2488 = vpack.c.b16 %v2392, %v2376
    %v2489 = vpack.c.b16 %v2393, %v2377
    %v2490 = vpack.c.b16 %v2394, %v2378
    %v2491 = vpack.c.b16 %v2395, %v2379
    %v2492 = vpack.c.b16 %v2396, %v2380
    %v2493 = vpack.c.b16 %v2397, %v2381
    %v2494 = vpack.c.b16 %v2398, %v2382
    %v2495 = vpack.c.b16 %v2399, %v2383
    %v2496 = vpack.c.b16 %v2400, %v2384
    %v2497 = vpack.c.b16 %v2401, %v2385
    %v2498 = vpack.c.b16 %v2402, %v2386
    %v2499 = vpack.c.b16 %v2403, %v2387
    %v2500 = vpack.c.b16 %v2404, %v2388
    %v2501 = vpack.c.b16 %v2405, %v2389
    %v2502 = vpack.c.b16 %v2406, %v2390
    %v2503 = vpack.c.b16 %v2407, %v2391
    %v2504 = vpack.c.b16 %v2424, %v2408
    %v2505 = vpack.c.b16 %v2425, %v2409
    %v2506 = vpack.c.b16 %v2426, %v2410
    %v2507 = vpack.c.b16 %v2427, %v2411
    %v2508 = vpack.c.b16 %v2428, %v2412
    %v2509 = vpack.c.b16 %v2429, %v2413
    %v2510 = vpack.c.b16 %v2430, %v2414
    %v2511 = vpack.c.b16 %v2431, %v2415
    %v2512 = vpack.c.b16 %v2432, %v2416
    %v2513 = vpack.c.b16 %v2433, %v2417
    %v2514 = vpack.c.b16 %v2434, %v2418
    %v2515 = vpack.c.b16 %v2435, %v2419
    %v2516 = vpack.c.b16 %v2436, %v2420
    %v2517 = vpack.c.b16 %v2437, %v2421
    %v2518 = vpack.c.b16 %v2438, %v2422
    %v2519 = vpack.c.b16 %v2439, %v2423
    %v2520 = vpack.c.b16 %v2456, %v2440
    %v2521 = vpack.c.b16 %v2457, %v2441
    %v2522 = vpack.c.b16 %v2458, %v2442
    %v2523 = vpack.c.b16 %v2459, %v2443
    %v2524 = vpack.c.b16 %v2460, %v2444
    %v2525 = vpack.c.b16 %v2461, %v2445
    %v2526 = vpack.c.b16 %v2462, %v2446
    %v2527 = vpack.c.b16 %v2463, %v2447
    %v2528 = vpack.c.b16 %v2464, %v2448
    %v2529 = vpack.c.b16 %v2465, %v2449
    %v2530 = vpack.c.b16 %v2466, %v2450
    %v2531 = vpack.c.b16 %v2467, %v2451
    %v2532 = vpack.c.b16 %v2468, %v2452
    %v2533 = vpack.c.b16 %v2469, %v2453
    %v2534 = vpack.c.b16 %v2470, %v2454
    %v2535 = vpack.c.b16 %v2471, %v2455
    %v2601 = vsel %vm104, %v2177, 0
    %2603 = vmatpush.bf16.msra.mxu0 0
    %2604 = vmatpush.bf16.msra.mxu0 0
    %2605 = vmatpush.bf16.msra.mxu0 0
    %2606 = vmatpush.bf16.msra.mxu0 0
    %2607 = vmatpush.bf16.msra.mxu0 %v2520
    %2608 = vmatpush.bf16.msra.mxu0 %v2504
    %2609 = vmatpush.bf16.msra.mxu0 %v2488
    %2610 = vmatpush.bf16.msra.mxu0 %v2472
    %2611 = vmatmul.bf16.gmra.mxu0 %v2601
    %v2612 = vpop.f32.mrf.mxu0
    %v2613 = vadd.f32 %v2248, %v2612
    %v2614 = vpop.f32.mrf.mxu0
    %2615 = vdwg.mxu0
    %2616 = vmatpush.bf16.msra.mxu0 0
    %2617 = vmatpush.bf16.msra.mxu0 0
    %2618 = vmatpush.bf16.msra.mxu0 0
    %2619 = vmatpush.bf16.msra.mxu0 0
    %2620 = vmatpush.bf16.msra.mxu0 %v2521
    %2621 = vmatpush.bf16.msra.mxu0 %v2505
    %2622 = vmatpush.bf16.msra.mxu0 %v2489
    %2623 = vmatpush.bf16.msra.mxu0 %v2473
    %2624 = vmatmul.bf16.gmra.mxu0 %v2601
    %v2625 = vpop.f32.mrf.mxu0
    %v2626 = vadd.f32 %v2249, %v2625
    %v2627 = vpop.f32.mrf.mxu0
    %2628 = vdwg.mxu0
    %2629 = vmatpush.bf16.msra.mxu0 0
    %2630 = vmatpush.bf16.msra.mxu0 0
    %2631 = vmatpush.bf16.msra.mxu0 0
    %2632 = vmatpush.bf16.msra.mxu0 0
    %2633 = vmatpush.bf16.msra.mxu0 %v2522
    %2634 = vmatpush.bf16.msra.mxu0 %v2506
    %2635 = vmatpush.bf16.msra.mxu0 %v2490
    %2636 = vmatpush.bf16.msra.mxu0 %v2474
    %2637 = vmatmul.bf16.gmra.mxu0 %v2601
    %v2638 = vpop.f32.mrf.mxu0
    %v2639 = vadd.f32 %v2250, %v2638
    %v2640 = vpop.f32.mrf.mxu0
    %2641 = vdwg.mxu0
    %2642 = vmatpush.bf16.msra.mxu0 0
    %2643 = vmatpush.bf16.msra.mxu0 0
    %2644 = vmatpush.bf16.msra.mxu0 0
    %2645 = vmatpush.bf16.msra.mxu0 0
    %2646 = vmatpush.bf16.msra.mxu0 %v2523
    %2647 = vmatpush.bf16.msra.mxu0 %v2507
    %2648 = vmatpush.bf16.msra.mxu0 %v2491
    %2649 = vmatpush.bf16.msra.mxu0 %v2475
    %2650 = vmatmul.bf16.gmra.mxu0 %v2601
    %v2651 = vpop.f32.mrf.mxu0
    %v2652 = vadd.f32 %v2251, %v2651
    %v2653 = vpop.f32.mrf.mxu0
    %2654 = vdwg.mxu0
    %2655 = vmatpush.bf16.msra.mxu0 0
    %2656 = vmatpush.bf16.msra.mxu0 0
    %2657 = vmatpush.bf16.msra.mxu0 0
    %2658 = vmatpush.bf16.msra.mxu0 0
    %2659 = vmatpush.bf16.msra.mxu0 %v2524
    %2660 = vmatpush.bf16.msra.mxu0 %v2508
    %2661 = vmatpush.bf16.msra.mxu0 %v2492
    %2662 = vmatpush.bf16.msra.mxu0 %v2476
    %2663 = vmatmul.bf16.gmra.mxu0 %v2601
    %v2664 = vpop.f32.mrf.mxu0
    %v2665 = vadd.f32 %v2252, %v2664
    %v2666 = vpop.f32.mrf.mxu0
    %2667 = vdwg.mxu0
    %2668 = vmatpush.bf16.msra.mxu0 0
    %2669 = vmatpush.bf16.msra.mxu0 0
    %2670 = vmatpush.bf16.msra.mxu0 0
    %2671 = vmatpush.bf16.msra.mxu0 0
    %2672 = vmatpush.bf16.msra.mxu0 %v2525
    %2673 = vmatpush.bf16.msra.mxu0 %v2509
    %2674 = vmatpush.bf16.msra.mxu0 %v2493
    %2675 = vmatpush.bf16.msra.mxu0 %v2477
    %2676 = vmatmul.bf16.gmra.mxu0 %v2601
    %v2677 = vpop.f32.mrf.mxu0
    %v2678 = vadd.f32 %v2253, %v2677
    %v2679 = vpop.f32.mrf.mxu0
    %2680 = vdwg.mxu0
    %2681 = vmatpush.bf16.msra.mxu0 0
    %2682 = vmatpush.bf16.msra.mxu0 0
    %2683 = vmatpush.bf16.msra.mxu0 0
    %2684 = vmatpush.bf16.msra.mxu0 0
    %2685 = vmatpush.bf16.msra.mxu0 %v2526
    %2686 = vmatpush.bf16.msra.mxu0 %v2510
    %2687 = vmatpush.bf16.msra.mxu0 %v2494
    %2688 = vmatpush.bf16.msra.mxu0 %v2478
    %2689 = vmatmul.bf16.gmra.mxu0 %v2601
    %v2690 = vpop.f32.mrf.mxu0
    %v2691 = vadd.f32 %v2254, %v2690
    %v2692 = vpop.f32.mrf.mxu0
    %2693 = vdwg.mxu0
    %2694 = vmatpush.bf16.msra.mxu0 0
    %2695 = vmatpush.bf16.msra.mxu0 0
    %2696 = vmatpush.bf16.msra.mxu0 0
    %2697 = vmatpush.bf16.msra.mxu0 0
    %2698 = vmatpush.bf16.msra.mxu0 %v2527
    %2699 = vmatpush.bf16.msra.mxu0 %v2511
    %2700 = vmatpush.bf16.msra.mxu0 %v2495
    %2701 = vmatpush.bf16.msra.mxu0 %v2479
    %2702 = vmatmul.bf16.gmra.mxu0 %v2601
    %v2703 = vpop.f32.mrf.mxu0
    %v2704 = vadd.f32 %v2255, %v2703
    %v2705 = vpop.f32.mrf.mxu0
    %2706 = vdwg.mxu0
    %2707 = vmatpush.bf16.msra.mxu0 0
    %2708 = vmatpush.bf16.msra.mxu0 0
    %2709 = vmatpush.bf16.msra.mxu0 0
    %2710 = vmatpush.bf16.msra.mxu0 0
    %2711 = vmatpush.bf16.msra.mxu0 %v2528
    %2712 = vmatpush.bf16.msra.mxu0 %v2512
    %2713 = vmatpush.bf16.msra.mxu0 %v2496
    %2714 = vmatpush.bf16.msra.mxu0 %v2480
    %2715 = vmatmul.bf16.gmra.mxu0 %v2601
    %v2716 = vpop.f32.mrf.mxu0
    %v2717 = vadd.f32 %v2256, %v2716
    %v2718 = vpop.f32.mrf.mxu0
    %2719 = vdwg.mxu0
    %2720 = vmatpush.bf16.msra.mxu0 0
    %2721 = vmatpush.bf16.msra.mxu0 0
    %2722 = vmatpush.bf16.msra.mxu0 0
    %2723 = vmatpush.bf16.msra.mxu0 0
    %2724 = vmatpush.bf16.msra.mxu0 %v2529
    %2725 = vmatpush.bf16.msra.mxu0 %v2513
    %2726 = vmatpush.bf16.msra.mxu0 %v2497
    %2727 = vmatpush.bf16.msra.mxu0 %v2481
    %2728 = vmatmul.bf16.gmra.mxu0 %v2601
    %v2729 = vpop.f32.mrf.mxu0
    %v2730 = vadd.f32 %v2257, %v2729
    %v2731 = vpop.f32.mrf.mxu0
    %2732 = vdwg.mxu0
    %2733 = vmatpush.bf16.msra.mxu0 0
    %2734 = vmatpush.bf16.msra.mxu0 0
    %2735 = vmatpush.bf16.msra.mxu0 0
    %2736 = vmatpush.bf16.msra.mxu0 0
    %2737 = vmatpush.bf16.msra.mxu0 %v2530
    %2738 = vmatpush.bf16.msra.mxu0 %v2514
    %2739 = vmatpush.bf16.msra.mxu0 %v2498
    %2740 = vmatpush.bf16.msra.mxu0 %v2482
    %2741 = vmatmul.bf16.gmra.mxu0 %v2601
    %v2742 = vpop.f32.mrf.mxu0
    %v2743 = vadd.f32 %v2258, %v2742
    %v2744 = vpop.f32.mrf.mxu0
    %2745 = vdwg.mxu0
    %2746 = vmatpush.bf16.msra.mxu0 0
    %2747 = vmatpush.bf16.msra.mxu0 0
    %2748 = vmatpush.bf16.msra.mxu0 0
    %2749 = vmatpush.bf16.msra.mxu0 0
    %2750 = vmatpush.bf16.msra.mxu0 %v2531
    %2751 = vmatpush.bf16.msra.mxu0 %v2515
    %2752 = vmatpush.bf16.msra.mxu0 %v2499
    %2753 = vmatpush.bf16.msra.mxu0 %v2483
    %2754 = vmatmul.bf16.gmra.mxu0 %v2601
    %v2755 = vpop.f32.mrf.mxu0
    %v2756 = vadd.f32 %v2259, %v2755
    %v2757 = vpop.f32.mrf.mxu0
    %2758 = vdwg.mxu0
    %2759 = vmatpush.bf16.msra.mxu0 0
    %2760 = vmatpush.bf16.msra.mxu0 0
    %2761 = vmatpush.bf16.msra.mxu0 0
    %2762 = vmatpush.bf16.msra.mxu0 0
    %2763 = vmatpush.bf16.msra.mxu0 %v2532
    %2764 = vmatpush.bf16.msra.mxu0 %v2516
    %2765 = vmatpush.bf16.msra.mxu0 %v2500
    %2766 = vmatpush.bf16.msra.mxu0 %v2484
    %2767 = vmatmul.bf16.gmra.mxu0 %v2601
    %v2768 = vpop.f32.mrf.mxu0
    %v2769 = vadd.f32 %v2260, %v2768
    %v2770 = vpop.f32.mrf.mxu0
    %2771 = vdwg.mxu0
    %2772 = vmatpush.bf16.msra.mxu0 0
    %2773 = vmatpush.bf16.msra.mxu0 0
    %2774 = vmatpush.bf16.msra.mxu0 0
    %2775 = vmatpush.bf16.msra.mxu0 0
    %2776 = vmatpush.bf16.msra.mxu0 %v2533
    %2777 = vmatpush.bf16.msra.mxu0 %v2517
    %2778 = vmatpush.bf16.msra.mxu0 %v2501
    %2779 = vmatpush.bf16.msra.mxu0 %v2485
    %2780 = vmatmul.bf16.gmra.mxu0 %v2601
    %v2781 = vpop.f32.mrf.mxu0
    %v2782 = vadd.f32 %v2261, %v2781
    %v2783 = vpop.f32.mrf.mxu0
    %2784 = vdwg.mxu0
    %2785 = vmatpush.bf16.msra.mxu0 0
    %2786 = vmatpush.bf16.msra.mxu0 0
    %2787 = vmatpush.bf16.msra.mxu0 0
    %2788 = vmatpush.bf16.msra.mxu0 0
    %2789 = vmatpush.bf16.msra.mxu0 %v2534
    %2790 = vmatpush.bf16.msra.mxu0 %v2518
    %2791 = vmatpush.bf16.msra.mxu0 %v2502
    %2792 = vmatpush.bf16.msra.mxu0 %v2486
    %2793 = vmatmul.bf16.gmra.mxu0 %v2601
    %v2794 = vpop.f32.mrf.mxu0
    %v2795 = vadd.f32 %v2262, %v2794
    %v2796 = vpop.f32.mrf.mxu0
    %2797 = vdwg.mxu0
    %2798 = vmatpush.bf16.msra.mxu0 0
    %2799 = vmatpush.bf16.msra.mxu0 0
    %2800 = vmatpush.bf16.msra.mxu0 0
    %2801 = vmatpush.bf16.msra.mxu0 0
    %2802 = vmatpush.bf16.msra.mxu0 %v2535
    %2803 = vmatpush.bf16.msra.mxu0 %v2519
    %2804 = vmatpush.bf16.msra.mxu0 %v2503
    %2805 = vmatpush.bf16.msra.mxu0 %v2487
    %2806 = vmatmul.bf16.gmra.mxu0 %v2601
    %v2807 = vpop.f32.mrf.mxu0
    %v2808 = vadd.f32 %v2263, %v2807
    %v2809 = vpop.f32.mrf.mxu0
    %2810 = vdwg.mxu0
    %v2811 = vmax.f32 %v2613, 0.0
    %v2812 = vmax.f32 %v2626, 0.0
    %v2813 = vmax.f32 %v2639, 0.0
    %v2814 = vmax.f32 %v2652, 0.0
    %v2815 = vmax.f32 %v2665, 0.0
    %v2816 = vmax.f32 %v2678, 0.0
    %v2817 = vmax.f32 %v2691, 0.0
    %v2818 = vmax.f32 %v2704, 0.0
    %v2819 = vmax.f32 %v2717, 0.0
    %v2820 = vmax.f32 %v2730, 0.0
    %v2821 = vmax.f32 %v2743, 0.0
    %v2822 = vmax.f32 %v2756, 0.0
    %v2823 = vmax.f32 %v2769, 0.0
    %v2824 = vmax.f32 %v2782, 0.0
    %v2825 = vmax.f32 %v2795, 0.0
    %v2826 = vmax.f32 %v2808, 0.0
    %v2827 = vpack.c.bf16 %v2811, %v2811
    %v2828 = vpack.c.bf16 %v2812, %v2812
    %v2829 = vpack.c.bf16 %v2813, %v2813
    %v2830 = vpack.c.bf16 %v2814, %v2814
    %v2831 = vpack.c.bf16 %v2815, %v2815
    %v2832 = vpack.c.bf16 %v2816, %v2816
    %v2833 = vpack.c.bf16 %v2817, %v2817
    %v2834 = vpack.c.bf16 %v2818, %v2818
    %v2835 = vpack.c.bf16 %v2819, %v2819
    %v2836 = vpack.c.bf16 %v2820, %v2820
    %v2837 = vpack.c.bf16 %v2821, %v2821
    %v2838 = vpack.c.bf16 %v2822, %v2822
    %v2839 = vpack.c.bf16 %v2823, %v2823
    %v2840 = vpack.c.bf16 %v2824, %v2824
    %v2841 = vpack.c.bf16 %v2825, %v2825
    %v2842 = vpack.c.bf16 %v2826, %v2826
    %s2843 = scalar_lea.vmem %s7, 1024
    %v2844 = vld [vmem:[%s2843] sm:$0xf]
    %v2845 = vld [vmem:[%s2843 + $0x4] sm:$0xf]
    %v2846 = vld [vmem:[%s2843 + $0x8] sm:$0xf]
    %v2847 = vld [vmem:[%s2843 + $0xc] sm:$0xf]
    %v2848 = vld [vmem:[%s2843 + $0x10] sm:$0xf]
    %v2849 = vld [vmem:[%s2843 + $0x14] sm:$0xf]
    %v2850 = vld [vmem:[%s2843 + $0x18] sm:$0xf]
    %v2851 = vld [vmem:[%s2843 + $0x1c] sm:$0xf]
    %v2852 = vld [vmem:[%s2843 + $0x20] sm:$0xf]
    %v2853 = vld [vmem:[%s2843 + $0x24] sm:$0xf]
    %v2854 = vld [vmem:[%s2843 + $0x28] sm:$0xf]
    %v2855 = vld [vmem:[%s2843 + $0x2c] sm:$0xf]
    %v2856 = vld [vmem:[%s2843 + $0x30] sm:$0xf]
    %v2857 = vld [vmem:[%s2843 + $0x34] sm:$0xf]
    %v2858 = vld [vmem:[%s2843 + $0x38] sm:$0xf]
    %v2859 = vld [vmem:[%s2843 + $0x3c] sm:$0xf]
    %v2860 = vld [vmem:[%s2843 + $0x40] sm:$0xf]
    %v2861 = vld [vmem:[%s2843 + $0x44] sm:$0xf]
    %v2862 = vld [vmem:[%s2843 + $0x48] sm:$0xf]
    %v2863 = vld [vmem:[%s2843 + $0x4c] sm:$0xf]
    %v2864 = vld [vmem:[%s2843 + $0x50] sm:$0xf]
    %v2865 = vld [vmem:[%s2843 + $0x54] sm:$0xf]
    %v2866 = vld [vmem:[%s2843 + $0x58] sm:$0xf]
    %v2867 = vld [vmem:[%s2843 + $0x5c] sm:$0xf]
    %v2868 = vld [vmem:[%s2843 + $0x60] sm:$0xf]
    %v2869 = vld [vmem:[%s2843 + $0x64] sm:$0xf]
    %v2870 = vld [vmem:[%s2843 + $0x68] sm:$0xf]
    %v2871 = vld [vmem:[%s2843 + $0x6c] sm:$0xf]
    %v2872 = vld [vmem:[%s2843 + $0x70] sm:$0xf]
    %v2873 = vld [vmem:[%s2843 + $0x74] sm:$0xf]
    %v2874 = vld [vmem:[%s2843 + $0x78] sm:$0xf]
    %v2875 = vld [vmem:[%s2843 + $0x7c] sm:$0xf]
    %v2876 = vld [vmem:[%s2843 + $0x80] sm:$0xf]
    %v2877 = vld [vmem:[%s2843 + $0x84] sm:$0xf]
    %v2878 = vld [vmem:[%s2843 + $0x88] sm:$0xf]
    %v2879 = vld [vmem:[%s2843 + $0x8c] sm:$0xf]
    %v2880 = vld [vmem:[%s2843 + $0x90] sm:$0xf]
    %v2881 = vld [vmem:[%s2843 + $0x94] sm:$0xf]
    %v2882 = vld [vmem:[%s2843 + $0x98] sm:$0xf]
    %v2883 = vld [vmem:[%s2843 + $0x9c] sm:$0xf]
    %v2884 = vld [vmem:[%s2843 + $0xa0] sm:$0xf]
    %v2885 = vld [vmem:[%s2843 + $0xa4] sm:$0xf]
    %v2886 = vld [vmem:[%s2843 + $0xa8] sm:$0xf]
    %v2887 = vld [vmem:[%s2843 + $0xac] sm:$0xf]
    %v2888 = vld [vmem:[%s2843 + $0xb0] sm:$0xf]
    %v2889 = vld [vmem:[%s2843 + $0xb4] sm:$0xf]
    %v2890 = vld [vmem:[%s2843 + $0xb8] sm:$0xf]
    %v2891 = vld [vmem:[%s2843 + $0xbc] sm:$0xf]
    %v2892 = vld [vmem:[%s2843 + $0xc0] sm:$0xf]
    %v2893 = vld [vmem:[%s2843 + $0xc4] sm:$0xf]
    %v2894 = vld [vmem:[%s2843 + $0xc8] sm:$0xf]
    %v2895 = vld [vmem:[%s2843 + $0xcc] sm:$0xf]
    %v2896 = vld [vmem:[%s2843 + $0xd0] sm:$0xf]
    %v2897 = vld [vmem:[%s2843 + $0xd4] sm:$0xf]
    %v2898 = vld [vmem:[%s2843 + $0xd8] sm:$0xf]
    %v2899 = vld [vmem:[%s2843 + $0xdc] sm:$0xf]
    %v2900 = vld [vmem:[%s2843 + $0xe0] sm:$0xf]
    %v2901 = vld [vmem:[%s2843 + $0xe4] sm:$0xf]
    %v2902 = vld [vmem:[%s2843 + $0xe8] sm:$0xf]
    %v2903 = vld [vmem:[%s2843 + $0xec] sm:$0xf]
    %v2904 = vld [vmem:[%s2843 + $0xf0] sm:$0xf]
    %v2905 = vld [vmem:[%s2843 + $0xf4] sm:$0xf]
    %v2906 = vld [vmem:[%s2843 + $0xf8] sm:$0xf]
    %v2907 = vld [vmem:[%s2843 + $0xfc] sm:$0xf]
    %v2908 = vld [vmem:[%s2843 + $0x100] sm:$0xf]
    %v2909 = vld [vmem:[%s2843 + $0x104] sm:$0xf]
    %v2910 = vld [vmem:[%s2843 + $0x108] sm:$0xf]
    %v2911 = vld [vmem:[%s2843 + $0x10c] sm:$0xf]
    %v2912 = vld [vmem:[%s2843 + $0x110] sm:$0xf]
    %v2913 = vld [vmem:[%s2843 + $0x114] sm:$0xf]
    %v2914 = vld [vmem:[%s2843 + $0x118] sm:$0xf]
    %v2915 = vld [vmem:[%s2843 + $0x11c] sm:$0xf]
    %v2916 = vld [vmem:[%s2843 + $0x120] sm:$0xf]
    %v2917 = vld [vmem:[%s2843 + $0x124] sm:$0xf]
    %v2918 = vld [vmem:[%s2843 + $0x128] sm:$0xf]
    %v2919 = vld [vmem:[%s2843 + $0x12c] sm:$0xf]
    %v2920 = vld [vmem:[%s2843 + $0x130] sm:$0xf]
    %v2921 = vld [vmem:[%s2843 + $0x134] sm:$0xf]
    %v2922 = vld [vmem:[%s2843 + $0x138] sm:$0xf]
    %v2923 = vld [vmem:[%s2843 + $0x13c] sm:$0xf]
    %v2924 = vld [vmem:[%s2843 + $0x140] sm:$0xf]
    %v2925 = vld [vmem:[%s2843 + $0x144] sm:$0xf]
    %v2926 = vld [vmem:[%s2843 + $0x148] sm:$0xf]
    %v2927 = vld [vmem:[%s2843 + $0x14c] sm:$0xf]
    %v2928 = vld [vmem:[%s2843 + $0x150] sm:$0xf]
    %v2929 = vld [vmem:[%s2843 + $0x154] sm:$0xf]
    %v2930 = vld [vmem:[%s2843 + $0x158] sm:$0xf]
    %v2931 = vld [vmem:[%s2843 + $0x15c] sm:$0xf]
    %v2932 = vld [vmem:[%s2843 + $0x160] sm:$0xf]
    %v2933 = vld [vmem:[%s2843 + $0x164] sm:$0xf]
    %v2934 = vld [vmem:[%s2843 + $0x168] sm:$0xf]
    %v2935 = vld [vmem:[%s2843 + $0x16c] sm:$0xf]
    %v2936 = vld [vmem:[%s2843 + $0x170] sm:$0xf]
    %v2937 = vld [vmem:[%s2843 + $0x174] sm:$0xf]
    %v2938 = vld [vmem:[%s2843 + $0x178] sm:$0xf]
    %v2939 = vld [vmem:[%s2843 + $0x17c] sm:$0xf]
    %v2940 = vld [vmem:[%s2843 + $0x180] sm:$0xf]
    %v2941 = vld [vmem:[%s2843 + $0x184] sm:$0xf]
    %v2942 = vld [vmem:[%s2843 + $0x188] sm:$0xf]
    %v2943 = vld [vmem:[%s2843 + $0x18c] sm:$0xf]
    %v2944 = vld [vmem:[%s2843 + $0x190] sm:$0xf]
    %v2945 = vld [vmem:[%s2843 + $0x194] sm:$0xf]
    %v2946 = vld [vmem:[%s2843 + $0x198] sm:$0xf]
    %v2947 = vld [vmem:[%s2843 + $0x19c] sm:$0xf]
    %v2948 = vld [vmem:[%s2843 + $0x1a0] sm:$0xf]
    %v2949 = vld [vmem:[%s2843 + $0x1a4] sm:$0xf]
    %v2950 = vld [vmem:[%s2843 + $0x1a8] sm:$0xf]
    %v2951 = vld [vmem:[%s2843 + $0x1ac] sm:$0xf]
    %v2952 = vld [vmem:[%s2843 + $0x1b0] sm:$0xf]
    %v2953 = vld [vmem:[%s2843 + $0x1b4] sm:$0xf]
    %v2954 = vld [vmem:[%s2843 + $0x1b8] sm:$0xf]
    %v2955 = vld [vmem:[%s2843 + $0x1bc] sm:$0xf]
    %v2956 = vld [vmem:[%s2843 + $0x1c0] sm:$0xf]
    %v2957 = vld [vmem:[%s2843 + $0x1c4] sm:$0xf]
    %v2958 = vld [vmem:[%s2843 + $0x1c8] sm:$0xf]
    %v2959 = vld [vmem:[%s2843 + $0x1cc] sm:$0xf]
    %v2960 = vld [vmem:[%s2843 + $0x1d0] sm:$0xf]
    %v2961 = vld [vmem:[%s2843 + $0x1d4] sm:$0xf]
    %v2962 = vld [vmem:[%s2843 + $0x1d8] sm:$0xf]
    %v2963 = vld [vmem:[%s2843 + $0x1dc] sm:$0xf]
    %v2964 = vld [vmem:[%s2843 + $0x1e0] sm:$0xf]
    %v2965 = vld [vmem:[%s2843 + $0x1e4] sm:$0xf]
    %v2966 = vld [vmem:[%s2843 + $0x1e8] sm:$0xf]
    %v2967 = vld [vmem:[%s2843 + $0x1ec] sm:$0xf]
    %v2968 = vld [vmem:[%s2843 + $0x1f0] sm:$0xf]
    %v2969 = vld [vmem:[%s2843 + $0x1f4] sm:$0xf]
    %v2970 = vld [vmem:[%s2843 + $0x1f8] sm:$0xf]
    %v2971 = vld [vmem:[%s2843 + $0x1fc] sm:$0xf]
    %v2972 = vld [vmem:[%s2843 + $0x200] sm:$0xf]
    %v2973 = vld [vmem:[%s2843 + $0x204] sm:$0xf]
    %v2974 = vld [vmem:[%s2843 + $0x208] sm:$0xf]
    %v2975 = vld [vmem:[%s2843 + $0x20c] sm:$0xf]
    %v2976 = vld [vmem:[%s2843 + $0x210] sm:$0xf]
    %v2977 = vld [vmem:[%s2843 + $0x214] sm:$0xf]
    %v2978 = vld [vmem:[%s2843 + $0x218] sm:$0xf]
    %v2979 = vld [vmem:[%s2843 + $0x21c] sm:$0xf]
    %v2980 = vld [vmem:[%s2843 + $0x220] sm:$0xf]
    %v2981 = vld [vmem:[%s2843 + $0x224] sm:$0xf]
    %v2982 = vld [vmem:[%s2843 + $0x228] sm:$0xf]
    %v2983 = vld [vmem:[%s2843 + $0x22c] sm:$0xf]
    %v2984 = vld [vmem:[%s2843 + $0x230] sm:$0xf]
    %v2985 = vld [vmem:[%s2843 + $0x234] sm:$0xf]
    %v2986 = vld [vmem:[%s2843 + $0x238] sm:$0xf]
    %v2987 = vld [vmem:[%s2843 + $0x23c] sm:$0xf]
    %v2988 = vld [vmem:[%s2843 + $0x240] sm:$0xf]
    %v2989 = vld [vmem:[%s2843 + $0x244] sm:$0xf]
    %v2990 = vld [vmem:[%s2843 + $0x248] sm:$0xf]
    %v2991 = vld [vmem:[%s2843 + $0x24c] sm:$0xf]
    %v2992 = vld [vmem:[%s2843 + $0x250] sm:$0xf]
    %v2993 = vld [vmem:[%s2843 + $0x254] sm:$0xf]
    %v2994 = vld [vmem:[%s2843 + $0x258] sm:$0xf]
    %v2995 = vld [vmem:[%s2843 + $0x25c] sm:$0xf]
    %v2996 = vld [vmem:[%s2843 + $0x260] sm:$0xf]
    %v2997 = vld [vmem:[%s2843 + $0x264] sm:$0xf]
    %v2998 = vld [vmem:[%s2843 + $0x268] sm:$0xf]
    %v2999 = vld [vmem:[%s2843 + $0x26c] sm:$0xf]
    %v3000 = vld [vmem:[%s2843 + $0x270] sm:$0xf]
    %v3001 = vld [vmem:[%s2843 + $0x274] sm:$0xf]
    %v3002 = vld [vmem:[%s2843 + $0x278] sm:$0xf]
    %v3003 = vld [vmem:[%s2843 + $0x27c] sm:$0xf]
    %v3004 = vld [vmem:[%s2843 + $0x280] sm:$0xf]
    %v3005 = vld [vmem:[%s2843 + $0x284] sm:$0xf]
    %v3006 = vld [vmem:[%s2843 + $0x288] sm:$0xf]
    %v3007 = vld [vmem:[%s2843 + $0x28c] sm:$0xf]
    %v3008 = vld [vmem:[%s2843 + $0x290] sm:$0xf]
    %v3009 = vld [vmem:[%s2843 + $0x294] sm:$0xf]
    %v3010 = vld [vmem:[%s2843 + $0x298] sm:$0xf]
    %v3011 = vld [vmem:[%s2843 + $0x29c] sm:$0xf]
    %v3012 = vld [vmem:[%s2843 + $0x2a0] sm:$0xf]
    %v3013 = vld [vmem:[%s2843 + $0x2a4] sm:$0xf]
    %v3014 = vld [vmem:[%s2843 + $0x2a8] sm:$0xf]
    %v3015 = vld [vmem:[%s2843 + $0x2ac] sm:$0xf]
    %v3016 = vld [vmem:[%s2843 + $0x2b0] sm:$0xf]
    %v3017 = vld [vmem:[%s2843 + $0x2b4] sm:$0xf]
    %v3018 = vld [vmem:[%s2843 + $0x2b8] sm:$0xf]
    %v3019 = vld [vmem:[%s2843 + $0x2bc] sm:$0xf]
    %v3020 = vld [vmem:[%s2843 + $0x2c0] sm:$0xf]
    %v3021 = vld [vmem:[%s2843 + $0x2c4] sm:$0xf]
    %v3022 = vld [vmem:[%s2843 + $0x2c8] sm:$0xf]
    %v3023 = vld [vmem:[%s2843 + $0x2cc] sm:$0xf]
    %v3024 = vld [vmem:[%s2843 + $0x2d0] sm:$0xf]
    %v3025 = vld [vmem:[%s2843 + $0x2d4] sm:$0xf]
    %v3026 = vld [vmem:[%s2843 + $0x2d8] sm:$0xf]
    %v3027 = vld [vmem:[%s2843 + $0x2dc] sm:$0xf]
    %v3028 = vld [vmem:[%s2843 + $0x2e0] sm:$0xf]
    %v3029 = vld [vmem:[%s2843 + $0x2e4] sm:$0xf]
    %v3030 = vld [vmem:[%s2843 + $0x2e8] sm:$0xf]
    %v3031 = vld [vmem:[%s2843 + $0x2ec] sm:$0xf]
    %v3032 = vld [vmem:[%s2843 + $0x2f0] sm:$0xf]
    %v3033 = vld [vmem:[%s2843 + $0x2f4] sm:$0xf]
    %v3034 = vld [vmem:[%s2843 + $0x2f8] sm:$0xf]
    %v3035 = vld [vmem:[%s2843 + $0x2fc] sm:$0xf]
    %v3036 = vld [vmem:[%s2843 + $0x300] sm:$0xf]
    %v3037 = vld [vmem:[%s2843 + $0x304] sm:$0xf]
    %v3038 = vld [vmem:[%s2843 + $0x308] sm:$0xf]
    %v3039 = vld [vmem:[%s2843 + $0x30c] sm:$0xf]
    %v3040 = vld [vmem:[%s2843 + $0x310] sm:$0xf]
    %v3041 = vld [vmem:[%s2843 + $0x314] sm:$0xf]
    %v3042 = vld [vmem:[%s2843 + $0x318] sm:$0xf]
    %v3043 = vld [vmem:[%s2843 + $0x31c] sm:$0xf]
    %v3044 = vld [vmem:[%s2843 + $0x320] sm:$0xf]
    %v3045 = vld [vmem:[%s2843 + $0x324] sm:$0xf]
    %v3046 = vld [vmem:[%s2843 + $0x328] sm:$0xf]
    %v3047 = vld [vmem:[%s2843 + $0x32c] sm:$0xf]
    %v3048 = vld [vmem:[%s2843 + $0x330] sm:$0xf]
    %v3049 = vld [vmem:[%s2843 + $0x334] sm:$0xf]
    %v3050 = vld [vmem:[%s2843 + $0x338] sm:$0xf]
    %v3051 = vld [vmem:[%s2843 + $0x33c] sm:$0xf]
    %v3052 = vld [vmem:[%s2843 + $0x340] sm:$0xf]
    %v3053 = vld [vmem:[%s2843 + $0x344] sm:$0xf]
    %v3054 = vld [vmem:[%s2843 + $0x348] sm:$0xf]
    %v3055 = vld [vmem:[%s2843 + $0x34c] sm:$0xf]
    %v3056 = vld [vmem:[%s2843 + $0x350] sm:$0xf]
    %v3057 = vld [vmem:[%s2843 + $0x354] sm:$0xf]
    %v3058 = vld [vmem:[%s2843 + $0x358] sm:$0xf]
    %v3059 = vld [vmem:[%s2843 + $0x35c] sm:$0xf]
    %v3060 = vld [vmem:[%s2843 + $0x360] sm:$0xf]
    %v3061 = vld [vmem:[%s2843 + $0x364] sm:$0xf]
    %v3062 = vld [vmem:[%s2843 + $0x368] sm:$0xf]
    %v3063 = vld [vmem:[%s2843 + $0x36c] sm:$0xf]
    %v3064 = vld [vmem:[%s2843 + $0x370] sm:$0xf]
    %v3065 = vld [vmem:[%s2843 + $0x374] sm:$0xf]
    %v3066 = vld [vmem:[%s2843 + $0x378] sm:$0xf]
    %v3067 = vld [vmem:[%s2843 + $0x37c] sm:$0xf]
    %v3068 = vld [vmem:[%s2843 + $0x380] sm:$0xf]
    %v3069 = vld [vmem:[%s2843 + $0x384] sm:$0xf]
    %v3070 = vld [vmem:[%s2843 + $0x388] sm:$0xf]
    %v3071 = vld [vmem:[%s2843 + $0x38c] sm:$0xf]
    %v3072 = vld [vmem:[%s2843 + $0x390] sm:$0xf]
    %v3073 = vld [vmem:[%s2843 + $0x394] sm:$0xf]
    %v3074 = vld [vmem:[%s2843 + $0x398] sm:$0xf]
    %v3075 = vld [vmem:[%s2843 + $0x39c] sm:$0xf]
    %v3076 = vld [vmem:[%s2843 + $0x3a0] sm:$0xf]
    %v3077 = vld [vmem:[%s2843 + $0x3a4] sm:$0xf]
    %v3078 = vld [vmem:[%s2843 + $0x3a8] sm:$0xf]
    %v3079 = vld [vmem:[%s2843 + $0x3ac] sm:$0xf]
    %v3080 = vld [vmem:[%s2843 + $0x3b0] sm:$0xf]
    %v3081 = vld [vmem:[%s2843 + $0x3b4] sm:$0xf]
    %v3082 = vld [vmem:[%s2843 + $0x3b8] sm:$0xf]
    %v3083 = vld [vmem:[%s2843 + $0x3bc] sm:$0xf]
    %v3084 = vld [vmem:[%s2843 + $0x3c0] sm:$0xf]
    %v3085 = vld [vmem:[%s2843 + $0x3c4] sm:$0xf]
    %v3086 = vld [vmem:[%s2843 + $0x3c8] sm:$0xf]
    %v3087 = vld [vmem:[%s2843 + $0x3cc] sm:$0xf]
    %v3088 = vld [vmem:[%s2843 + $0x3d0] sm:$0xf]
    %v3089 = vld [vmem:[%s2843 + $0x3d4] sm:$0xf]
    %v3090 = vld [vmem:[%s2843 + $0x3d8] sm:$0xf]
    %v3091 = vld [vmem:[%s2843 + $0x3dc] sm:$0xf]
    %v3092 = vld [vmem:[%s2843 + $0x3e0] sm:$0xf]
    %v3093 = vld [vmem:[%s2843 + $0x3e4] sm:$0xf]
    %v3094 = vld [vmem:[%s2843 + $0x3e8] sm:$0xf]
    %v3095 = vld [vmem:[%s2843 + $0x3ec] sm:$0xf]
    %v3096 = vld [vmem:[%s2843 + $0x3f0] sm:$0xf]
    %v3097 = vld [vmem:[%s2843 + $0x3f4] sm:$0xf]
    %v3098 = vld [vmem:[%s2843 + $0x3f8] sm:$0xf]
    %v3099 = vld [vmem:[%s2843 + $0x3fc] sm:$0xf]
    %s3100 = scalar_lea.vmem %s8, 1
    %v3101 = vld [vmem:[%s3100] sm:$0x1]
    %v3103 = vperm.slane %v3101, 0
    %v3361 = vunpack.c.l.b16 %v2844
    %v3362 = vunpack.c.l.b16 %v2845
    %v3363 = vunpack.c.l.b16 %v2846
    %v3364 = vunpack.c.l.b16 %v2847
    %v3365 = vunpack.c.l.b16 %v2848
    %v3366 = vunpack.c.l.b16 %v2849
    %v3367 = vunpack.c.l.b16 %v2850
    %v3368 = vunpack.c.l.b16 %v2851
    %v3369 = vunpack.c.l.b16 %v2852
    %v3370 = vunpack.c.l.b16 %v2853
    %v3371 = vunpack.c.l.b16 %v2854
    %v3372 = vunpack.c.l.b16 %v2855
    %v3373 = vunpack.c.l.b16 %v2856
    %v3374 = vunpack.c.l.b16 %v2857
    %v3375 = vunpack.c.l.b16 %v2858
    %v3376 = vunpack.c.l.b16 %v2859
    %v3377 = vunpack.c.l.b16 %v2860
    %v3378 = vunpack.c.l.b16 %v2861
    %v3379 = vunpack.c.l.b16 %v2862
    %v3380 = vunpack.c.l.b16 %v2863
    %v3381 = vunpack.c.l.b16 %v2864
    %v3382 = vunpack.c.l.b16 %v2865
    %v3383 = vunpack.c.l.b16 %v2866
    %v3384 = vunpack.c.l.b16 %v2867
    %v3385 = vunpack.c.l.b16 %v2868
    %v3386 = vunpack.c.l.b16 %v2869
    %v3387 = vunpack.c.l.b16 %v2870
    %v3388 = vunpack.c.l.b16 %v2871
    %v3389 = vunpack.c.l.b16 %v2872
    %v3390 = vunpack.c.l.b16 %v2873
    %v3391 = vunpack.c.l.b16 %v2874
    %v3392 = vunpack.c.l.b16 %v2875
    %v3393 = vunpack.c.l.b16 %v2876
    %v3394 = vunpack.c.l.b16 %v2877
    %v3395 = vunpack.c.l.b16 %v2878
    %v3396 = vunpack.c.l.b16 %v2879
    %v3397 = vunpack.c.l.b16 %v2880
    %v3398 = vunpack.c.l.b16 %v2881
    %v3399 = vunpack.c.l.b16 %v2882
    %v3400 = vunpack.c.l.b16 %v2883
    %v3401 = vunpack.c.l.b16 %v2884
    %v3402 = vunpack.c.l.b16 %v2885
    %v3403 = vunpack.c.l.b16 %v2886
    %v3404 = vunpack.c.l.b16 %v2887
    %v3405 = vunpack.c.l.b16 %v2888
    %v3406 = vunpack.c.l.b16 %v2889
    %v3407 = vunpack.c.l.b16 %v2890
    %v3408 = vunpack.c.l.b16 %v2891
    %v3409 = vunpack.c.l.b16 %v2892
    %v3410 = vunpack.c.l.b16 %v2893
    %v3411 = vunpack.c.l.b16 %v2894
    %v3412 = vunpack.c.l.b16 %v2895
    %v3413 = vunpack.c.l.b16 %v2896
    %v3414 = vunpack.c.l.b16 %v2897
    %v3415 = vunpack.c.l.b16 %v2898
    %v3416 = vunpack.c.l.b16 %v2899
    %v3417 = vunpack.c.l.b16 %v2900
    %v3418 = vunpack.c.l.b16 %v2901
    %v3419 = vunpack.c.l.b16 %v2902
    %v3420 = vunpack.c.l.b16 %v2903
    %v3421 = vunpack.c.l.b16 %v2904
    %v3422 = vunpack.c.l.b16 %v2905
    %v3423 = vunpack.c.l.b16 %v2906
    %v3424 = vunpack.c.l.b16 %v2907
    %v3425 = vunpack.c.l.b16 %v2908
    %v3426 = vunpack.c.l.b16 %v2909
    %v3427 = vunpack.c.l.b16 %v2910
    %v3428 = vunpack.c.l.b16 %v2911
    %v3429 = vunpack.c.l.b16 %v2912
    %v3430 = vunpack.c.l.b16 %v2913
    %v3431 = vunpack.c.l.b16 %v2914
    %v3432 = vunpack.c.l.b16 %v2915
    %v3433 = vunpack.c.l.b16 %v2916
    %v3434 = vunpack.c.l.b16 %v2917
    %v3435 = vunpack.c.l.b16 %v2918
    %v3436 = vunpack.c.l.b16 %v2919
    %v3437 = vunpack.c.l.b16 %v2920
    %v3438 = vunpack.c.l.b16 %v2921
    %v3439 = vunpack.c.l.b16 %v2922
    %v3440 = vunpack.c.l.b16 %v2923
    %v3441 = vunpack.c.l.b16 %v2924
    %v3442 = vunpack.c.l.b16 %v2925
    %v3443 = vunpack.c.l.b16 %v2926
    %v3444 = vunpack.c.l.b16 %v2927
    %v3445 = vunpack.c.l.b16 %v2928
    %v3446 = vunpack.c.l.b16 %v2929
    %v3447 = vunpack.c.l.b16 %v2930
    %v3448 = vunpack.c.l.b16 %v2931
    %v3449 = vunpack.c.l.b16 %v2932
    %v3450 = vunpack.c.l.b16 %v2933
    %v3451 = vunpack.c.l.b16 %v2934
    %v3452 = vunpack.c.l.b16 %v2935
    %v3453 = vunpack.c.l.b16 %v2936
    %v3454 = vunpack.c.l.b16 %v2937
    %v3455 = vunpack.c.l.b16 %v2938
    %v3456 = vunpack.c.l.b16 %v2939
    %v3457 = vunpack.c.l.b16 %v2940
    %v3458 = vunpack.c.l.b16 %v2941
    %v3459 = vunpack.c.l.b16 %v2942
    %v3460 = vunpack.c.l.b16 %v2943
    %v3461 = vunpack.c.l.b16 %v2944
    %v3462 = vunpack.c.l.b16 %v2945
    %v3463 = vunpack.c.l.b16 %v2946
    %v3464 = vunpack.c.l.b16 %v2947
    %v3465 = vunpack.c.l.b16 %v2948
    %v3466 = vunpack.c.l.b16 %v2949
    %v3467 = vunpack.c.l.b16 %v2950
    %v3468 = vunpack.c.l.b16 %v2951
    %v3469 = vunpack.c.l.b16 %v2952
    %v3470 = vunpack.c.l.b16 %v2953
    %v3471 = vunpack.c.l.b16 %v2954
    %v3472 = vunpack.c.l.b16 %v2955
    %v3473 = vunpack.c.l.b16 %v2956
    %v3474 = vunpack.c.l.b16 %v2957
    %v3475 = vunpack.c.l.b16 %v2958
    %v3476 = vunpack.c.l.b16 %v2959
    %v3477 = vunpack.c.l.b16 %v2960
    %v3478 = vunpack.c.l.b16 %v2961
    %v3479 = vunpack.c.l.b16 %v2962
    %v3480 = vunpack.c.l.b16 %v2963
    %v3481 = vunpack.c.l.b16 %v2964
    %v3482 = vunpack.c.l.b16 %v2965
    %v3483 = vunpack.c.l.b16 %v2966
    %v3484 = vunpack.c.l.b16 %v2967
    %v3485 = vunpack.c.l.b16 %v2968
    %v3486 = vunpack.c.l.b16 %v2969
    %v3487 = vunpack.c.l.b16 %v2970
    %v3488 = vunpack.c.l.b16 %v2971
    %v3489 = vunpack.c.l.b16 %v2972
    %v3490 = vunpack.c.l.b16 %v2973
    %v3491 = vunpack.c.l.b16 %v2974
    %v3492 = vunpack.c.l.b16 %v2975
    %v3493 = vunpack.c.l.b16 %v2976
    %v3494 = vunpack.c.l.b16 %v2977
    %v3495 = vunpack.c.l.b16 %v2978
    %v3496 = vunpack.c.l.b16 %v2979
    %v3497 = vunpack.c.l.b16 %v2980
    %v3498 = vunpack.c.l.b16 %v2981
    %v3499 = vunpack.c.l.b16 %v2982
    %v3500 = vunpack.c.l.b16 %v2983
    %v3501 = vunpack.c.l.b16 %v2984
    %v3502 = vunpack.c.l.b16 %v2985
    %v3503 = vunpack.c.l.b16 %v2986
    %v3504 = vunpack.c.l.b16 %v2987
    %v3505 = vunpack.c.l.b16 %v2988
    %v3506 = vunpack.c.l.b16 %v2989
    %v3507 = vunpack.c.l.b16 %v2990
    %v3508 = vunpack.c.l.b16 %v2991
    %v3509 = vunpack.c.l.b16 %v2992
    %v3510 = vunpack.c.l.b16 %v2993
    %v3511 = vunpack.c.l.b16 %v2994
    %v3512 = vunpack.c.l.b16 %v2995
    %v3513 = vunpack.c.l.b16 %v2996
    %v3514 = vunpack.c.l.b16 %v2997
    %v3515 = vunpack.c.l.b16 %v2998
    %v3516 = vunpack.c.l.b16 %v2999
    %v3517 = vunpack.c.l.b16 %v3000
    %v3518 = vunpack.c.l.b16 %v3001
    %v3519 = vunpack.c.l.b16 %v3002
    %v3520 = vunpack.c.l.b16 %v3003
    %v3521 = vunpack.c.l.b16 %v3004
    %v3522 = vunpack.c.l.b16 %v3005
    %v3523 = vunpack.c.l.b16 %v3006
    %v3524 = vunpack.c.l.b16 %v3007
    %v3525 = vunpack.c.l.b16 %v3008
    %v3526 = vunpack.c.l.b16 %v3009
    %v3527 = vunpack.c.l.b16 %v3010
    %v3528 = vunpack.c.l.b16 %v3011
    %v3529 = vunpack.c.l.b16 %v3012
    %v3530 = vunpack.c.l.b16 %v3013
    %v3531 = vunpack.c.l.b16 %v3014
    %v3532 = vunpack.c.l.b16 %v3015
    %v3533 = vunpack.c.l.b16 %v3016
    %v3534 = vunpack.c.l.b16 %v3017
    %v3535 = vunpack.c.l.b16 %v3018
    %v3536 = vunpack.c.l.b16 %v3019
    %v3537 = vunpack.c.l.b16 %v3020
    %v3538 = vunpack.c.l.b16 %v3021
    %v3539 = vunpack.c.l.b16 %v3022
    %v3540 = vunpack.c.l.b16 %v3023
    %v3541 = vunpack.c.l.b16 %v3024
    %v3542 = vunpack.c.l.b16 %v3025
    %v3543 = vunpack.c.l.b16 %v3026
    %v3544 = vunpack.c.l.b16 %v3027
    %v3545 = vunpack.c.l.b16 %v3028
    %v3546 = vunpack.c.l.b16 %v3029
    %v3547 = vunpack.c.l.b16 %v3030
    %v3548 = vunpack.c.l.b16 %v3031
    %v3549 = vunpack.c.l.b16 %v3032
    %v3550 = vunpack.c.l.b16 %v3033
    %v3551 = vunpack.c.l.b16 %v3034
    %v3552 = vunpack.c.l.b16 %v3035
    %v3553 = vunpack.c.l.b16 %v3036
    %v3554 = vunpack.c.l.b16 %v3037
    %v3555 = vunpack.c.l.b16 %v3038
    %v3556 = vunpack.c.l.b16 %v3039
    %v3557 = vunpack.c.l.b16 %v3040
    %v3558 = vunpack.c.l.b16 %v3041
    %v3559 = vunpack.c.l.b16 %v3042
    %v3560 = vunpack.c.l.b16 %v3043
    %v3561 = vunpack.c.l.b16 %v3044
    %v3562 = vunpack.c.l.b16 %v3045
    %v3563 = vunpack.c.l.b16 %v3046
    %v3564 = vunpack.c.l.b16 %v3047
    %v3565 = vunpack.c.l.b16 %v3048
    %v3566 = vunpack.c.l.b16 %v3049
    %v3567 = vunpack.c.l.b16 %v3050
    %v3568 = vunpack.c.l.b16 %v3051
    %v3569 = vunpack.c.l.b16 %v3052
    %v3570 = vunpack.c.l.b16 %v3053
    %v3571 = vunpack.c.l.b16 %v3054
    %v3572 = vunpack.c.l.b16 %v3055
    %v3573 = vunpack.c.l.b16 %v3056
    %v3574 = vunpack.c.l.b16 %v3057
    %v3575 = vunpack.c.l.b16 %v3058
    %v3576 = vunpack.c.l.b16 %v3059
    %v3577 = vunpack.c.l.b16 %v3060
    %v3578 = vunpack.c.l.b16 %v3061
    %v3579 = vunpack.c.l.b16 %v3062
    %v3580 = vunpack.c.l.b16 %v3063
    %v3581 = vunpack.c.l.b16 %v3064
    %v3582 = vunpack.c.l.b16 %v3065
    %v3583 = vunpack.c.l.b16 %v3066
    %v3584 = vunpack.c.l.b16 %v3067
    %v3585 = vunpack.c.l.b16 %v3068
    %v3586 = vunpack.c.l.b16 %v3069
    %v3587 = vunpack.c.l.b16 %v3070
    %v3588 = vunpack.c.l.b16 %v3071
    %v3589 = vunpack.c.l.b16 %v3072
    %v3590 = vunpack.c.l.b16 %v3073
    %v3591 = vunpack.c.l.b16 %v3074
    %v3592 = vunpack.c.l.b16 %v3075
    %v3593 = vunpack.c.l.b16 %v3076
    %v3594 = vunpack.c.l.b16 %v3077
    %v3595 = vunpack.c.l.b16 %v3078
    %v3596 = vunpack.c.l.b16 %v3079
    %v3597 = vunpack.c.l.b16 %v3080
    %v3598 = vunpack.c.l.b16 %v3081
    %v3599 = vunpack.c.l.b16 %v3082
    %v3600 = vunpack.c.l.b16 %v3083
    %v3601 = vunpack.c.l.b16 %v3084
    %v3602 = vunpack.c.l.b16 %v3085
    %v3603 = vunpack.c.l.b16 %v3086
    %v3604 = vunpack.c.l.b16 %v3087
    %v3605 = vunpack.c.l.b16 %v3088
    %v3606 = vunpack.c.l.b16 %v3089
    %v3607 = vunpack.c.l.b16 %v3090
    %v3608 = vunpack.c.l.b16 %v3091
    %v3609 = vunpack.c.l.b16 %v3092
    %v3610 = vunpack.c.l.b16 %v3093
    %v3611 = vunpack.c.l.b16 %v3094
    %v3612 = vunpack.c.l.b16 %v3095
    %v3613 = vunpack.c.l.b16 %v3096
    %v3614 = vunpack.c.l.b16 %v3097
    %v3615 = vunpack.c.l.b16 %v3098
    %v3616 = vunpack.c.l.b16 %v3099
    %v3617 = vpack.c.b16 %v3362, %v3361
    %v3618 = vpack.c.b16 %v3364, %v3363
    %v3619 = vpack.c.b16 %v3366, %v3365
    %v3620 = vpack.c.b16 %v3368, %v3367
    %v3621 = vpack.c.b16 %v3370, %v3369
    %v3622 = vpack.c.b16 %v3372, %v3371
    %v3623 = vpack.c.b16 %v3374, %v3373
    %v3624 = vpack.c.b16 %v3376, %v3375
    %v3625 = vpack.c.b16 %v3378, %v3377
    %v3626 = vpack.c.b16 %v3380, %v3379
    %v3627 = vpack.c.b16 %v3382, %v3381
    %v3628 = vpack.c.b16 %v3384, %v3383
    %v3629 = vpack.c.b16 %v3386, %v3385
    %v3630 = vpack.c.b16 %v3388, %v3387
    %v3631 = vpack.c.b16 %v3390, %v3389
    %v3632 = vpack.c.b16 %v3392, %v3391
    %v3633 = vpack.c.b16 %v3394, %v3393
    %v3634 = vpack.c.b16 %v3396, %v3395
    %v3635 = vpack.c.b16 %v3398, %v3397
    %v3636 = vpack.c.b16 %v3400, %v3399
    %v3637 = vpack.c.b16 %v3402, %v3401
    %v3638 = vpack.c.b16 %v3404, %v3403
    %v3639 = vpack.c.b16 %v3406, %v3405
    %v3640 = vpack.c.b16 %v3408, %v3407
    %v3641 = vpack.c.b16 %v3410, %v3409
    %v3642 = vpack.c.b16 %v3412, %v3411
    %v3643 = vpack.c.b16 %v3414, %v3413
    %v3644 = vpack.c.b16 %v3416, %v3415
    %v3645 = vpack.c.b16 %v3418, %v3417
    %v3646 = vpack.c.b16 %v3420, %v3419
    %v3647 = vpack.c.b16 %v3422, %v3421
    %v3648 = vpack.c.b16 %v3424, %v3423
    %v3649 = vpack.c.b16 %v3426, %v3425
    %v3650 = vpack.c.b16 %v3428, %v3427
    %v3651 = vpack.c.b16 %v3430, %v3429
    %v3652 = vpack.c.b16 %v3432, %v3431
    %v3653 = vpack.c.b16 %v3434, %v3433
    %v3654 = vpack.c.b16 %v3436, %v3435
    %v3655 = vpack.c.b16 %v3438, %v3437
    %v3656 = vpack.c.b16 %v3440, %v3439
    %v3657 = vpack.c.b16 %v3442, %v3441
    %v3658 = vpack.c.b16 %v3444, %v3443
    %v3659 = vpack.c.b16 %v3446, %v3445
    %v3660 = vpack.c.b16 %v3448, %v3447
    %v3661 = vpack.c.b16 %v3450, %v3449
    %v3662 = vpack.c.b16 %v3452, %v3451
    %v3663 = vpack.c.b16 %v3454, %v3453
    %v3664 = vpack.c.b16 %v3456, %v3455
    %v3665 = vpack.c.b16 %v3458, %v3457
    %v3666 = vpack.c.b16 %v3460, %v3459
    %v3667 = vpack.c.b16 %v3462, %v3461
    %v3668 = vpack.c.b16 %v3464, %v3463
    %v3669 = vpack.c.b16 %v3466, %v3465
    %v3670 = vpack.c.b16 %v3468, %v3467
    %v3671 = vpack.c.b16 %v3470, %v3469
    %v3672 = vpack.c.b16 %v3472, %v3471
    %v3673 = vpack.c.b16 %v3474, %v3473
    %v3674 = vpack.c.b16 %v3476, %v3475
    %v3675 = vpack.c.b16 %v3478, %v3477
    %v3676 = vpack.c.b16 %v3480, %v3479
    %v3677 = vpack.c.b16 %v3482, %v3481
    %v3678 = vpack.c.b16 %v3484, %v3483
    %v3679 = vpack.c.b16 %v3486, %v3485
    %v3680 = vpack.c.b16 %v3488, %v3487
    %v3681 = vpack.c.b16 %v3490, %v3489
    %v3682 = vpack.c.b16 %v3492, %v3491
    %v3683 = vpack.c.b16 %v3494, %v3493
    %v3684 = vpack.c.b16 %v3496, %v3495
    %v3685 = vpack.c.b16 %v3498, %v3497
    %v3686 = vpack.c.b16 %v3500, %v3499
    %v3687 = vpack.c.b16 %v3502, %v3501
    %v3688 = vpack.c.b16 %v3504, %v3503
    %v3689 = vpack.c.b16 %v3506, %v3505
    %v3690 = vpack.c.b16 %v3508, %v3507
    %v3691 = vpack.c.b16 %v3510, %v3509
    %v3692 = vpack.c.b16 %v3512, %v3511
    %v3693 = vpack.c.b16 %v3514, %v3513
    %v3694 = vpack.c.b16 %v3516, %v3515
    %v3695 = vpack.c.b16 %v3518, %v3517
    %v3696 = vpack.c.b16 %v3520, %v3519
    %v3697 = vpack.c.b16 %v3522, %v3521
    %v3698 = vpack.c.b16 %v3524, %v3523
    %v3699 = vpack.c.b16 %v3526, %v3525
    %v3700 = vpack.c.b16 %v3528, %v3527
    %v3701 = vpack.c.b16 %v3530, %v3529
    %v3702 = vpack.c.b16 %v3532, %v3531
    %v3703 = vpack.c.b16 %v3534, %v3533
    %v3704 = vpack.c.b16 %v3536, %v3535
    %v3705 = vpack.c.b16 %v3538, %v3537
    %v3706 = vpack.c.b16 %v3540, %v3539
    %v3707 = vpack.c.b16 %v3542, %v3541
    %v3708 = vpack.c.b16 %v3544, %v3543
    %v3709 = vpack.c.b16 %v3546, %v3545
    %v3710 = vpack.c.b16 %v3548, %v3547
    %v3711 = vpack.c.b16 %v3550, %v3549
    %v3712 = vpack.c.b16 %v3552, %v3551
    %v3713 = vpack.c.b16 %v3554, %v3553
    %v3714 = vpack.c.b16 %v3556, %v3555
    %v3715 = vpack.c.b16 %v3558, %v3557
    %v3716 = vpack.c.b16 %v3560, %v3559
    %v3717 = vpack.c.b16 %v3562, %v3561
    %v3718 = vpack.c.b16 %v3564, %v3563
    %v3719 = vpack.c.b16 %v3566, %v3565
    %v3720 = vpack.c.b16 %v3568, %v3567
    %v3721 = vpack.c.b16 %v3570, %v3569
    %v3722 = vpack.c.b16 %v3572, %v3571
    %v3723 = vpack.c.b16 %v3574, %v3573
    %v3724 = vpack.c.b16 %v3576, %v3575
    %v3725 = vpack.c.b16 %v3578, %v3577
    %v3726 = vpack.c.b16 %v3580, %v3579
    %v3727 = vpack.c.b16 %v3582, %v3581
    %v3728 = vpack.c.b16 %v3584, %v3583
    %v3729 = vpack.c.b16 %v3586, %v3585
    %v3730 = vpack.c.b16 %v3588, %v3587
    %v3731 = vpack.c.b16 %v3590, %v3589
    %v3732 = vpack.c.b16 %v3592, %v3591
    %v3733 = vpack.c.b16 %v3594, %v3593
    %v3734 = vpack.c.b16 %v3596, %v3595
    %v3735 = vpack.c.b16 %v3598, %v3597
    %v3736 = vpack.c.b16 %v3600, %v3599
    %v3737 = vpack.c.b16 %v3602, %v3601
    %v3738 = vpack.c.b16 %v3604, %v3603
    %v3739 = vpack.c.b16 %v3606, %v3605
    %v3740 = vpack.c.b16 %v3608, %v3607
    %v3741 = vpack.c.b16 %v3610, %v3609
    %v3742 = vpack.c.b16 %v3612, %v3611
    %v3743 = vpack.c.b16 %v3614, %v3613
    %v3744 = vpack.c.b16 %v3616, %v3615
    %3873 = vmatpush.bf16.msra.mxu0 %v3624
    %3874 = vmatpush.bf16.msra.mxu0 %v3623
    %3875 = vmatpush.bf16.msra.mxu0 %v3622
    %3876 = vmatpush.bf16.msra.mxu0 %v3621
    %3877 = vmatpush.bf16.msra.mxu0 %v3620
    %3878 = vmatpush.bf16.msra.mxu0 %v3619
    %3879 = vmatpush.bf16.msra.mxu0 %v3618
    %3880 = vmatpush.bf16.msra.mxu0 %v3617
    %3881 = vmatmul.bf16.gmra.mxu0 %v2827
    %v3882 = vpop.f32.mrf.mxu0
    %v3883 = vadd.f32 %v3103, %v3882
    %v3884 = vpop.f32.mrf.mxu0
    %3885 = vdwg.mxu0
    %3886 = vmatpush.bf16.msra.mxu0 %v3632
    %3887 = vmatpush.bf16.msra.mxu0 %v3631
    %3888 = vmatpush.bf16.msra.mxu0 %v3630
    %3889 = vmatpush.bf16.msra.mxu0 %v3629
    %3890 = vmatpush.bf16.msra.mxu0 %v3628
    %3891 = vmatpush.bf16.msra.mxu0 %v3627
    %3892 = vmatpush.bf16.msra.mxu0 %v3626
    %3893 = vmatpush.bf16.msra.mxu0 %v3625
    %3894 = vmatmul.bf16.gmra.mxu0 %v2828
    %v3895 = vpop.f32.mrf.mxu0
    %v3896 = vadd.f32 %v3883, %v3895
    %v3897 = vpop.f32.mrf.mxu0
    %3898 = vdwg.mxu0
    %3899 = vmatpush.bf16.msra.mxu0 %v3640
    %3900 = vmatpush.bf16.msra.mxu0 %v3639
    %3901 = vmatpush.bf16.msra.mxu0 %v3638
    %3902 = vmatpush.bf16.msra.mxu0 %v3637
    %3903 = vmatpush.bf16.msra.mxu0 %v3636
    %3904 = vmatpush.bf16.msra.mxu0 %v3635
    %3905 = vmatpush.bf16.msra.mxu0 %v3634
    %3906 = vmatpush.bf16.msra.mxu0 %v3633
    %3907 = vmatmul.bf16.gmra.mxu0 %v2829
    %v3908 = vpop.f32.mrf.mxu0
    %v3909 = vadd.f32 %v3896, %v3908
    %v3910 = vpop.f32.mrf.mxu0
    %3911 = vdwg.mxu0
    %3912 = vmatpush.bf16.msra.mxu0 %v3648
    %3913 = vmatpush.bf16.msra.mxu0 %v3647
    %3914 = vmatpush.bf16.msra.mxu0 %v3646
    %3915 = vmatpush.bf16.msra.mxu0 %v3645
    %3916 = vmatpush.bf16.msra.mxu0 %v3644
    %3917 = vmatpush.bf16.msra.mxu0 %v3643
    %3918 = vmatpush.bf16.msra.mxu0 %v3642
    %3919 = vmatpush.bf16.msra.mxu0 %v3641
    %3920 = vmatmul.bf16.gmra.mxu0 %v2830
    %v3921 = vpop.f32.mrf.mxu0
    %v3922 = vadd.f32 %v3909, %v3921
    %v3923 = vpop.f32.mrf.mxu0
    %3924 = vdwg.mxu0
    %3925 = vmatpush.bf16.msra.mxu0 %v3656
    %3926 = vmatpush.bf16.msra.mxu0 %v3655
    %3927 = vmatpush.bf16.msra.mxu0 %v3654
    %3928 = vmatpush.bf16.msra.mxu0 %v3653
    %3929 = vmatpush.bf16.msra.mxu0 %v3652
    %3930 = vmatpush.bf16.msra.mxu0 %v3651
    %3931 = vmatpush.bf16.msra.mxu0 %v3650
    %3932 = vmatpush.bf16.msra.mxu0 %v3649
    %3933 = vmatmul.bf16.gmra.mxu0 %v2831
    %v3934 = vpop.f32.mrf.mxu0
    %v3935 = vadd.f32 %v3922, %v3934
    %v3936 = vpop.f32.mrf.mxu0
    %3937 = vdwg.mxu0
    %3938 = vmatpush.bf16.msra.mxu0 %v3664
    %3939 = vmatpush.bf16.msra.mxu0 %v3663
    %3940 = vmatpush.bf16.msra.mxu0 %v3662
    %3941 = vmatpush.bf16.msra.mxu0 %v3661
    %3942 = vmatpush.bf16.msra.mxu0 %v3660
    %3943 = vmatpush.bf16.msra.mxu0 %v3659
    %3944 = vmatpush.bf16.msra.mxu0 %v3658
    %3945 = vmatpush.bf16.msra.mxu0 %v3657
    %3946 = vmatmul.bf16.gmra.mxu0 %v2832
    %v3947 = vpop.f32.mrf.mxu0
    %v3948 = vadd.f32 %v3935, %v3947
    %v3949 = vpop.f32.mrf.mxu0
    %3950 = vdwg.mxu0
    %3951 = vmatpush.bf16.msra.mxu0 %v3672
    %3952 = vmatpush.bf16.msra.mxu0 %v3671
    %3953 = vmatpush.bf16.msra.mxu0 %v3670
    %3954 = vmatpush.bf16.msra.mxu0 %v3669
    %3955 = vmatpush.bf16.msra.mxu0 %v3668
    %3956 = vmatpush.bf16.msra.mxu0 %v3667
    %3957 = vmatpush.bf16.msra.mxu0 %v3666
    %3958 = vmatpush.bf16.msra.mxu0 %v3665
    %3959 = vmatmul.bf16.gmra.mxu0 %v2833
    %v3960 = vpop.f32.mrf.mxu0
    %v3961 = vadd.f32 %v3948, %v3960
    %v3962 = vpop.f32.mrf.mxu0
    %3963 = vdwg.mxu0
    %3964 = vmatpush.bf16.msra.mxu0 %v3680
    %3965 = vmatpush.bf16.msra.mxu0 %v3679
    %3966 = vmatpush.bf16.msra.mxu0 %v3678
    %3967 = vmatpush.bf16.msra.mxu0 %v3677
    %3968 = vmatpush.bf16.msra.mxu0 %v3676
    %3969 = vmatpush.bf16.msra.mxu0 %v3675
    %3970 = vmatpush.bf16.msra.mxu0 %v3674
    %3971 = vmatpush.bf16.msra.mxu0 %v3673
    %3972 = vmatmul.bf16.gmra.mxu0 %v2834
    %v3973 = vpop.f32.mrf.mxu0
    %v3974 = vadd.f32 %v3961, %v3973
    %v3975 = vpop.f32.mrf.mxu0
    %3976 = vdwg.mxu0
    %3977 = vmatpush.bf16.msra.mxu0 %v3688
    %3978 = vmatpush.bf16.msra.mxu0 %v3687
    %3979 = vmatpush.bf16.msra.mxu0 %v3686
    %3980 = vmatpush.bf16.msra.mxu0 %v3685
    %3981 = vmatpush.bf16.msra.mxu0 %v3684
    %3982 = vmatpush.bf16.msra.mxu0 %v3683
    %3983 = vmatpush.bf16.msra.mxu0 %v3682
    %3984 = vmatpush.bf16.msra.mxu0 %v3681
    %3985 = vmatmul.bf16.gmra.mxu0 %v2835
    %v3986 = vpop.f32.mrf.mxu0
    %v3987 = vadd.f32 %v3974, %v3986
    %v3988 = vpop.f32.mrf.mxu0
    %3989 = vdwg.mxu0
    %3990 = vmatpush.bf16.msra.mxu0 %v3696
    %3991 = vmatpush.bf16.msra.mxu0 %v3695
    %3992 = vmatpush.bf16.msra.mxu0 %v3694
    %3993 = vmatpush.bf16.msra.mxu0 %v3693
    %3994 = vmatpush.bf16.msra.mxu0 %v3692
    %3995 = vmatpush.bf16.msra.mxu0 %v3691
    %3996 = vmatpush.bf16.msra.mxu0 %v3690
    %3997 = vmatpush.bf16.msra.mxu0 %v3689
    %3998 = vmatmul.bf16.gmra.mxu0 %v2836
    %v3999 = vpop.f32.mrf.mxu0
    %v4000 = vadd.f32 %v3987, %v3999
    %v4001 = vpop.f32.mrf.mxu0
    %4002 = vdwg.mxu0
    %4003 = vmatpush.bf16.msra.mxu0 %v3704
    %4004 = vmatpush.bf16.msra.mxu0 %v3703
    %4005 = vmatpush.bf16.msra.mxu0 %v3702
    %4006 = vmatpush.bf16.msra.mxu0 %v3701
    %4007 = vmatpush.bf16.msra.mxu0 %v3700
    %4008 = vmatpush.bf16.msra.mxu0 %v3699
    %4009 = vmatpush.bf16.msra.mxu0 %v3698
    %4010 = vmatpush.bf16.msra.mxu0 %v3697
    %4011 = vmatmul.bf16.gmra.mxu0 %v2837
    %v4012 = vpop.f32.mrf.mxu0
    %v4013 = vadd.f32 %v4000, %v4012
    %v4014 = vpop.f32.mrf.mxu0
    %4015 = vdwg.mxu0
    %4016 = vmatpush.bf16.msra.mxu0 %v3712
    %4017 = vmatpush.bf16.msra.mxu0 %v3711
    %4018 = vmatpush.bf16.msra.mxu0 %v3710
    %4019 = vmatpush.bf16.msra.mxu0 %v3709
    %4020 = vmatpush.bf16.msra.mxu0 %v3708
    %4021 = vmatpush.bf16.msra.mxu0 %v3707
    %4022 = vmatpush.bf16.msra.mxu0 %v3706
    %4023 = vmatpush.bf16.msra.mxu0 %v3705
    %4024 = vmatmul.bf16.gmra.mxu0 %v2838
    %v4025 = vpop.f32.mrf.mxu0
    %v4026 = vadd.f32 %v4013, %v4025
    %v4027 = vpop.f32.mrf.mxu0
    %4028 = vdwg.mxu0
    %4029 = vmatpush.bf16.msra.mxu0 %v3720
    %4030 = vmatpush.bf16.msra.mxu0 %v3719
    %4031 = vmatpush.bf16.msra.mxu0 %v3718
    %4032 = vmatpush.bf16.msra.mxu0 %v3717
    %4033 = vmatpush.bf16.msra.mxu0 %v3716
    %4034 = vmatpush.bf16.msra.mxu0 %v3715
    %4035 = vmatpush.bf16.msra.mxu0 %v3714
    %4036 = vmatpush.bf16.msra.mxu0 %v3713
    %4037 = vmatmul.bf16.gmra.mxu0 %v2839
    %v4038 = vpop.f32.mrf.mxu0
    %v4039 = vadd.f32 %v4026, %v4038
    %v4040 = vpop.f32.mrf.mxu0
    %4041 = vdwg.mxu0
    %4042 = vmatpush.bf16.msra.mxu0 %v3728
    %4043 = vmatpush.bf16.msra.mxu0 %v3727
    %4044 = vmatpush.bf16.msra.mxu0 %v3726
    %4045 = vmatpush.bf16.msra.mxu0 %v3725
    %4046 = vmatpush.bf16.msra.mxu0 %v3724
    %4047 = vmatpush.bf16.msra.mxu0 %v3723
    %4048 = vmatpush.bf16.msra.mxu0 %v3722
    %4049 = vmatpush.bf16.msra.mxu0 %v3721
    %4050 = vmatmul.bf16.gmra.mxu0 %v2840
    %v4051 = vpop.f32.mrf.mxu0
    %v4052 = vadd.f32 %v4039, %v4051
    %v4053 = vpop.f32.mrf.mxu0
    %4054 = vdwg.mxu0
    %4055 = vmatpush.bf16.msra.mxu0 %v3736
    %4056 = vmatpush.bf16.msra.mxu0 %v3735
    %4057 = vmatpush.bf16.msra.mxu0 %v3734
    %4058 = vmatpush.bf16.msra.mxu0 %v3733
    %4059 = vmatpush.bf16.msra.mxu0 %v3732
    %4060 = vmatpush.bf16.msra.mxu0 %v3731
    %4061 = vmatpush.bf16.msra.mxu0 %v3730
    %4062 = vmatpush.bf16.msra.mxu0 %v3729
    %4063 = vmatmul.bf16.gmra.mxu0 %v2841
    %v4064 = vpop.f32.mrf.mxu0
    %v4065 = vadd.f32 %v4052, %v4064
    %v4066 = vpop.f32.mrf.mxu0
    %4067 = vdwg.mxu0
    %4068 = vmatpush.bf16.msra.mxu0 %v3744
    %4069 = vmatpush.bf16.msra.mxu0 %v3743
    %4070 = vmatpush.bf16.msra.mxu0 %v3742
    %4071 = vmatpush.bf16.msra.mxu0 %v3741
    %4072 = vmatpush.bf16.msra.mxu0 %v3740
    %4073 = vmatpush.bf16.msra.mxu0 %v3739
    %4074 = vmatpush.bf16.msra.mxu0 %v3738
    %4075 = vmatpush.bf16.msra.mxu0 %v3737
    %4076 = vmatmul.bf16.gmra.mxu0 %v2842
    %v4077 = vpop.f32.mrf.mxu0
    %v4078 = vadd.f32 %v4065, %v4077
    %v4079 = vpop.f32.mrf.mxu0
    %4080 = vdwg.mxu0
    %v4081 = vadd.f32 %v2176, %v4078
    %s4082 = scalar_lea.vmem %s11, 1
    %v4083 = vld [vmem:[%s4082] sm:$0x1]
    %s4084 = scalar_lea.vmem %s12, 1
    %v4085 = vld [vmem:[%s4084] sm:$0x1]
    %v4086 = vsel %vm104, %v4081, 0.0
    %4087 = vadd.xlane.f32.xlu0 %v4086
    %v4088 = vpop.xlane.xlu0 %4087
    %v4089 = vmul.f32 %v4088, %v139
    %v4090 = vmul.f32 %v4081, %v4081
    %v4091 = vsel %vm104, %v4090, 0.0
    %4092 = vadd.xlane.f32.xlu0 %v4091
    %v4093 = vpop.xlane.xlu0 %4092
    %v4094 = vmul.f32 %v4093, %v139
    %v4095 = vmul.f32 %v4089, %v4089
    %v4096 = vsub.f32 %v4094, %v4095
    %v4097 = vsub.f32 %v4081, %v4089
    %v4098 = vadd.f32 %v4096, 1e-05
    %v4099 = vrsqrt.pop %v4098
    %v4100 = vmul.f32 %v4099, %v4098
    %v4101 = vmul.f32 %v4100, %v4099
    %v4102 = vmul.f32 0.5, %v4101
    %v4103 = vsub.f32 1.5, %v4102
    %v4104 = vmul.f32 %v4099, %v4103
    %vm4105 = vweird.f32 %v4098
    %vm4106 = vweird.f32 %v4099
    %vm4107 = vmor %vm4105, %vm4106
    %v4108 = vsel %vm4107, %v4099, %v4104
    %v4109 = vmul.f32 %v4097, %v4108
    %v4111 = vperm.slane %v4083, 0
    %v4113 = vmul.f32 %v4109, %v4111
    %v4115 = vperm.slane %v4085, 0
    %v4117 = vadd.f32 %v4113, %v4115
    %v4118 = vld [vmem:[%s13] sm:$0xff]
    %v4119 = vld [vmem:[%s13 + $0x8] sm:$0xff]
    %v4120 = vld [vmem:[%s13 + $0x10] sm:$0xff]
    %v4121 = vld [vmem:[%s13 + $0x18] sm:$0xff]
    %v4122 = vld [vmem:[%s13 + $0x20] sm:$0xff]
    %v4123 = vld [vmem:[%s13 + $0x28] sm:$0xff]
    %v4124 = vld [vmem:[%s13 + $0x30] sm:$0xff]
    %v4125 = vld [vmem:[%s13 + $0x38] sm:$0xff]
    %v4126 = vld [vmem:[%s14] sm:$0x1]
    %v4128 = vperm.slane %v4126, 0
    %v4131 = vsel %vm104, %v4117, 0
    %4133 = vmatpush.msra.mxu0 0.0
    %4134 = vmatpush.msra.mxu0 0.0
    %4135 = vmatpush.msra.mxu0 0.0
    %4136 = vmatpush.msra.mxu0 0.0
    %4137 = vmatpush.msra.mxu0 0.0
    %4138 = vmatpush.msra.mxu0 0.0
    %4139 = vmatpush.msra.mxu0 0.0
    %4140 = vmatpush.msra.mxu0 0.0
    %4141 = vmatpush.msra.mxu0 %v4125
    %4142 = vmatpush.msra.mxu0 %v4124
    %4143 = vmatpush.msra.mxu0 %v4123
    %4144 = vmatpush.msra.mxu0 %v4122
    %4145 = vmatpush.msra.mxu0 %v4121
    %4146 = vmatpush.msra.mxu0 %v4120
    %4147 = vmatpush.msra.mxu0 %v4119
    %4148 = vmatpush.msra.mxu0 %v4118
    %4149 = vmatmul.f32.gmra.mxu0 %v4131
    %v4150 = vpop.f32.mrf.mxu0
    %v4151 = vadd.f32 %v4128, %v4150
    %4152 = vdwg.mxu0
    %v4153 = vmax.f32 %v4151, 0.0
    %v4154 = vld [vmem:[%s15] sm:$0xff]
    %v4155 = vld [vmem:[%s15 + $0x8] sm:$0xff]
    %v4156 = vld [vmem:[%s15 + $0x10] sm:$0xff]
    %v4157 = vld [vmem:[%s15 + $0x18] sm:$0xff]
    %v4158 = vld [vmem:[%s15 + $0x20] sm:$0xff]
    %v4159 = vld [vmem:[%s15 + $0x28] sm:$0xff]
    %v4160 = vld [vmem:[%s15 + $0x30] sm:$0xff]
    %v4161 = vld [vmem:[%s15 + $0x38] sm:$0xff]
    %v4162 = vld [vmem:[%s16] sm:$0x1]
    %v4164 = vperm.slane %v4162, 0
    %v4167 = vsel %vm104, %v4153, 0
    %4169 = vmatpush.msra.mxu0 0.0
    %4170 = vmatpush.msra.mxu0 0.0
    %4171 = vmatpush.msra.mxu0 0.0
    %4172 = vmatpush.msra.mxu0 0.0
    %4173 = vmatpush.msra.mxu0 0.0
    %4174 = vmatpush.msra.mxu0 0.0
    %4175 = vmatpush.msra.mxu0 0.0
    %4176 = vmatpush.msra.mxu0 0.0
    %4177 = vmatpush.msra.mxu0 %v4161
    %4178 = vmatpush.msra.mxu0 %v4160
    %4179 = vmatpush.msra.mxu0 %v4159
    %4180 = vmatpush.msra.mxu0 %v4158
    %4181 = vmatpush.msra.mxu0 %v4157
    %4182 = vmatpush.msra.mxu0 %v4156
    %4183 = vmatpush.msra.mxu0 %v4155
    %4184 = vmatpush.msra.mxu0 %v4154
    %4185 = vmatmul.f32.gmra.mxu0 %v4167
    %v4186 = vpop.f32.mrf.mxu0
    %v4187 = vadd.f32 %v4164, %v4186
    %4188 = vdwg.mxu0
    %v4189 = vlaneseq
    %v4190 = vand.u32 %v4189, 127
    %vm4191 = vcmp.lt.s32.totalorder %v4190, 6
    %v4192 = vsel %vm4191, %v4187, -1e+30
    %4193 = vmax.xlane.f32.xlu0 %v4192
    %v4194 = vpop.xlane.xlu0 %4193
    %v4195 = vsub.f32 %v4192, %v4194
    %v4196 = vmul.f32 %v4195, 1.442695
    %v4197 = vpow.pop %v4196
    %v4198 = vsel %vm4191, %v4197, 0.0
    %4199 = vadd.xlane.f32.xlu0 %v4198
    %v4200 = vpop.xlane.xlu0 %4199
    %v4201 = vrcp.pop %v4200
    %v4202 = vmul.f32 %v4200, %v4201
    %v4203 = vsub.f32 1.0, %v4202
    %v4204 = vmul.f32 %v4201, %v4203
    %v4205 = vadd.f32 %v4201, %v4204
    %vm4206 = vweird.f32 %v4200
    %vm4207 = vweird.f32 %v4201
    %vm4208 = vmor %vm4206, %vm4207
    %v4209 = vsel %vm4208, %v4201, %v4205
    %v4210 = vand.u32 2147483647, %v4200
    %vm4211 = vcmp.eq.f32.partialorder %v4210, 8.507059e+37
    %v4212 = vand.u32 %v4200, 2147483648
    %v4213 = vor.u32 1.1754944e-38, %v4212
    %v4214 = vsel %vm4211, %v4213, %v4209
    %v4215 = vmul.f32 %v4198, %v4214
    %v4216 = vsel %vm4191, %v4215, %v4187
    %4217 = vst [vmem:[#allocation2] sm:$0xff] %v4216
    // Predicated region
    $region70: #{tpu_custom_call.1} parent=1 // pred_check
      _
    $region71: #{tpu_custom_call.1} parent=1 // pred_check_branch
      %4219 = sbr.rel (0) target = $region73
    $region72: #{tpu_custom_call.1} parent=1 // pred_region
      %4221 = vsyncadd [#allocation3], 0
      %s4223 = sshll.u32 [#allocation2], 4
      %s4224 = int_to_ptr.vmem [resolvable:$true] %s4223
      %s4225 = sshll.u32 %s17, 4
      %s4226 = int_to_ptr.hbm [resolvable:$true] %s4225
      %4228 = dma.vmem_to_hbm [thread:$0]  %s4224, 128, %s4226, [#allocation3]
    $region73: #{tpu_custom_call.1} parent=1 // pred_fallthru
      _
    // Predicated region
    $region74: #{tpu_custom_call.1} parent=1 // pred_check
      _
    $region75: #{tpu_custom_call.1} parent=1 // pred_check_branch
      %4230 = sbr.rel (0) target = $region77
    $region76: #{tpu_custom_call.1} parent=1 // pred_region
      %4232 = dma.done [#allocation3], 128
    $region77: #{tpu_custom_call.1} parent=1 // pred_fallthru
      _
    %4233 = vsyncpa [#allocation3], 1

</llo_original>
